<compile_context>
chip_gen: v6e
topology: v6e:2x2x1
jax: 0.10.0
libtpu: 0.0.40
codegen_flags: <defaults>
</compile_context>

<pallas_src>
import functools

import jax
import jax.numpy as jnp
import numpy as np
from jax.experimental import pallas as pl
from jax.experimental.pallas import tpu as pltpu

MAX_LEN = 200
_LANE = 128

# (c_in, c_out, kernel, stride, leaky_slope); c_in None -> embedding_dim
_CONV_CFG = [
    (None, 500, 4, 2, 0.2),
    (500, 250, 5, 2, 0.2),
    (250, 100, 4, 2, 0.2),
    (100, 60, 3, 2, 0.2),
    (60, 60, 3, 2, 0.2),
    (60, 60, 4, 2, None),      # last conv has no activation
]
_FC_CFG = [(60, 200), (200, 150), (150, None)]   # None -> output_size


def _round_up(x, m):
    return (x + m - 1) // m * m


# ---------------------------------------------------------------------------
# Parameter construction (deterministic, PyTorch-shaped).
# ---------------------------------------------------------------------------
def init_params(key, embedding_dim, output_size):
    params = {}
    for i, (cin, cout, k, _s, _slope) in enumerate(_CONV_CFG):
        cin = embedding_dim if cin is None else cin
        key, kw, kb = jax.random.split(key, 3)
        bound = 1.0 / jnp.sqrt(cin * k)
        params[f"conv{i}_w"] = jax.random.uniform(
            kw, (cin, cout, k), jnp.float32, -bound, bound)
        params[f"conv{i}_b"] = jax.random.uniform(
            kb, (cout,), jnp.float32, -bound, bound)
    for i, (fin, fout) in enumerate(_FC_CFG):
        fout = output_size if fout is None else fout
        key, kw, kb = jax.random.split(key, 3)
        bound = 1.0 / jnp.sqrt(fin)
        # stored already transposed for matmul: (fin, fout)
        params[f"fc{i}_w"] = jax.random.uniform(
            kw, (fin, fout), jnp.float32, -bound, bound)
        params[f"fc{i}_b"] = jax.random.uniform(
            kb, (fout,), jnp.float32, -bound, bound)
    return params


# ---------------------------------------------------------------------------
# Host-side packing: fold FC stack into the last conv, fuse taps into the
# lane (N) dimension, build constant 0/1 interleave matrices, pad to 128.
# ---------------------------------------------------------------------------
def _interleave_matrix(length, k):
    """P[2*i + t, t*length + i] = 1 -> out = P @ [z_0; z_1; ...; z_{k-1}]."""
    l_out = 2 * (length - 1) + k
    p = np.zeros((l_out, k * length), np.float32)
    for t in range(k):
        for i in range(length):
            p[2 * i + t, t * length + i] = 1.0
    return jnp.asarray(p, dtype=jnp.bfloat16)


def _pack_params(params, embedding_dim, output_size):
    n_conv = len(_CONV_CFG)

    # --- collapse the 3 activation-free Linear layers in f32 (exact) -------
    w_fc = params["fc0_w"].astype(jnp.float32)
    b_fc = params["fc0_b"].astype(jnp.float32)
    for i in range(1, len(_FC_CFG)):
        wi = params[f"fc{i}_w"].astype(jnp.float32)
        bi = params[f"fc{i}_b"].astype(jnp.float32)
        w_fc = w_fc @ wi
        b_fc = b_fc @ wi + bi
    # w_fc: (60, output_size), b_fc: (output_size,)

    flat = []
    length = 1
    for i, (cin, cout, k, _s, _slope) in enumerate(_CONV_CFG):
        cin = embedding_dim if cin is None else cin
        w = params[f"conv{i}_w"].astype(jnp.float32)     # (cin, cout, k)
        b = params[f"conv{i}_b"].astype(jnp.float32)     # (cout,)
        if i == n_conv - 1:
            # fold the collapsed FC into the last (activation-free) conv
            w = jnp.einsum("iot,of->ift", w, w_fc)       # (cin, out_size, k)
            b = b @ w_fc + b_fc
            cout = output_size
        cin_p, cout_p = _round_up(cin, _LANE), _round_up(cout, _LANE)
        # tap-fused weight: columns [t*cout_p : (t+1)*cout_p] = W[:, :, t]
        w_all = jnp.zeros((cin_p, k * cout_p), jnp.float32)
        for t in range(k):
            w_all = w_all.at[:cin, t * cout_p:t * cout_p + cout].set(w[:, :, t])
        bias = jnp.zeros((1, cout_p), jnp.float32).at[0, :cout].set(b)
        flat += [w_all.astype(jnp.bfloat16), bias, _interleave_matrix(length, k)]
        length = 2 * (length - 1) + k
    return flat


# ---------------------------------------------------------------------------
# Fused Pallas kernel: whole DecoderCNN forward for one group of sequences.
#   refs layout: [w0, b0, p0, w1, b1, p1, ..., w5, b5, p5, out_ref]
# ---------------------------------------------------------------------------
def _fused_decoder_kernel(x_ref, *refs, conv_ks, conv_slopes, group):
    n_conv = len(conv_ks)
    out_ref = refs[3 * n_conv]

    xg = x_ref[0].astype(jnp.float32)                 # (group, emb_p)
    for g in range(group):                            # unrolled over the group
        h = xg[g:g + 1, :]                            # (1, emb_p) f32
        length = 1
        for li in range(n_conv):
            w_ref = refs[3 * li]                      # (cin_p, k*cout_p) bf16
            b_ref = refs[3 * li + 1]                  # (1, cout_p)       f32
            p_ref = refs[3 * li + 2]                  # (l_out, k*length) bf16
            k = conv_ks[li]
            slope = conv_slopes[li]
            cout_p = b_ref.shape[1]
            l_out = 2 * (length - 1) + k

            # all taps in one MXU matmul: (length, cin_p) @ (cin_p, k*cout_p)
            z = jnp.dot(h.astype(jnp.bfloat16), w_ref[...],
                        preferred_element_type=jnp.float32)
            # stack taps along rows: row t*length + i  ==  z_t[i]
            zs = jnp.concatenate(
                [z[:, t * cout_p:(t + 1) * cout_p] for t in range(k)], axis=0)
            # stride-2 scatter out[2i+t] += z_t[i] as ONE constant 0/1 matmul
            acc = jnp.dot(p_ref[...], zs.astype(jnp.bfloat16),
                          preferred_element_type=jnp.float32)  # (l_out, cout_p)
            acc = acc + b_ref[...]                    # f32 bias add
            if slope is not None:                     # f32 LeakyReLU (v5e-safe)
                acc = jnp.where(acc >= 0.0, acc, jnp.float32(slope) * acc)
            h = acc
            length = l_out

        out_ref[g] = h.astype(out_ref.dtype)          # (MAX_LEN, out_pad)


# ---------------------------------------------------------------------------
# Forward pass == DecoderCNN.forward (single fused pallas_call)
# ---------------------------------------------------------------------------
def decoder_cnn_forward(params, x):
    batch, embedding_dim = x.shape
    output_size = params["fc2_b"].shape[0]
    emb_p = _round_up(embedding_dim, _LANE)
    out_p = _round_up(output_size, _LANE)

    # static length check (mirrors the module's MAX_LEN check; lengths are
    # 1 -> 4 -> 11 -> 24 -> 49 -> 99 -> 200, fully static)
    length = 1
    for (_ci, _co, k, s, _sl) in _CONV_CFG:
        assert s == 2
        length = 2 * (length - 1) + k
    assert length == MAX_LEN, length

    flat = _pack_params(params, embedding_dim, output_size)

    # batch grouping: G sequences per grid step (amortize per-step overhead),
    # while keeping >= 2 grid steps when batch >= 2 (both v7x TensorCores).
    group = max(1, min(8, batch // 2))
    num_groups = pl.cdiv(batch, group)
    b_pad = num_groups * group

    x_pad = jnp.zeros((b_pad, emb_p), jnp.float32)
    x_pad = x_pad.at[:batch, :embedding_dim].set(x.astype(jnp.float32))
    x_grp = x_pad.reshape(num_groups, group, emb_p)

    conv_ks = tuple(cfg[2] for cfg in _CONV_CFG)
    conv_slopes = tuple(cfg[4] for cfg in _CONV_CFG)
    kernel = functools.partial(_fused_decoder_kernel, conv_ks=conv_ks,
                               conv_slopes=conv_slopes, group=group)

    def _const_map(ndim):
        zero = (0,) * ndim
        return lambda b: zero

    in_specs = [pl.BlockSpec((1, group, emb_p), lambda b: (b, 0, 0))]
    in_specs += [pl.BlockSpec(a.shape, _const_map(a.ndim)) for a in flat]
    out_specs = pl.BlockSpec((group, MAX_LEN, out_p), lambda b: (b, 0, 0))

    y = pl.pallas_call(
        kernel,
        grid=(num_groups,),
        in_specs=in_specs,
        out_specs=out_specs,
        out_shape=jax.ShapeDtypeStruct((b_pad, MAX_LEN, out_p), jnp.float32),
        compiler_params=pltpu.CompilerParams(
            dimension_semantics=("parallel",),       # 2 TCs on v7x
            vmem_limit_bytes=32 * 1024 * 1024),      # v7x-safe explicit budget
    )(x_grp, *flat)

    return y[:batch, :, :output_size]


# ---------------------------------------------------------------------------
# Pure-JAX f32 reference (dilate + pad + flipped-kernel correlation, FC stack
# applied layer-by-layer), used only as a numerical cross-check in __main__.
# ---------------------------------------------------------------------------
def _reference_forward(params, x):
    batch = x.shape[0]
    h = x[:, :, None].astype(jnp.float32)          # (B, emb, 1)
    for i, (_ci, _co, k, stride, slope) in enumerate(_CONV_CFG):
        w = params[f"conv{i}_w"].astype(jnp.float32)   # (cin, cout, k)
        b = params[f"conv{i}_b"].astype(jnp.float32)
        n, cin, lin = h.shape
        cout = w.shape[1]
        lout = (lin - 1) * stride + k
        ld = (lin - 1) * stride + 1
        xd = jnp.zeros((n, cin, ld), jnp.float32).at[:, :, ::stride].set(h)
        xdp = jnp.pad(xd, ((0, 0), (0, 0), (k - 1, k - 1)))
        patches = jnp.stack([xdp[:, :, u:u + lout] for u in range(k)], axis=-1)
        patches = jnp.transpose(patches, (0, 2, 1, 3)).reshape(n * lout, cin * k)
        wf = jnp.transpose(w[:, :, ::-1], (0, 2, 1)).reshape(cin * k, cout)
        y = patches @ wf + b
        if slope is not None:
            y = jnp.where(y >= 0, y, slope * y)
        h = jnp.transpose(y.reshape(n, lout, cout), (0, 2, 1))
    h = jnp.transpose(h, (0, 2, 1)).reshape(batch * MAX_LEN, -1)
    for i in range(len(_FC_CFG)):
        h = h @ params[f"fc{i}_w"] + params[f"fc{i}_b"]
    return h.reshape(batch, MAX_LEN, -1)


if __name__ == "__main__":
    embedding_dim = 32
    output_size = 16
    batch = 2

    key = jax.random.PRNGKey(0)
    k_params, k_x = jax.random.split(key)
    params = init_params(k_params, embedding_dim, output_size)
    x = jax.random.normal(k_x, (batch, embedding_dim), jnp.float32)

    fwd = jax.jit(decoder_cnn_forward)
    out = jax.block_until_ready(fwd(params, x))

    assert out.shape == (batch, MAX_LEN, output_size), out.shape
    assert bool(jnp.isfinite(out).all())

    # cross-check against the pure-JAX f32 reference (bf16-MXU tolerance,
    # tightened from 8e-2 to 2e-2 per review)
    ref = jax.block_until_ready(jax.jit(_reference_forward)(params, x))
    num = jnp.sqrt(jnp.sum((out - ref) ** 2))
    den = jnp.sqrt(jnp.sum(ref ** 2)) + 1e-6
    rel_err = float(num / den)
    assert rel_err < 2e-2, rel_err

    print("KERNEL_OK")
</pallas_src>

<mosaic_0001>
module attributes {stable_mosaic.version = 11 : i64} {
  func.func @_fused_decoder_kernel(%arg0: i32, %arg1: memref<1x1x128xf32, #tpu.memory_space<vmem>>, %arg2: memref<128x2048xbf16, #tpu.memory_space<vmem>>, %arg3: memref<1x512xf32, #tpu.memory_space<vmem>>, %arg4: memref<4x4xbf16, #tpu.memory_space<vmem>>, %arg5: memref<512x1280xbf16, #tpu.memory_space<vmem>>, %arg6: memref<1x256xf32, #tpu.memory_space<vmem>>, %arg7: memref<11x20xbf16, #tpu.memory_space<vmem>>, %arg8: memref<256x512xbf16, #tpu.memory_space<vmem>>, %arg9: memref<1x128xf32, #tpu.memory_space<vmem>>, %arg10: memref<24x44xbf16, #tpu.memory_space<vmem>>, %arg11: memref<128x384xbf16, #tpu.memory_space<vmem>>, %arg12: memref<1x128xf32, #tpu.memory_space<vmem>>, %arg13: memref<49x72xbf16, #tpu.memory_space<vmem>>, %arg14: memref<128x384xbf16, #tpu.memory_space<vmem>>, %arg15: memref<1x128xf32, #tpu.memory_space<vmem>>, %arg16: memref<99x147xbf16, #tpu.memory_space<vmem>>, %arg17: memref<128x512xbf16, #tpu.memory_space<vmem>>, %arg18: memref<1x128xf32, #tpu.memory_space<vmem>>, %arg19: memref<200x396xbf16, #tpu.memory_space<vmem>>, %arg20: memref<1x200x128xf32, #tpu.memory_space<vmem>>) attributes {dimension_semantics = [#tpu.dimension_semantics<parallel>], iteration_bounds = array<i64: 2>, scalar_prefetch = 0 : i64, scratch_operands = 0 : i64, tpu.core_type = #tpu.core_type<tc>, window_params = [{transform_indices = @transform_0, window_bounds = array<i64: 1, 1, 128>}, {pipeline_mode = #tpu.pipeline_mode<synchronous>, transform_indices = @transform_1, window_bounds = array<i64: 128, 2048>}, {pipeline_mode = #tpu.pipeline_mode<synchronous>, transform_indices = @transform_2, window_bounds = array<i64: 1, 512>}, {pipeline_mode = #tpu.pipeline_mode<synchronous>, transform_indices = @transform_3, window_bounds = array<i64: 4, 4>}, {pipeline_mode = #tpu.pipeline_mode<synchronous>, transform_indices = @transform_4, window_bounds = array<i64: 512, 1280>}, {pipeline_mode = #tpu.pipeline_mode<synchronous>, transform_indices = @transform_5, window_bounds = array<i64: 1, 256>}, {pipeline_mode = #tpu.pipeline_mode<synchronous>, transform_indices = @transform_6, window_bounds = array<i64: 11, 20>}, {pipeline_mode = #tpu.pipeline_mode<synchronous>, transform_indices = @transform_7, window_bounds = array<i64: 256, 512>}, {pipeline_mode = #tpu.pipeline_mode<synchronous>, transform_indices = @transform_8, window_bounds = array<i64: 1, 128>}, {pipeline_mode = #tpu.pipeline_mode<synchronous>, transform_indices = @transform_9, window_bounds = array<i64: 24, 44>}, {pipeline_mode = #tpu.pipeline_mode<synchronous>, transform_indices = @transform_10, window_bounds = array<i64: 128, 384>}, {pipeline_mode = #tpu.pipeline_mode<synchronous>, transform_indices = @transform_11, window_bounds = array<i64: 1, 128>}, {pipeline_mode = #tpu.pipeline_mode<synchronous>, transform_indices = @transform_12, window_bounds = array<i64: 49, 72>}, {pipeline_mode = #tpu.pipeline_mode<synchronous>, transform_indices = @transform_13, window_bounds = array<i64: 128, 384>}, {pipeline_mode = #tpu.pipeline_mode<synchronous>, transform_indices = @transform_14, window_bounds = array<i64: 1, 128>}, {pipeline_mode = #tpu.pipeline_mode<synchronous>, transform_indices = @transform_15, window_bounds = array<i64: 99, 147>}, {pipeline_mode = #tpu.pipeline_mode<synchronous>, transform_indices = @transform_16, window_bounds = array<i64: 128, 512>}, {pipeline_mode = #tpu.pipeline_mode<synchronous>, transform_indices = @transform_17, window_bounds = array<i64: 1, 128>}, {pipeline_mode = #tpu.pipeline_mode<synchronous>, transform_indices = @transform_18, window_bounds = array<i64: 200, 396>}, {transform_indices = @transform_19, window_bounds = array<i64: 1, 200, 128>}]} {
    %c0 = arith.constant 0 : index
    %c0_0 = arith.constant 0 : index
    %c0_1 = arith.constant 0 : index
    %0 = vector.load %arg1[%c0, %c0_0, %c0_1] : memref<1x1x128xf32, #tpu.memory_space<vmem>>, vector<1x1x128xf32>
    %1 = vector.shape_cast %0 : vector<1x1x128xf32> to vector<1x128xf32>
    %2 = arith.truncf %1 : vector<1x128xf32> to vector<1x128xbf16>
    %c0_2 = arith.constant 0 : index
    %c0_3 = arith.constant 0 : index
    %3 = vector.load %arg2[%c0_2, %c0_3] : memref<128x2048xbf16, #tpu.memory_space<vmem>>, vector<128x2048xbf16>
    %cst = arith.constant dense<0.000000e+00> : vector<1x2048xf32>
    %4 = tpu.matmul %2, %3, %cst {dimension_numbers = #tpu.dot_dimension_numbers<[1], [0], [0], [1], [0, 0, 1, 1], [], []>} : vector<1x128xbf16>, vector<128x2048xbf16>, vector<1x2048xf32> -> vector<1x2048xf32>
    %5 = vector.extract_strided_slice %4 {offsets = [0, 0], sizes = [1, 512], strides = [1, 1]} : vector<1x2048xf32> to vector<1x512xf32>
    %6 = vector.extract_strided_slice %4 {offsets = [0, 512], sizes = [1, 512], strides = [1, 1]} : vector<1x2048xf32> to vector<1x512xf32>
    %7 = vector.extract_strided_slice %4 {offsets = [0, 1024], sizes = [1, 512], strides = [1, 1]} : vector<1x2048xf32> to vector<1x512xf32>
    %8 = vector.extract_strided_slice %4 {offsets = [0, 1536], sizes = [1, 512], strides = [1, 1]} : vector<1x2048xf32> to vector<1x512xf32>
    %9 = tpu.concatenate %5, %6, %7, %8 in 0 : vector<1x512xf32>, vector<1x512xf32>, vector<1x512xf32>, vector<1x512xf32> -> vector<4x512xf32>
    %c0_4 = arith.constant 0 : index
    %c0_5 = arith.constant 0 : index
    %10 = vector.load %arg4[%c0_4, %c0_5] : memref<4x4xbf16, #tpu.memory_space<vmem>>, vector<4x4xbf16>
    %11 = arith.truncf %9 : vector<4x512xf32> to vector<4x512xbf16>
    %cst_6 = arith.constant dense<0.000000e+00> : vector<4x512xf32>
    %12 = tpu.matmul %10, %11, %cst_6 {dimension_numbers = #tpu.dot_dimension_numbers<[1], [0], [0], [1], [0, 0, 1, 1], [], []>} : vector<4x4xbf16>, vector<4x512xbf16>, vector<4x512xf32> -> vector<4x512xf32>
    %c0_7 = arith.constant 0 : index
    %c0_8 = arith.constant 0 : index
    %13 = vector.load %arg3[%c0_7, %c0_8] : memref<1x512xf32, #tpu.memory_space<vmem>>, vector<1x512xf32>
    %14 = vector.broadcast %13 : vector<1x512xf32> to vector<4x512xf32>
    %15 = arith.addf %12, %14 : vector<4x512xf32>
    %cst_9 = arith.constant 0.000000e+00 : f32
    %16 = vector.broadcast %cst_9 : f32 to vector<4x512xf32>
    %17 = arith.cmpf oge, %15, %16 : vector<4x512xf32>
    %cst_10 = arith.constant 2.000000e-01 : f32
    %18 = vector.broadcast %cst_10 : f32 to vector<4x512xf32>
    %19 = arith.mulf %18, %15 : vector<4x512xf32>
    %20 = arith.select %17, %15, %19 : vector<4x512xi1>, vector<4x512xf32>
    %21 = arith.truncf %20 : vector<4x512xf32> to vector<4x512xbf16>
    %c0_11 = arith.constant 0 : index
    %c0_12 = arith.constant 0 : index
    %22 = vector.load %arg5[%c0_11, %c0_12] : memref<512x1280xbf16, #tpu.memory_space<vmem>>, vector<512x1280xbf16>
    %cst_13 = arith.constant dense<0.000000e+00> : vector<4x1280xf32>
    %23 = tpu.matmul %21, %22, %cst_13 {dimension_numbers = #tpu.dot_dimension_numbers<[1], [0], [0], [1], [0, 0, 1, 1], [], []>} : vector<4x512xbf16>, vector<512x1280xbf16>, vector<4x1280xf32> -> vector<4x1280xf32>
    %24 = vector.extract_strided_slice %23 {offsets = [0, 0], sizes = [4, 256], strides = [1, 1]} : vector<4x1280xf32> to vector<4x256xf32>
    %25 = vector.extract_strided_slice %23 {offsets = [0, 256], sizes = [4, 256], strides = [1, 1]} : vector<4x1280xf32> to vector<4x256xf32>
    %26 = vector.extract_strided_slice %23 {offsets = [0, 512], sizes = [4, 256], strides = [1, 1]} : vector<4x1280xf32> to vector<4x256xf32>
    %27 = vector.extract_strided_slice %23 {offsets = [0, 768], sizes = [4, 256], strides = [1, 1]} : vector<4x1280xf32> to vector<4x256xf32>
    %28 = vector.extract_strided_slice %23 {offsets = [0, 1024], sizes = [4, 256], strides = [1, 1]} : vector<4x1280xf32> to vector<4x256xf32>
    %29 = tpu.concatenate %24, %25, %26, %27, %28 in 0 : vector<4x256xf32>, vector<4x256xf32>, vector<4x256xf32>, vector<4x256xf32>, vector<4x256xf32> -> vector<20x256xf32>
    %c0_14 = arith.constant 0 : index
    %c0_15 = arith.constant 0 : index
    %30 = vector.load %arg7[%c0_14, %c0_15] : memref<11x20xbf16, #tpu.memory_space<vmem>>, vector<11x20xbf16>
    %31 = arith.truncf %29 : vector<20x256xf32> to vector<20x256xbf16>
    %cst_16 = arith.constant dense<0.000000e+00> : vector<11x256xf32>
    %32 = tpu.matmul %30, %31, %cst_16 {dimension_numbers = #tpu.dot_dimension_numbers<[1], [0], [0], [1], [0, 0, 1, 1], [], []>} : vector<11x20xbf16>, vector<20x256xbf16>, vector<11x256xf32> -> vector<11x256xf32>
    %c0_17 = arith.constant 0 : index
    %c0_18 = arith.constant 0 : index
    %33 = vector.load %arg6[%c0_17, %c0_18] : memref<1x256xf32, #tpu.memory_space<vmem>>, vector<1x256xf32>
    %34 = vector.broadcast %33 : vector<1x256xf32> to vector<11x256xf32>
    %35 = arith.addf %32, %34 : vector<11x256xf32>
    %cst_19 = arith.constant 0.000000e+00 : f32
    %36 = vector.broadcast %cst_19 : f32 to vector<11x256xf32>
    %37 = arith.cmpf oge, %35, %36 : vector<11x256xf32>
    %cst_20 = arith.constant 2.000000e-01 : f32
    %38 = vector.broadcast %cst_20 : f32 to vector<11x256xf32>
    %39 = arith.mulf %38, %35 : vector<11x256xf32>
    %40 = arith.select %37, %35, %39 : vector<11x256xi1>, vector<11x256xf32>
    %41 = arith.truncf %40 : vector<11x256xf32> to vector<11x256xbf16>
    %c0_21 = arith.constant 0 : index
    %c0_22 = arith.constant 0 : index
    %42 = vector.load %arg8[%c0_21, %c0_22] : memref<256x512xbf16, #tpu.memory_space<vmem>>, vector<256x512xbf16>
    %cst_23 = arith.constant dense<0.000000e+00> : vector<11x512xf32>
    %43 = tpu.matmul %41, %42, %cst_23 {dimension_numbers = #tpu.dot_dimension_numbers<[1], [0], [0], [1], [0, 0, 1, 1], [], []>} : vector<11x256xbf16>, vector<256x512xbf16>, vector<11x512xf32> -> vector<11x512xf32>
    %44 = vector.extract_strided_slice %43 {offsets = [0, 0], sizes = [11, 128], strides = [1, 1]} : vector<11x512xf32> to vector<11x128xf32>
    %45 = vector.extract_strided_slice %43 {offsets = [0, 128], sizes = [11, 128], strides = [1, 1]} : vector<11x512xf32> to vector<11x128xf32>
    %46 = vector.extract_strided_slice %43 {offsets = [0, 256], sizes = [11, 128], strides = [1, 1]} : vector<11x512xf32> to vector<11x128xf32>
    %47 = vector.extract_strided_slice %43 {offsets = [0, 384], sizes = [11, 128], strides = [1, 1]} : vector<11x512xf32> to vector<11x128xf32>
    %48 = tpu.concatenate %44, %45, %46, %47 in 0 : vector<11x128xf32>, vector<11x128xf32>, vector<11x128xf32>, vector<11x128xf32> -> vector<44x128xf32>
    %c0_24 = arith.constant 0 : index
    %c0_25 = arith.constant 0 : index
    %49 = vector.load %arg10[%c0_24, %c0_25] : memref<24x44xbf16, #tpu.memory_space<vmem>>, vector<24x44xbf16>
    %50 = arith.truncf %48 : vector<44x128xf32> to vector<44x128xbf16>
    %cst_26 = arith.constant dense<0.000000e+00> : vector<24x128xf32>
    %51 = tpu.matmul %49, %50, %cst_26 {dimension_numbers = #tpu.dot_dimension_numbers<[1], [0], [0], [1], [0, 0, 1, 1], [], []>} : vector<24x44xbf16>, vector<44x128xbf16>, vector<24x128xf32> -> vector<24x128xf32>
    %c0_27 = arith.constant 0 : index
    %c0_28 = arith.constant 0 : index
    %52 = vector.load %arg9[%c0_27, %c0_28] : memref<1x128xf32, #tpu.memory_space<vmem>>, vector<1x128xf32>
    %53 = vector.broadcast %52 : vector<1x128xf32> to vector<24x128xf32>
    %54 = arith.addf %51, %53 : vector<24x128xf32>
    %cst_29 = arith.constant 0.000000e+00 : f32
    %55 = vector.broadcast %cst_29 : f32 to vector<24x128xf32>
    %56 = arith.cmpf oge, %54, %55 : vector<24x128xf32>
    %cst_30 = arith.constant 2.000000e-01 : f32
    %57 = vector.broadcast %cst_30 : f32 to vector<24x128xf32>
    %58 = arith.mulf %57, %54 : vector<24x128xf32>
    %59 = arith.select %56, %54, %58 : vector<24x128xi1>, vector<24x128xf32>
    %60 = arith.truncf %59 : vector<24x128xf32> to vector<24x128xbf16>
    %c0_31 = arith.constant 0 : index
    %c0_32 = arith.constant 0 : index
    %61 = vector.load %arg11[%c0_31, %c0_32] : memref<128x384xbf16, #tpu.memory_space<vmem>>, vector<128x384xbf16>
    %cst_33 = arith.constant dense<0.000000e+00> : vector<24x384xf32>
    %62 = tpu.matmul %60, %61, %cst_33 {dimension_numbers = #tpu.dot_dimension_numbers<[1], [0], [0], [1], [0, 0, 1, 1], [], []>} : vector<24x128xbf16>, vector<128x384xbf16>, vector<24x384xf32> -> vector<24x384xf32>
    %63 = vector.extract_strided_slice %62 {offsets = [0, 0], sizes = [24, 128], strides = [1, 1]} : vector<24x384xf32> to vector<24x128xf32>
    %64 = vector.extract_strided_slice %62 {offsets = [0, 128], sizes = [24, 128], strides = [1, 1]} : vector<24x384xf32> to vector<24x128xf32>
    %65 = vector.extract_strided_slice %62 {offsets = [0, 256], sizes = [24, 128], strides = [1, 1]} : vector<24x384xf32> to vector<24x128xf32>
    %66 = tpu.concatenate %63, %64, %65 in 0 : vector<24x128xf32>, vector<24x128xf32>, vector<24x128xf32> -> vector<72x128xf32>
    %c0_34 = arith.constant 0 : index
    %c0_35 = arith.constant 0 : index
    %67 = vector.load %arg13[%c0_34, %c0_35] : memref<49x72xbf16, #tpu.memory_space<vmem>>, vector<49x72xbf16>
    %68 = arith.truncf %66 : vector<72x128xf32> to vector<72x128xbf16>
    %cst_36 = arith.constant dense<0.000000e+00> : vector<49x128xf32>
    %69 = tpu.matmul %67, %68, %cst_36 {dimension_numbers = #tpu.dot_dimension_numbers<[1], [0], [0], [1], [0, 0, 1, 1], [], []>} : vector<49x72xbf16>, vector<72x128xbf16>, vector<49x128xf32> -> vector<49x128xf32>
    %c0_37 = arith.constant 0 : index
    %c0_38 = arith.constant 0 : index
    %70 = vector.load %arg12[%c0_37, %c0_38] : memref<1x128xf32, #tpu.memory_space<vmem>>, vector<1x128xf32>
    %71 = vector.broadcast %70 : vector<1x128xf32> to vector<49x128xf32>
    %72 = arith.addf %69, %71 : vector<49x128xf32>
    %cst_39 = arith.constant 0.000000e+00 : f32
    %73 = vector.broadcast %cst_39 : f32 to vector<49x128xf32>
    %74 = arith.cmpf oge, %72, %73 : vector<49x128xf32>
    %cst_40 = arith.constant 2.000000e-01 : f32
    %75 = vector.broadcast %cst_40 : f32 to vector<49x128xf32>
    %76 = arith.mulf %75, %72 : vector<49x128xf32>
    %77 = arith.select %74, %72, %76 : vector<49x128xi1>, vector<49x128xf32>
    %78 = arith.truncf %77 : vector<49x128xf32> to vector<49x128xbf16>
    %c0_41 = arith.constant 0 : index
    %c0_42 = arith.constant 0 : index
    %79 = vector.load %arg14[%c0_41, %c0_42] : memref<128x384xbf16, #tpu.memory_space<vmem>>, vector<128x384xbf16>
    %cst_43 = arith.constant dense<0.000000e+00> : vector<49x384xf32>
    %80 = tpu.matmul %78, %79, %cst_43 {dimension_numbers = #tpu.dot_dimension_numbers<[1], [0], [0], [1], [0, 0, 1, 1], [], []>} : vector<49x128xbf16>, vector<128x384xbf16>, vector<49x384xf32> -> vector<49x384xf32>
    %81 = vector.extract_strided_slice %80 {offsets = [0, 0], sizes = [49, 128], strides = [1, 1]} : vector<49x384xf32> to vector<49x128xf32>
    %82 = vector.extract_strided_slice %80 {offsets = [0, 128], sizes = [49, 128], strides = [1, 1]} : vector<49x384xf32> to vector<49x128xf32>
    %83 = vector.extract_strided_slice %80 {offsets = [0, 256], sizes = [49, 128], strides = [1, 1]} : vector<49x384xf32> to vector<49x128xf32>
    %84 = tpu.concatenate %81, %82, %83 in 0 : vector<49x128xf32>, vector<49x128xf32>, vector<49x128xf32> -> vector<147x128xf32>
    %c0_44 = arith.constant 0 : index
    %c0_45 = arith.constant 0 : index
    %85 = vector.load %arg16[%c0_44, %c0_45] : memref<99x147xbf16, #tpu.memory_space<vmem>>, vector<99x147xbf16>
    %86 = arith.truncf %84 : vector<147x128xf32> to vector<147x128xbf16>
    %cst_46 = arith.constant dense<0.000000e+00> : vector<99x128xf32>
    %87 = tpu.matmul %85, %86, %cst_46 {dimension_numbers = #tpu.dot_dimension_numbers<[1], [0], [0], [1], [0, 0, 1, 1], [], []>} : vector<99x147xbf16>, vector<147x128xbf16>, vector<99x128xf32> -> vector<99x128xf32>
    %c0_47 = arith.constant 0 : index
    %c0_48 = arith.constant 0 : index
    %88 = vector.load %arg15[%c0_47, %c0_48] : memref<1x128xf32, #tpu.memory_space<vmem>>, vector<1x128xf32>
    %89 = vector.broadcast %88 : vector<1x128xf32> to vector<99x128xf32>
    %90 = arith.addf %87, %89 : vector<99x128xf32>
    %cst_49 = arith.constant 0.000000e+00 : f32
    %91 = vector.broadcast %cst_49 : f32 to vector<99x128xf32>
    %92 = arith.cmpf oge, %90, %91 : vector<99x128xf32>
    %cst_50 = arith.constant 2.000000e-01 : f32
    %93 = vector.broadcast %cst_50 : f32 to vector<99x128xf32>
    %94 = arith.mulf %93, %90 : vector<99x128xf32>
    %95 = arith.select %92, %90, %94 : vector<99x128xi1>, vector<99x128xf32>
    %96 = arith.truncf %95 : vector<99x128xf32> to vector<99x128xbf16>
    %c0_51 = arith.constant 0 : index
    %c0_52 = arith.constant 0 : index
    %97 = vector.load %arg17[%c0_51, %c0_52] : memref<128x512xbf16, #tpu.memory_space<vmem>>, vector<128x512xbf16>
    %cst_53 = arith.constant dense<0.000000e+00> : vector<99x512xf32>
    %98 = tpu.matmul %96, %97, %cst_53 {dimension_numbers = #tpu.dot_dimension_numbers<[1], [0], [0], [1], [0, 0, 1, 1], [], []>} : vector<99x128xbf16>, vector<128x512xbf16>, vector<99x512xf32> -> vector<99x512xf32>
    %99 = vector.extract_strided_slice %98 {offsets = [0, 0], sizes = [99, 128], strides = [1, 1]} : vector<99x512xf32> to vector<99x128xf32>
    %100 = vector.extract_strided_slice %98 {offsets = [0, 128], sizes = [99, 128], strides = [1, 1]} : vector<99x512xf32> to vector<99x128xf32>
    %101 = vector.extract_strided_slice %98 {offsets = [0, 256], sizes = [99, 128], strides = [1, 1]} : vector<99x512xf32> to vector<99x128xf32>
    %102 = vector.extract_strided_slice %98 {offsets = [0, 384], sizes = [99, 128], strides = [1, 1]} : vector<99x512xf32> to vector<99x128xf32>
    %103 = tpu.concatenate %99, %100, %101, %102 in 0 : vector<99x128xf32>, vector<99x128xf32>, vector<99x128xf32>, vector<99x128xf32> -> vector<396x128xf32>
    %c0_54 = arith.constant 0 : index
    %c0_55 = arith.constant 0 : index
    %104 = vector.load %arg19[%c0_54, %c0_55] : memref<200x396xbf16, #tpu.memory_space<vmem>>, vector<200x396xbf16>
    %105 = arith.truncf %103 : vector<396x128xf32> to vector<396x128xbf16>
    %cst_56 = arith.constant dense<0.000000e+00> : vector<200x128xf32>
    %106 = tpu.matmul %104, %105, %cst_56 {dimension_numbers = #tpu.dot_dimension_numbers<[1], [0], [0], [1], [0, 0, 1, 1], [], []>} : vector<200x396xbf16>, vector<396x128xbf16>, vector<200x128xf32> -> vector<200x128xf32>
    %c0_57 = arith.constant 0 : index
    %c0_58 = arith.constant 0 : index
    %107 = vector.load %arg18[%c0_57, %c0_58] : memref<1x128xf32, #tpu.memory_space<vmem>>, vector<1x128xf32>
    %108 = vector.broadcast %107 : vector<1x128xf32> to vector<200x128xf32>
    %109 = arith.addf %106, %108 : vector<200x128xf32>
    %c0_59 = arith.constant 0 : index
    %c0_60 = arith.constant 0 : index
    %c0_61 = arith.constant 0 : index
    %110 = vector.load %arg20[%c0_59, %c0_60, %c0_61] : memref<1x200x128xf32, #tpu.memory_space<vmem>>, vector<1x200x128xf32>
    %111 = vector.shape_cast %110 : vector<1x200x128xf32> to vector<200x128xf32>
    %112 = vector.shape_cast %109 : vector<200x128xf32> to vector<1x200x128xf32>
    tpu.vector_store %arg20[%c0_59, %c0_60, %c0_61], %112 {strides = array<i32>} : memref<1x200x128xf32, #tpu.memory_space<vmem>>, vector<1x200x128xf32>,
    return
  }
  func.func @transform_0(%arg0: i32) -> (i32, i32, i32) {
    %c0_i32 = arith.constant 0 : i32
    %c0_i32_0 = arith.constant 0 : i32
    %c0_i32_1 = arith.constant 0 : i32
    return %arg0, %c0_i32, %c0_i32_0 : i32, i32, i32
  }
  func.func @transform_1(%arg0: i32) -> (i32, i32) {
    %c0_i32 = arith.constant 0 : i32
    %c0_i32_0 = arith.constant 0 : i32
    %c0_i32_1 = arith.constant 0 : i32
    return %c0_i32, %c0_i32_0 : i32, i32
  }
  func.func @transform_2(%arg0: i32) -> (i32, i32) {
    %c0_i32 = arith.constant 0 : i32
    %c0_i32_0 = arith.constant 0 : i32
    %c0_i32_1 = arith.constant 0 : i32
    return %c0_i32, %c0_i32_0 : i32, i32
  }
  func.func @transform_3(%arg0: i32) -> (i32, i32) {
    %c0_i32 = arith.constant 0 : i32
    %c0_i32_0 = arith.constant 0 : i32
    %c0_i32_1 = arith.constant 0 : i32
    return %c0_i32, %c0_i32_0 : i32, i32
  }
  func.func @transform_4(%arg0: i32) -> (i32, i32) {
    %c0_i32 = arith.constant 0 : i32
    %c0_i32_0 = arith.constant 0 : i32
    %c0_i32_1 = arith.constant 0 : i32
    return %c0_i32, %c0_i32_0 : i32, i32
  }
  func.func @transform_5(%arg0: i32) -> (i32, i32) {
    %c0_i32 = arith.constant 0 : i32
    %c0_i32_0 = arith.constant 0 : i32
    %c0_i32_1 = arith.constant 0 : i32
    return %c0_i32, %c0_i32_0 : i32, i32
  }
  func.func @transform_6(%arg0: i32) -> (i32, i32) {
    %c0_i32 = arith.constant 0 : i32
    %c0_i32_0 = arith.constant 0 : i32
    %c0_i32_1 = arith.constant 0 : i32
    return %c0_i32, %c0_i32_0 : i32, i32
  }
  func.func @transform_7(%arg0: i32) -> (i32, i32) {
    %c0_i32 = arith.constant 0 : i32
    %c0_i32_0 = arith.constant 0 : i32
    %c0_i32_1 = arith.constant 0 : i32
    return %c0_i32, %c0_i32_0 : i32, i32
  }
  func.func @transform_8(%arg0: i32) -> (i32, i32) {
    %c0_i32 = arith.constant 0 : i32
    %c0_i32_0 = arith.constant 0 : i32
    %c0_i32_1 = arith.constant 0 : i32
    return %c0_i32, %c0_i32_0 : i32, i32
  }
  func.func @transform_9(%arg0: i32) -> (i32, i32) {
    %c0_i32 = arith.constant 0 : i32
    %c0_i32_0 = arith.constant 0 : i32
    %c0_i32_1 = arith.constant 0 : i32
    return %c0_i32, %c0_i32_0 : i32, i32
  }
  func.func @transform_10(%arg0: i32) -> (i32, i32) {
    %c0_i32 = arith.constant 0 : i32
    %c0_i32_0 = arith.constant 0 : i32
    %c0_i32_1 = arith.constant 0 : i32
    return %c0_i32, %c0_i32_0 : i32, i32
  }
  func.func @transform_11(%arg0: i32) -> (i32, i32) {
    %c0_i32 = arith.constant 0 : i32
    %c0_i32_0 = arith.constant 0 : i32
    %c0_i32_1 = arith.constant 0 : i32
    return %c0_i32, %c0_i32_0 : i32, i32
  }
  func.func @transform_12(%arg0: i32) -> (i32, i32) {
    %c0_i32 = arith.constant 0 : i32
    %c0_i32_0 = arith.constant 0 : i32
    %c0_i32_1 = arith.constant 0 : i32
    return %c0_i32, %c0_i32_0 : i32, i32
  }
  func.func @transform_13(%arg0: i32) -> (i32, i32) {
    %c0_i32 = arith.constant 0 : i32
    %c0_i32_0 = arith.constant 0 : i32
    %c0_i32_1 = arith.constant 0 : i32
    return %c0_i32, %c0_i32_0 : i32, i32
  }
  func.func @transform_14(%arg0: i32) -> (i32, i32) {
    %c0_i32 = arith.constant 0 : i32
    %c0_i32_0 = arith.constant 0 : i32
    %c0_i32_1 = arith.constant 0 : i32
    return %c0_i32, %c0_i32_0 : i32, i32
  }
  func.func @transform_15(%arg0: i32) -> (i32, i32) {
    %c0_i32 = arith.constant 0 : i32
    %c0_i32_0 = arith.constant 0 : i32
    %c0_i32_1 = arith.constant 0 : i32
    return %c0_i32, %c0_i32_0 : i32, i32
  }
  func.func @transform_16(%arg0: i32) -> (i32, i32) {
    %c0_i32 = arith.constant 0 : i32
    %c0_i32_0 = arith.constant 0 : i32
    %c0_i32_1 = arith.constant 0 : i32
    return %c0_i32, %c0_i32_0 : i32, i32
  }
  func.func @transform_17(%arg0: i32) -> (i32, i32) {
    %c0_i32 = arith.constant 0 : i32
    %c0_i32_0 = arith.constant 0 : i32
    %c0_i32_1 = arith.constant 0 : i32
    return %c0_i32, %c0_i32_0 : i32, i32
  }
  func.func @transform_18(%arg0: i32) -> (i32, i32) {
    %c0_i32 = arith.constant 0 : i32
    %c0_i32_0 = arith.constant 0 : i32
    %c0_i32_1 = arith.constant 0 : i32
    return %c0_i32, %c0_i32_0 : i32, i32
  }
  func.func @transform_19(%arg0: i32) -> (i32, i32, i32) {
    %c0_i32 = arith.constant 0 : i32
    %c0_i32_0 = arith.constant 0 : i32
    %c0_i32_1 = arith.constant 0 : i32
    return %arg0, %c0_i32, %c0_i32_0 : i32, i32, i32
  }
}

</mosaic_0001>

<llo_original>
// kernel: decoder_cnn_forward.1
$region0: #{decoder_cnn_forward.1}
  #allocation0 [shape = 'u32[]', space=smem, size = 0x4, offset = 0x4, fixed_abs, tag = 'smem constant byte address 0x4 - core index']
  #allocation1 [shape = 'u32[144,128]{1,0:T(1,128)}', space=vmem, size = 0x12000, scoped, tag = 'internal scratch']
  %s0 = inlined_call_operand.vmem [shape: f32[2,1,128], index: 0, kind: input, shape index: {}]
  %s1 = inlined_call_operand.vmem [shape: bf16[128,2048], index: 1, kind: input, shape index: {}]
  %s2 = inlined_call_operand.vmem [shape: f32[1,512], index: 2, kind: input, shape index: {}]
  %s3 = inlined_call_operand.vmem [shape: bf16[4,4], index: 3, kind: input, shape index: {}]
  %s4 = inlined_call_operand.vmem [shape: bf16[512,1280], index: 4, kind: input, shape index: {}]
  %s5 = inlined_call_operand.vmem [shape: f32[1,256], index: 5, kind: input, shape index: {}]
  %s6 = inlined_call_operand.vmem [shape: bf16[11,20], index: 6, kind: input, shape index: {}]
  %s7 = inlined_call_operand.vmem [shape: bf16[256,512], index: 7, kind: input, shape index: {}]
  %s8 = inlined_call_operand.vmem [shape: f32[1,128], index: 8, kind: input, shape index: {}]
  %s9 = inlined_call_operand.vmem [shape: bf16[24,44], index: 9, kind: input, shape index: {}]
  %s10 = inlined_call_operand.vmem [shape: bf16[128,384], index: 10, kind: input, shape index: {}]
  %s11 = inlined_call_operand.vmem [shape: f32[1,128], index: 11, kind: input, shape index: {}]
  %s12 = inlined_call_operand.vmem [shape: bf16[49,72], index: 12, kind: input, shape index: {}]
  %s13 = inlined_call_operand.vmem [shape: bf16[128,384], index: 13, kind: input, shape index: {}]
  %s14 = inlined_call_operand.vmem [shape: f32[1,128], index: 14, kind: input, shape index: {}]
  %s15 = inlined_call_operand.vmem [shape: bf16[99,147], index: 15, kind: input, shape index: {}]
  %s16 = inlined_call_operand.vmem [shape: bf16[128,512], index: 16, kind: input, shape index: {}]
  %s17 = inlined_call_operand.vmem [shape: f32[1,128], index: 17, kind: input, shape index: {}]
  %s18 = inlined_call_operand.vmem [shape: bf16[200,396], index: 18, kind: input, shape index: {}]
  %s19 = inlined_call_operand.vmem [shape: f32[2,200,128], index: 19, kind: output, shape index: {}]
  %s20 = sld [smem:[#allocation0]]
  $region109: #{decoder_cnn_forward.1} parent=0
    _
  %s22 = ssub.s32 1, %s20
  %s23 = scalar_select 0, %s22, %s20
  loop: start=0, step=1, limit=4
  $region2: #{decoder_cnn_forward.1} parent=0 // loop_pre_header
    _
  $region3: #{decoder_cnn_forward.1} parent=0 // loop_header
    %s25 = sphi 0, %s29
    %p26 = scmp.ge.s32.totalorder %s25, 4
    %s35 = sphi 0, %s37
    %s38 = sphi 0, %s35
    %s39 = sphi 0, %s38
    %s55 = sphi 0, %s39
    %s59 = sphi 0, %s59
    %s61 = sphi 0, %s59
    %s62 = sphi 0, %s61
    %s76 = sphi 0, %s62
    %s80 = sphi 0, %s80
    %s82 = sphi 0, %s80
    %s83 = sphi 0, %s82
    %s97 = sphi 0, %s83
    %s101 = sphi 0, %s101
    %s103 = sphi 0, %s101
    %s104 = sphi 0, %s103
    %s118 = sphi 0, %s104
    %s122 = sphi 0, %s122
    %s124 = sphi 0, %s122
    %s125 = sphi 0, %s124
    %s139 = sphi 0, %s125
    %s143 = sphi 0, %s143
    %s145 = sphi 0, %s143
    %s146 = sphi 0, %s145
    %s160 = sphi 0, %s146
    %s164 = sphi 0, %s164
    %s166 = sphi 0, %s164
    %s167 = sphi 0, %s166
    %s181 = sphi 0, %s167
    %s185 = sphi 0, %s185
    %s187 = sphi 0, %s185
    %s188 = sphi 0, %s187
    %s202 = sphi 0, %s188
    %s206 = sphi 0, %s206
    %s208 = sphi 0, %s206
    %s209 = sphi 0, %s208
    %s223 = sphi 0, %s209
    %s227 = sphi 0, %s227
    %s229 = sphi 0, %s227
    %s230 = sphi 0, %s229
    %s244 = sphi 0, %s230
    %s248 = sphi 0, %s248
    %s250 = sphi 0, %s248
    %s251 = sphi 0, %s250
    %s265 = sphi 0, %s251
    %s269 = sphi 0, %s269
    %s271 = sphi 0, %s269
    %s272 = sphi 0, %s271
    %s286 = sphi 0, %s272
    %s290 = sphi 0, %s290
    %s292 = sphi 0, %s290
    %s293 = sphi 0, %s292
    %s307 = sphi 0, %s293
    %s311 = sphi 0, %s311
    %s313 = sphi 0, %s311
    %s314 = sphi 0, %s313
    %s328 = sphi 0, %s314
    %s332 = sphi 0, %s332
    %s334 = sphi 0, %s332
    %s335 = sphi 0, %s334
    %s349 = sphi 0, %s335
    %s353 = sphi 0, %s353
    %s355 = sphi 0, %s353
    %s356 = sphi 0, %s355
    %s370 = sphi 0, %s356
    %s374 = sphi 0, %s374
    %s376 = sphi 0, %s374
    %s377 = sphi 0, %s376
    %s391 = sphi 0, %s377
    %s395 = sphi 0, %s395
    %s397 = sphi 0, %s395
    %s398 = sphi 0, %s397
    %s412 = sphi 0, %s398
    %s416 = sphi 0, %s416
    %s418 = sphi 0, %s416
    %s419 = sphi 0, %s418
    %s433 = sphi 0, %s419
    %s439 = sphi 0, %s441
    %s442 = sphi 0, %s439
    %s443 = sphi 0, %s442
    %s459 = sphi 0, %s443
  $region4: #{decoder_cnn_forward.1} parent=0 // loop_header_branch
    %28 = sbr.rel (%p26) target = $region8
  $region5: #{decoder_cnn_forward.1} parent=0 // loop_body
    %s30 = ssub.s32 %s25, 1
    %s31 = ssub.s32 %s25, 2
    %s32 = sadd.s32 %s25, 1
    %s33 = ssub.s32 %s25, %s32
    %p34 = scmp.eq.s32.totalorder %s33, 0
    %s36 = sadd.s32 %s35, 1
    %s37 = scalar_select %p34, %s35, %s36
    %p40 = pneg %p34
    %p41 = scmp.eq.s32.totalorder %s25, 1
    %p42 = por %p40, %p41
    %p43 = scmp.ne.s32.totalorder %s35, %s38
    %p44 = scmp.eq.s32.totalorder %s25, 0
    %p45 = por %p43, %p44
    %p46 = scmp.ne.s32.totalorder %s35, %s38
    %p47 = scmp.eq.s32.totalorder %s30, 1
    %p48 = por %p46, %p47
    %p49 = scmp.ne.s32.totalorder %s38, %s39
    %p50 = scmp.eq.s32.totalorder %s30, 0
    %p51 = por %p49, %p50
    %p52 = scmp.ne.s32.totalorder %s38, %s39
    %p53 = scmp.eq.s32.totalorder %s31, 1
    %p54 = por %p52, %p53
    %p56 = scmp.ne.s32.totalorder %s39, %s55
    %p57 = scmp.eq.s32.totalorder %s31, 0
    %p58 = por %p56, %p57
    %s60 = sadd.s32 %s59, 1
    %p63 = scmp.eq.s32.totalorder %s25, 1
    %p64 = scmp.ne.s32.totalorder %s59, %s61
    %p65 = scmp.eq.s32.totalorder %s25, 0
    %p66 = por %p64, %p65
    %p67 = scmp.ne.s32.totalorder %s59, %s61
    %p68 = scmp.eq.s32.totalorder %s30, 1
    %p69 = por %p67, %p68
    %p70 = scmp.ne.s32.totalorder %s61, %s62
    %p71 = scmp.eq.s32.totalorder %s30, 0
    %p72 = por %p70, %p71
    %p73 = scmp.ne.s32.totalorder %s61, %s62
    %p74 = scmp.eq.s32.totalorder %s31, 1
    %p75 = por %p73, %p74
    %p77 = scmp.ne.s32.totalorder %s62, %s76
    %p78 = scmp.eq.s32.totalorder %s31, 0
    %p79 = por %p77, %p78
    %s81 = sadd.s32 %s80, 1
    %p84 = scmp.eq.s32.totalorder %s25, 1
    %p85 = scmp.ne.s32.totalorder %s80, %s82
    %p86 = scmp.eq.s32.totalorder %s25, 0
    %p87 = por %p85, %p86
    %p88 = scmp.ne.s32.totalorder %s80, %s82
    %p89 = scmp.eq.s32.totalorder %s30, 1
    %p90 = por %p88, %p89
    %p91 = scmp.ne.s32.totalorder %s82, %s83
    %p92 = scmp.eq.s32.totalorder %s30, 0
    %p93 = por %p91, %p92
    %p94 = scmp.ne.s32.totalorder %s82, %s83
    %p95 = scmp.eq.s32.totalorder %s31, 1
    %p96 = por %p94, %p95
    %p98 = scmp.ne.s32.totalorder %s83, %s97
    %p99 = scmp.eq.s32.totalorder %s31, 0
    %p100 = por %p98, %p99
    %s102 = sadd.s32 %s101, 1
    %p105 = scmp.eq.s32.totalorder %s25, 1
    %p106 = scmp.ne.s32.totalorder %s101, %s103
    %p107 = scmp.eq.s32.totalorder %s25, 0
    %p108 = por %p106, %p107
    %p109 = scmp.ne.s32.totalorder %s101, %s103
    %p110 = scmp.eq.s32.totalorder %s30, 1
    %p111 = por %p109, %p110
    %p112 = scmp.ne.s32.totalorder %s103, %s104
    %p113 = scmp.eq.s32.totalorder %s30, 0
    %p114 = por %p112, %p113
    %p115 = scmp.ne.s32.totalorder %s103, %s104
    %p116 = scmp.eq.s32.totalorder %s31, 1
    %p117 = por %p115, %p116
    %p119 = scmp.ne.s32.totalorder %s104, %s118
    %p120 = scmp.eq.s32.totalorder %s31, 0
    %p121 = por %p119, %p120
    %s123 = sadd.s32 %s122, 1
    %p126 = scmp.eq.s32.totalorder %s25, 1
    %p127 = scmp.ne.s32.totalorder %s122, %s124
    %p128 = scmp.eq.s32.totalorder %s25, 0
    %p129 = por %p127, %p128
    %p130 = scmp.ne.s32.totalorder %s122, %s124
    %p131 = scmp.eq.s32.totalorder %s30, 1
    %p132 = por %p130, %p131
    %p133 = scmp.ne.s32.totalorder %s124, %s125
    %p134 = scmp.eq.s32.totalorder %s30, 0
    %p135 = por %p133, %p134
    %p136 = scmp.ne.s32.totalorder %s124, %s125
    %p137 = scmp.eq.s32.totalorder %s31, 1
    %p138 = por %p136, %p137
    %p140 = scmp.ne.s32.totalorder %s125, %s139
    %p141 = scmp.eq.s32.totalorder %s31, 0
    %p142 = por %p140, %p141
    %s144 = sadd.s32 %s143, 1
    %p147 = scmp.eq.s32.totalorder %s25, 1
    %p148 = scmp.ne.s32.totalorder %s143, %s145
    %p149 = scmp.eq.s32.totalorder %s25, 0
    %p150 = por %p148, %p149
    %p151 = scmp.ne.s32.totalorder %s143, %s145
    %p152 = scmp.eq.s32.totalorder %s30, 1
    %p153 = por %p151, %p152
    %p154 = scmp.ne.s32.totalorder %s145, %s146
    %p155 = scmp.eq.s32.totalorder %s30, 0
    %p156 = por %p154, %p155
    %p157 = scmp.ne.s32.totalorder %s145, %s146
    %p158 = scmp.eq.s32.totalorder %s31, 1
    %p159 = por %p157, %p158
    %p161 = scmp.ne.s32.totalorder %s146, %s160
    %p162 = scmp.eq.s32.totalorder %s31, 0
    %p163 = por %p161, %p162
    %s165 = sadd.s32 %s164, 1
    %p168 = scmp.eq.s32.totalorder %s25, 1
    %p169 = scmp.ne.s32.totalorder %s164, %s166
    %p170 = scmp.eq.s32.totalorder %s25, 0
    %p171 = por %p169, %p170
    %p172 = scmp.ne.s32.totalorder %s164, %s166
    %p173 = scmp.eq.s32.totalorder %s30, 1
    %p174 = por %p172, %p173
    %p175 = scmp.ne.s32.totalorder %s166, %s167
    %p176 = scmp.eq.s32.totalorder %s30, 0
    %p177 = por %p175, %p176
    %p178 = scmp.ne.s32.totalorder %s166, %s167
    %p179 = scmp.eq.s32.totalorder %s31, 1
    %p180 = por %p178, %p179
    %p182 = scmp.ne.s32.totalorder %s167, %s181
    %p183 = scmp.eq.s32.totalorder %s31, 0
    %p184 = por %p182, %p183
    %s186 = sadd.s32 %s185, 1
    %p189 = scmp.eq.s32.totalorder %s25, 1
    %p190 = scmp.ne.s32.totalorder %s185, %s187
    %p191 = scmp.eq.s32.totalorder %s25, 0
    %p192 = por %p190, %p191
    %p193 = scmp.ne.s32.totalorder %s185, %s187
    %p194 = scmp.eq.s32.totalorder %s30, 1
    %p195 = por %p193, %p194
    %p196 = scmp.ne.s32.totalorder %s187, %s188
    %p197 = scmp.eq.s32.totalorder %s30, 0
    %p198 = por %p196, %p197
    %p199 = scmp.ne.s32.totalorder %s187, %s188
    %p200 = scmp.eq.s32.totalorder %s31, 1
    %p201 = por %p199, %p200
    %p203 = scmp.ne.s32.totalorder %s188, %s202
    %p204 = scmp.eq.s32.totalorder %s31, 0
    %p205 = por %p203, %p204
    %s207 = sadd.s32 %s206, 1
    %p210 = scmp.eq.s32.totalorder %s25, 1
    %p211 = scmp.ne.s32.totalorder %s206, %s208
    %p212 = scmp.eq.s32.totalorder %s25, 0
    %p213 = por %p211, %p212
    %p214 = scmp.ne.s32.totalorder %s206, %s208
    %p215 = scmp.eq.s32.totalorder %s30, 1
    %p216 = por %p214, %p215
    %p217 = scmp.ne.s32.totalorder %s208, %s209
    %p218 = scmp.eq.s32.totalorder %s30, 0
    %p219 = por %p217, %p218
    %p220 = scmp.ne.s32.totalorder %s208, %s209
    %p221 = scmp.eq.s32.totalorder %s31, 1
    %p222 = por %p220, %p221
    %p224 = scmp.ne.s32.totalorder %s209, %s223
    %p225 = scmp.eq.s32.totalorder %s31, 0
    %p226 = por %p224, %p225
    %s228 = sadd.s32 %s227, 1
    %p231 = scmp.eq.s32.totalorder %s25, 1
    %p232 = scmp.ne.s32.totalorder %s227, %s229
    %p233 = scmp.eq.s32.totalorder %s25, 0
    %p234 = por %p232, %p233
    %p235 = scmp.ne.s32.totalorder %s227, %s229
    %p236 = scmp.eq.s32.totalorder %s30, 1
    %p237 = por %p235, %p236
    %p238 = scmp.ne.s32.totalorder %s229, %s230
    %p239 = scmp.eq.s32.totalorder %s30, 0
    %p240 = por %p238, %p239
    %p241 = scmp.ne.s32.totalorder %s229, %s230
    %p242 = scmp.eq.s32.totalorder %s31, 1
    %p243 = por %p241, %p242
    %p245 = scmp.ne.s32.totalorder %s230, %s244
    %p246 = scmp.eq.s32.totalorder %s31, 0
    %p247 = por %p245, %p246
    %s249 = sadd.s32 %s248, 1
    %p252 = scmp.eq.s32.totalorder %s25, 1
    %p253 = scmp.ne.s32.totalorder %s248, %s250
    %p254 = scmp.eq.s32.totalorder %s25, 0
    %p255 = por %p253, %p254
    %p256 = scmp.ne.s32.totalorder %s248, %s250
    %p257 = scmp.eq.s32.totalorder %s30, 1
    %p258 = por %p256, %p257
    %p259 = scmp.ne.s32.totalorder %s250, %s251
    %p260 = scmp.eq.s32.totalorder %s30, 0
    %p261 = por %p259, %p260
    %p262 = scmp.ne.s32.totalorder %s250, %s251
    %p263 = scmp.eq.s32.totalorder %s31, 1
    %p264 = por %p262, %p263
    %p266 = scmp.ne.s32.totalorder %s251, %s265
    %p267 = scmp.eq.s32.totalorder %s31, 0
    %p268 = por %p266, %p267
    %s270 = sadd.s32 %s269, 1
    %p273 = scmp.eq.s32.totalorder %s25, 1
    %p274 = scmp.ne.s32.totalorder %s269, %s271
    %p275 = scmp.eq.s32.totalorder %s25, 0
    %p276 = por %p274, %p275
    %p277 = scmp.ne.s32.totalorder %s269, %s271
    %p278 = scmp.eq.s32.totalorder %s30, 1
    %p279 = por %p277, %p278
    %p280 = scmp.ne.s32.totalorder %s271, %s272
    %p281 = scmp.eq.s32.totalorder %s30, 0
    %p282 = por %p280, %p281
    %p283 = scmp.ne.s32.totalorder %s271, %s272
    %p284 = scmp.eq.s32.totalorder %s31, 1
    %p285 = por %p283, %p284
    %p287 = scmp.ne.s32.totalorder %s272, %s286
    %p288 = scmp.eq.s32.totalorder %s31, 0
    %p289 = por %p287, %p288
    %s291 = sadd.s32 %s290, 1
    %p294 = scmp.eq.s32.totalorder %s25, 1
    %p295 = scmp.ne.s32.totalorder %s290, %s292
    %p296 = scmp.eq.s32.totalorder %s25, 0
    %p297 = por %p295, %p296
    %p298 = scmp.ne.s32.totalorder %s290, %s292
    %p299 = scmp.eq.s32.totalorder %s30, 1
    %p300 = por %p298, %p299
    %p301 = scmp.ne.s32.totalorder %s292, %s293
    %p302 = scmp.eq.s32.totalorder %s30, 0
    %p303 = por %p301, %p302
    %p304 = scmp.ne.s32.totalorder %s292, %s293
    %p305 = scmp.eq.s32.totalorder %s31, 1
    %p306 = por %p304, %p305
    %p308 = scmp.ne.s32.totalorder %s293, %s307
    %p309 = scmp.eq.s32.totalorder %s31, 0
    %p310 = por %p308, %p309
    %s312 = sadd.s32 %s311, 1
    %p315 = scmp.eq.s32.totalorder %s25, 1
    %p316 = scmp.ne.s32.totalorder %s311, %s313
    %p317 = scmp.eq.s32.totalorder %s25, 0
    %p318 = por %p316, %p317
    %p319 = scmp.ne.s32.totalorder %s311, %s313
    %p320 = scmp.eq.s32.totalorder %s30, 1
    %p321 = por %p319, %p320
    %p322 = scmp.ne.s32.totalorder %s313, %s314
    %p323 = scmp.eq.s32.totalorder %s30, 0
    %p324 = por %p322, %p323
    %p325 = scmp.ne.s32.totalorder %s313, %s314
    %p326 = scmp.eq.s32.totalorder %s31, 1
    %p327 = por %p325, %p326
    %p329 = scmp.ne.s32.totalorder %s314, %s328
    %p330 = scmp.eq.s32.totalorder %s31, 0
    %p331 = por %p329, %p330
    %s333 = sadd.s32 %s332, 1
    %p336 = scmp.eq.s32.totalorder %s25, 1
    %p337 = scmp.ne.s32.totalorder %s332, %s334
    %p338 = scmp.eq.s32.totalorder %s25, 0
    %p339 = por %p337, %p338
    %p340 = scmp.ne.s32.totalorder %s332, %s334
    %p341 = scmp.eq.s32.totalorder %s30, 1
    %p342 = por %p340, %p341
    %p343 = scmp.ne.s32.totalorder %s334, %s335
    %p344 = scmp.eq.s32.totalorder %s30, 0
    %p345 = por %p343, %p344
    %p346 = scmp.ne.s32.totalorder %s334, %s335
    %p347 = scmp.eq.s32.totalorder %s31, 1
    %p348 = por %p346, %p347
    %p350 = scmp.ne.s32.totalorder %s335, %s349
    %p351 = scmp.eq.s32.totalorder %s31, 0
    %p352 = por %p350, %p351
    %s354 = sadd.s32 %s353, 1
    %p357 = scmp.eq.s32.totalorder %s25, 1
    %p358 = scmp.ne.s32.totalorder %s353, %s355
    %p359 = scmp.eq.s32.totalorder %s25, 0
    %p360 = por %p358, %p359
    %p361 = scmp.ne.s32.totalorder %s353, %s355
    %p362 = scmp.eq.s32.totalorder %s30, 1
    %p363 = por %p361, %p362
    %p364 = scmp.ne.s32.totalorder %s355, %s356
    %p365 = scmp.eq.s32.totalorder %s30, 0
    %p366 = por %p364, %p365
    %p367 = scmp.ne.s32.totalorder %s355, %s356
    %p368 = scmp.eq.s32.totalorder %s31, 1
    %p369 = por %p367, %p368
    %p371 = scmp.ne.s32.totalorder %s356, %s370
    %p372 = scmp.eq.s32.totalorder %s31, 0
    %p373 = por %p371, %p372
    %s375 = sadd.s32 %s374, 1
    %p378 = scmp.eq.s32.totalorder %s25, 1
    %p379 = scmp.ne.s32.totalorder %s374, %s376
    %p380 = scmp.eq.s32.totalorder %s25, 0
    %p381 = por %p379, %p380
    %p382 = scmp.ne.s32.totalorder %s374, %s376
    %p383 = scmp.eq.s32.totalorder %s30, 1
    %p384 = por %p382, %p383
    %p385 = scmp.ne.s32.totalorder %s376, %s377
    %p386 = scmp.eq.s32.totalorder %s30, 0
    %p387 = por %p385, %p386
    %p388 = scmp.ne.s32.totalorder %s376, %s377
    %p389 = scmp.eq.s32.totalorder %s31, 1
    %p390 = por %p388, %p389
    %p392 = scmp.ne.s32.totalorder %s377, %s391
    %p393 = scmp.eq.s32.totalorder %s31, 0
    %p394 = por %p392, %p393
    %s396 = sadd.s32 %s395, 1
    %p399 = scmp.eq.s32.totalorder %s25, 1
    %p400 = scmp.ne.s32.totalorder %s395, %s397
    %p401 = scmp.eq.s32.totalorder %s25, 0
    %p402 = por %p400, %p401
    %p403 = scmp.ne.s32.totalorder %s395, %s397
    %p404 = scmp.eq.s32.totalorder %s30, 1
    %p405 = por %p403, %p404
    %p406 = scmp.ne.s32.totalorder %s397, %s398
    %p407 = scmp.eq.s32.totalorder %s30, 0
    %p408 = por %p406, %p407
    %p409 = scmp.ne.s32.totalorder %s397, %s398
    %p410 = scmp.eq.s32.totalorder %s31, 1
    %p411 = por %p409, %p410
    %p413 = scmp.ne.s32.totalorder %s398, %s412
    %p414 = scmp.eq.s32.totalorder %s31, 0
    %p415 = por %p413, %p414
    %s417 = sadd.s32 %s416, 1
    %p420 = scmp.eq.s32.totalorder %s25, 1
    %p421 = scmp.ne.s32.totalorder %s416, %s418
    %p422 = scmp.eq.s32.totalorder %s25, 0
    %p423 = por %p421, %p422
    %p424 = scmp.ne.s32.totalorder %s416, %s418
    %p425 = scmp.eq.s32.totalorder %s30, 1
    %p426 = por %p424, %p425
    %p427 = scmp.ne.s32.totalorder %s418, %s419
    %p428 = scmp.eq.s32.totalorder %s30, 0
    %p429 = por %p427, %p428
    %p430 = scmp.ne.s32.totalorder %s418, %s419
    %p431 = scmp.eq.s32.totalorder %s31, 1
    %p432 = por %p430, %p431
    %p434 = scmp.ne.s32.totalorder %s419, %s433
    %p435 = scmp.eq.s32.totalorder %s31, 0
    %p436 = por %p434, %p435
    %s437 = ssub.s32 %s25, %s32
    %p438 = scmp.eq.s32.totalorder %s437, 0
    %s440 = sadd.s32 %s439, 1
    %s441 = scalar_select %p438, %s439, %s440
    %p444 = pneg %p438
    %p445 = scmp.eq.s32.totalorder %s25, 1
    %p446 = por %p444, %p445
    %p447 = scmp.ne.s32.totalorder %s439, %s442
    %p448 = scmp.eq.s32.totalorder %s25, 0
    %p449 = por %p447, %p448
    %p450 = scmp.ne.s32.totalorder %s439, %s442
    %p451 = scmp.eq.s32.totalorder %s30, 1
    %p452 = por %p450, %p451
    %p453 = scmp.ne.s32.totalorder %s442, %s443
    %p454 = scmp.eq.s32.totalorder %s30, 0
    %p455 = por %p453, %p454
    %p456 = scmp.ne.s32.totalorder %s442, %s443
    %p457 = scmp.eq.s32.totalorder %s31, 1
    %p458 = por %p456, %p457
    %p460 = scmp.ne.s32.totalorder %s443, %s459
    %p461 = scmp.eq.s32.totalorder %s31, 0
    %p462 = por %p460, %p461
    %p463 = scmp.le.s32.totalorder 1, %s25
    %p464 = scmp.lt.s32.totalorder %s25, 3
    %p465 = pnand %p463, %p464
    %p466 = pneg %p465
    // Predicated region
    $region9: #{decoder_cnn_forward.1} parent=5 // pred_check
      _
    $region10: #{decoder_cnn_forward.1} parent=5 // pred_check_branch
      %468 = sbr.rel (%p465) target = $region12
    $region11: #{decoder_cnn_forward.1} parent=5 // pred_region
      %s469 = ssub.s32 %s25, 1
      // Predicated region
      $region13: #{decoder_cnn_forward.1} parent=11 // pred_check
        %p470 = pneg %p72
      $region14: #{decoder_cnn_forward.1} parent=11 // pred_check_branch
        %472 = sbr.rel (%p470) target = $region16
      $region15: #{decoder_cnn_forward.1} parent=11 // pred_region
        _
      $region16: #{decoder_cnn_forward.1} parent=11 // pred_fallthru
        _
      // Predicated region
      $region17: #{decoder_cnn_forward.1} parent=11 // pred_check
        %p473 = pneg %p93
      $region18: #{decoder_cnn_forward.1} parent=11 // pred_check_branch
        %475 = sbr.rel (%p473) target = $region20
      $region19: #{decoder_cnn_forward.1} parent=11 // pred_region
        _
      $region20: #{decoder_cnn_forward.1} parent=11 // pred_fallthru
        _
      // Predicated region
      $region21: #{decoder_cnn_forward.1} parent=11 // pred_check
        %p476 = pneg %p114
      $region22: #{decoder_cnn_forward.1} parent=11 // pred_check_branch
        %478 = sbr.rel (%p476) target = $region24
      $region23: #{decoder_cnn_forward.1} parent=11 // pred_region
        _
      $region24: #{decoder_cnn_forward.1} parent=11 // pred_fallthru
        _
      // Predicated region
      $region25: #{decoder_cnn_forward.1} parent=11 // pred_check
        %p479 = pneg %p135
      $region26: #{decoder_cnn_forward.1} parent=11 // pred_check_branch
        %481 = sbr.rel (%p479) target = $region28
      $region27: #{decoder_cnn_forward.1} parent=11 // pred_region
        _
      $region28: #{decoder_cnn_forward.1} parent=11 // pred_fallthru
        _
      // Predicated region
      $region29: #{decoder_cnn_forward.1} parent=11 // pred_check
        %p482 = pneg %p156
      $region30: #{decoder_cnn_forward.1} parent=11 // pred_check_branch
        %484 = sbr.rel (%p482) target = $region32
      $region31: #{decoder_cnn_forward.1} parent=11 // pred_region
        _
      $region32: #{decoder_cnn_forward.1} parent=11 // pred_fallthru
        _
      // Predicated region
      $region33: #{decoder_cnn_forward.1} parent=11 // pred_check
        %p485 = pneg %p177
      $region34: #{decoder_cnn_forward.1} parent=11 // pred_check_branch
        %487 = sbr.rel (%p485) target = $region36
      $region35: #{decoder_cnn_forward.1} parent=11 // pred_region
        _
      $region36: #{decoder_cnn_forward.1} parent=11 // pred_fallthru
        _
      // Predicated region
      $region37: #{decoder_cnn_forward.1} parent=11 // pred_check
        %p488 = pneg %p198
      $region38: #{decoder_cnn_forward.1} parent=11 // pred_check_branch
        %490 = sbr.rel (%p488) target = $region40
      $region39: #{decoder_cnn_forward.1} parent=11 // pred_region
        _
      $region40: #{decoder_cnn_forward.1} parent=11 // pred_fallthru
        _
      // Predicated region
      $region41: #{decoder_cnn_forward.1} parent=11 // pred_check
        %p491 = pneg %p219
      $region42: #{decoder_cnn_forward.1} parent=11 // pred_check_branch
        %493 = sbr.rel (%p491) target = $region44
      $region43: #{decoder_cnn_forward.1} parent=11 // pred_region
        _
      $region44: #{decoder_cnn_forward.1} parent=11 // pred_fallthru
        _
      // Predicated region
      $region45: #{decoder_cnn_forward.1} parent=11 // pred_check
        %p494 = pneg %p240
      $region46: #{decoder_cnn_forward.1} parent=11 // pred_check_branch
        %496 = sbr.rel (%p494) target = $region48
      $region47: #{decoder_cnn_forward.1} parent=11 // pred_region
        _
      $region48: #{decoder_cnn_forward.1} parent=11 // pred_fallthru
        _
      // Predicated region
      $region49: #{decoder_cnn_forward.1} parent=11 // pred_check
        %p497 = pneg %p261
      $region50: #{decoder_cnn_forward.1} parent=11 // pred_check_branch
        %499 = sbr.rel (%p497) target = $region52
      $region51: #{decoder_cnn_forward.1} parent=11 // pred_region
        _
      $region52: #{decoder_cnn_forward.1} parent=11 // pred_fallthru
        _
      // Predicated region
      $region53: #{decoder_cnn_forward.1} parent=11 // pred_check
        %p500 = pneg %p282
      $region54: #{decoder_cnn_forward.1} parent=11 // pred_check_branch
        %502 = sbr.rel (%p500) target = $region56
      $region55: #{decoder_cnn_forward.1} parent=11 // pred_region
        _
      $region56: #{decoder_cnn_forward.1} parent=11 // pred_fallthru
        _
      // Predicated region
      $region57: #{decoder_cnn_forward.1} parent=11 // pred_check
        %p503 = pneg %p303
      $region58: #{decoder_cnn_forward.1} parent=11 // pred_check_branch
        %505 = sbr.rel (%p503) target = $region60
      $region59: #{decoder_cnn_forward.1} parent=11 // pred_region
        _
      $region60: #{decoder_cnn_forward.1} parent=11 // pred_fallthru
        _
      // Predicated region
      $region61: #{decoder_cnn_forward.1} parent=11 // pred_check
        %p506 = pneg %p324
      $region62: #{decoder_cnn_forward.1} parent=11 // pred_check_branch
        %508 = sbr.rel (%p506) target = $region64
      $region63: #{decoder_cnn_forward.1} parent=11 // pred_region
        _
      $region64: #{decoder_cnn_forward.1} parent=11 // pred_fallthru
        _
      // Predicated region
      $region65: #{decoder_cnn_forward.1} parent=11 // pred_check
        %p509 = pneg %p345
      $region66: #{decoder_cnn_forward.1} parent=11 // pred_check_branch
        %511 = sbr.rel (%p509) target = $region68
      $region67: #{decoder_cnn_forward.1} parent=11 // pred_region
        _
      $region68: #{decoder_cnn_forward.1} parent=11 // pred_fallthru
        _
      // Predicated region
      $region69: #{decoder_cnn_forward.1} parent=11 // pred_check
        %p512 = pneg %p366
      $region70: #{decoder_cnn_forward.1} parent=11 // pred_check_branch
        %514 = sbr.rel (%p512) target = $region72
      $region71: #{decoder_cnn_forward.1} parent=11 // pred_region
        _
      $region72: #{decoder_cnn_forward.1} parent=11 // pred_fallthru
        _
      // Predicated region
      $region73: #{decoder_cnn_forward.1} parent=11 // pred_check
        %p515 = pneg %p387
      $region74: #{decoder_cnn_forward.1} parent=11 // pred_check_branch
        %517 = sbr.rel (%p515) target = $region76
      $region75: #{decoder_cnn_forward.1} parent=11 // pred_region
        _
      $region76: #{decoder_cnn_forward.1} parent=11 // pred_fallthru
        _
      // Predicated region
      $region77: #{decoder_cnn_forward.1} parent=11 // pred_check
        %p518 = pneg %p408
      $region78: #{decoder_cnn_forward.1} parent=11 // pred_check_branch
        %520 = sbr.rel (%p518) target = $region80
      $region79: #{decoder_cnn_forward.1} parent=11 // pred_region
        _
      $region80: #{decoder_cnn_forward.1} parent=11 // pred_fallthru
        _
      // Predicated region
      $region81: #{decoder_cnn_forward.1} parent=11 // pred_check
        %p521 = pneg %p429
      $region82: #{decoder_cnn_forward.1} parent=11 // pred_check_branch
        %523 = sbr.rel (%p521) target = $region84
      $region83: #{decoder_cnn_forward.1} parent=11 // pred_region
        _
      $region84: #{decoder_cnn_forward.1} parent=11 // pred_fallthru
        _
    $region12: #{decoder_cnn_forward.1} parent=5 // pred_fallthru
      _
    %p524 = scmp.lt.s32.totalorder %s25, 2
    // Predicated region
    $region85: #{decoder_cnn_forward.1} parent=5 // pred_check
      %p525 = pneg %p524
    $region86: #{decoder_cnn_forward.1} parent=5 // pred_check_branch
      %527 = sbr.rel (%p525) target = $region88
    $region87: #{decoder_cnn_forward.1} parent=5 // pred_region
      // Predicated region
      $region89: #{decoder_cnn_forward.1} parent=87 // pred_check
        %p528 = pneg %p45
      $region90: #{decoder_cnn_forward.1} parent=87 // pred_check_branch
        %530 = sbr.rel (%p528) target = $region92
      $region91: #{decoder_cnn_forward.1} parent=87 // pred_region
        %p531 = scmp.lt.s32.totalorder %s25, 1
        %s532 = scalar_select %p531, %s25, 1
        %s533 = scalar_lea.vmem %s0, %s532
      $region92: #{decoder_cnn_forward.1} parent=87 // pred_fallthru
        _
    $region88: #{decoder_cnn_forward.1} parent=5 // pred_fallthru
      _
    %p534 = scmp.le.s32.totalorder 1, %s25
    %p535 = scmp.lt.s32.totalorder %s25, 3
    %p536 = pnand %p534, %p535
    %p537 = pneg %p536
    // Predicated region
    $region93: #{decoder_cnn_forward.1} parent=5 // pred_check
      _
    $region94: #{decoder_cnn_forward.1} parent=5 // pred_check_branch
      %539 = sbr.rel (%p536) target = $region96
    $region95: #{decoder_cnn_forward.1} parent=5 // pred_region
      %s540 = ssub.s32 %s25, 1
      %p541 = scmp.lt.s32.totalorder %s30, 1
      %s542 = scalar_select %p541, %s30, 1
      %s543 = scalar_lea.vmem %s0, %s542
      %p544 = pneg %p51
      %p545 = pneg %p48
      %p546 = pneg %p72
      %p547 = pneg %p69
      %p548 = pneg %p93
      %p549 = pneg %p90
      %p550 = pneg %p114
      %p551 = pneg %p111
      %p552 = pneg %p135
      %p553 = pneg %p132
      %p554 = pneg %p156
      %p555 = pneg %p153
      %p556 = pneg %p177
      %p557 = pneg %p174
      %p558 = pneg %p198
      %p559 = pneg %p195
      %p560 = pneg %p219
      %p561 = pneg %p216
      %p562 = pneg %p240
      %p563 = pneg %p237
      %p564 = pneg %p261
      %p565 = pneg %p258
      %p566 = pneg %p282
      %p567 = pneg %p279
      %p568 = pneg %p303
      %p569 = pneg %p300
      %p570 = pneg %p324
      %p571 = pneg %p321
      %p572 = pneg %p345
      %p573 = pneg %p342
      %p574 = pneg %p366
      %p575 = pneg %p363
      %p576 = pneg %p387
      %p577 = pneg %p384
      %p578 = pneg %p408
      %p579 = pneg %p405
      %p580 = pneg %p429
      %p581 = pneg %p426
      %p582 = pneg %p455
      %p583 = pneg %p452
      %p584 = scmp.lt.s32.totalorder %s30, 1
      %s585 = scalar_select %p584, %s30, 1
      %s586 = smul.addr %s585, 25
      %s587 = smul.addr %s586, 8
      %s588 = scalar_lea.vmem %s19, %s587
      %p589 = scmp.lt.s32.totalorder %s30, 1
      %s590 = scalar_select %p589, %s30, 1
      %s591 = scalar_lea.vmem %s0, %s590
      %p592 = scmp.lt.s32.totalorder %s30, 1
      %s593 = scalar_select %p592, %s30, 1
      %s594 = smul.addr %s593, 25
      %s595 = smul.addr %s594, 8
      %s596 = scalar_lea.vmem %s19, %s595
      %v598 = vld [vmem:[%s591] sm:$0x1]
      %v599 = vpack.c.bf16 %v598, %v598
      %v600 = vld [vmem:[%s1] sm:$0xff]
      %v601 = vld [vmem:[%s1 + $0x8] sm:$0xff]
      %v602 = vld [vmem:[%s1 + $0x10] sm:$0xff]
      %v603 = vld [vmem:[%s1 + $0x18] sm:$0xff]
      %v604 = vld [vmem:[%s1 + $0x20] sm:$0xff]
      %v605 = vld [vmem:[%s1 + $0x28] sm:$0xff]
      %v606 = vld [vmem:[%s1 + $0x30] sm:$0xff]
      %v607 = vld [vmem:[%s1 + $0x38] sm:$0xff]
      %v608 = vld [vmem:[%s1 + $0x40] sm:$0xff]
      %v609 = vld [vmem:[%s1 + $0x48] sm:$0xff]
      %v610 = vld [vmem:[%s1 + $0x50] sm:$0xff]
      %v611 = vld [vmem:[%s1 + $0x58] sm:$0xff]
      %v612 = vld [vmem:[%s1 + $0x60] sm:$0xff]
      %v613 = vld [vmem:[%s1 + $0x68] sm:$0xff]
      %v614 = vld [vmem:[%s1 + $0x70] sm:$0xff]
      %v615 = vld [vmem:[%s1 + $0x78] sm:$0xff]
      %v616 = vld [vmem:[%s1 + $0x80] sm:$0xff]
      %v617 = vld [vmem:[%s1 + $0x88] sm:$0xff]
      %v618 = vld [vmem:[%s1 + $0x90] sm:$0xff]
      %v619 = vld [vmem:[%s1 + $0x98] sm:$0xff]
      %v620 = vld [vmem:[%s1 + $0xa0] sm:$0xff]
      %v621 = vld [vmem:[%s1 + $0xa8] sm:$0xff]
      %v622 = vld [vmem:[%s1 + $0xb0] sm:$0xff]
      %v623 = vld [vmem:[%s1 + $0xb8] sm:$0xff]
      %v624 = vld [vmem:[%s1 + $0xc0] sm:$0xff]
      %v625 = vld [vmem:[%s1 + $0xc8] sm:$0xff]
      %v626 = vld [vmem:[%s1 + $0xd0] sm:$0xff]
      %v627 = vld [vmem:[%s1 + $0xd8] sm:$0xff]
      %v628 = vld [vmem:[%s1 + $0xe0] sm:$0xff]
      %v629 = vld [vmem:[%s1 + $0xe8] sm:$0xff]
      %v630 = vld [vmem:[%s1 + $0xf0] sm:$0xff]
      %v631 = vld [vmem:[%s1 + $0xf8] sm:$0xff]
      %v632 = vld [vmem:[%s1 + $0x100] sm:$0xff]
      %v633 = vld [vmem:[%s1 + $0x108] sm:$0xff]
      %v634 = vld [vmem:[%s1 + $0x110] sm:$0xff]
      %v635 = vld [vmem:[%s1 + $0x118] sm:$0xff]
      %v636 = vld [vmem:[%s1 + $0x120] sm:$0xff]
      %v637 = vld [vmem:[%s1 + $0x128] sm:$0xff]
      %v638 = vld [vmem:[%s1 + $0x130] sm:$0xff]
      %v639 = vld [vmem:[%s1 + $0x138] sm:$0xff]
      %v640 = vld [vmem:[%s1 + $0x140] sm:$0xff]
      %v641 = vld [vmem:[%s1 + $0x148] sm:$0xff]
      %v642 = vld [vmem:[%s1 + $0x150] sm:$0xff]
      %v643 = vld [vmem:[%s1 + $0x158] sm:$0xff]
      %v644 = vld [vmem:[%s1 + $0x160] sm:$0xff]
      %v645 = vld [vmem:[%s1 + $0x168] sm:$0xff]
      %v646 = vld [vmem:[%s1 + $0x170] sm:$0xff]
      %v647 = vld [vmem:[%s1 + $0x178] sm:$0xff]
      %v648 = vld [vmem:[%s1 + $0x180] sm:$0xff]
      %v649 = vld [vmem:[%s1 + $0x188] sm:$0xff]
      %v650 = vld [vmem:[%s1 + $0x190] sm:$0xff]
      %v651 = vld [vmem:[%s1 + $0x198] sm:$0xff]
      %v652 = vld [vmem:[%s1 + $0x1a0] sm:$0xff]
      %v653 = vld [vmem:[%s1 + $0x1a8] sm:$0xff]
      %v654 = vld [vmem:[%s1 + $0x1b0] sm:$0xff]
      %v655 = vld [vmem:[%s1 + $0x1b8] sm:$0xff]
      %v656 = vld [vmem:[%s1 + $0x1c0] sm:$0xff]
      %v657 = vld [vmem:[%s1 + $0x1c8] sm:$0xff]
      %v658 = vld [vmem:[%s1 + $0x1d0] sm:$0xff]
      %v659 = vld [vmem:[%s1 + $0x1d8] sm:$0xff]
      %v660 = vld [vmem:[%s1 + $0x1e0] sm:$0xff]
      %v661 = vld [vmem:[%s1 + $0x1e8] sm:$0xff]
      %v662 = vld [vmem:[%s1 + $0x1f0] sm:$0xff]
      %v663 = vld [vmem:[%s1 + $0x1f8] sm:$0xff]
      %v664 = vld [vmem:[%s1 + $0x200] sm:$0xff]
      %v665 = vld [vmem:[%s1 + $0x208] sm:$0xff]
      %v666 = vld [vmem:[%s1 + $0x210] sm:$0xff]
      %v667 = vld [vmem:[%s1 + $0x218] sm:$0xff]
      %v668 = vld [vmem:[%s1 + $0x220] sm:$0xff]
      %v669 = vld [vmem:[%s1 + $0x228] sm:$0xff]
      %v670 = vld [vmem:[%s1 + $0x230] sm:$0xff]
      %v671 = vld [vmem:[%s1 + $0x238] sm:$0xff]
      %v672 = vld [vmem:[%s1 + $0x240] sm:$0xff]
      %v673 = vld [vmem:[%s1 + $0x248] sm:$0xff]
      %v674 = vld [vmem:[%s1 + $0x250] sm:$0xff]
      %v675 = vld [vmem:[%s1 + $0x258] sm:$0xff]
      %v676 = vld [vmem:[%s1 + $0x260] sm:$0xff]
      %v677 = vld [vmem:[%s1 + $0x268] sm:$0xff]
      %v678 = vld [vmem:[%s1 + $0x270] sm:$0xff]
      %v679 = vld [vmem:[%s1 + $0x278] sm:$0xff]
      %v680 = vld [vmem:[%s1 + $0x280] sm:$0xff]
      %v681 = vld [vmem:[%s1 + $0x288] sm:$0xff]
      %v682 = vld [vmem:[%s1 + $0x290] sm:$0xff]
      %v683 = vld [vmem:[%s1 + $0x298] sm:$0xff]
      %v684 = vld [vmem:[%s1 + $0x2a0] sm:$0xff]
      %v685 = vld [vmem:[%s1 + $0x2a8] sm:$0xff]
      %v686 = vld [vmem:[%s1 + $0x2b0] sm:$0xff]
      %v687 = vld [vmem:[%s1 + $0x2b8] sm:$0xff]
      %v688 = vld [vmem:[%s1 + $0x2c0] sm:$0xff]
      %v689 = vld [vmem:[%s1 + $0x2c8] sm:$0xff]
      %v690 = vld [vmem:[%s1 + $0x2d0] sm:$0xff]
      %v691 = vld [vmem:[%s1 + $0x2d8] sm:$0xff]
      %v692 = vld [vmem:[%s1 + $0x2e0] sm:$0xff]
      %v693 = vld [vmem:[%s1 + $0x2e8] sm:$0xff]
      %v694 = vld [vmem:[%s1 + $0x2f0] sm:$0xff]
      %v695 = vld [vmem:[%s1 + $0x2f8] sm:$0xff]
      %v696 = vld [vmem:[%s1 + $0x300] sm:$0xff]
      %v697 = vld [vmem:[%s1 + $0x308] sm:$0xff]
      %v698 = vld [vmem:[%s1 + $0x310] sm:$0xff]
      %v699 = vld [vmem:[%s1 + $0x318] sm:$0xff]
      %v700 = vld [vmem:[%s1 + $0x320] sm:$0xff]
      %v701 = vld [vmem:[%s1 + $0x328] sm:$0xff]
      %v702 = vld [vmem:[%s1 + $0x330] sm:$0xff]
      %v703 = vld [vmem:[%s1 + $0x338] sm:$0xff]
      %v704 = vld [vmem:[%s1 + $0x340] sm:$0xff]
      %v705 = vld [vmem:[%s1 + $0x348] sm:$0xff]
      %v706 = vld [vmem:[%s1 + $0x350] sm:$0xff]
      %v707 = vld [vmem:[%s1 + $0x358] sm:$0xff]
      %v708 = vld [vmem:[%s1 + $0x360] sm:$0xff]
      %v709 = vld [vmem:[%s1 + $0x368] sm:$0xff]
      %v710 = vld [vmem:[%s1 + $0x370] sm:$0xff]
      %v711 = vld [vmem:[%s1 + $0x378] sm:$0xff]
      %v712 = vld [vmem:[%s1 + $0x380] sm:$0xff]
      %v713 = vld [vmem:[%s1 + $0x388] sm:$0xff]
      %v714 = vld [vmem:[%s1 + $0x390] sm:$0xff]
      %v715 = vld [vmem:[%s1 + $0x398] sm:$0xff]
      %v716 = vld [vmem:[%s1 + $0x3a0] sm:$0xff]
      %v717 = vld [vmem:[%s1 + $0x3a8] sm:$0xff]
      %v718 = vld [vmem:[%s1 + $0x3b0] sm:$0xff]
      %v719 = vld [vmem:[%s1 + $0x3b8] sm:$0xff]
      %v720 = vld [vmem:[%s1 + $0x3c0] sm:$0xff]
      %v721 = vld [vmem:[%s1 + $0x3c8] sm:$0xff]
      %v722 = vld [vmem:[%s1 + $0x3d0] sm:$0xff]
      %v723 = vld [vmem:[%s1 + $0x3d8] sm:$0xff]
      %v724 = vld [vmem:[%s1 + $0x3e0] sm:$0xff]
      %v725 = vld [vmem:[%s1 + $0x3e8] sm:$0xff]
      %v726 = vld [vmem:[%s1 + $0x3f0] sm:$0xff]
      %v727 = vld [vmem:[%s1 + $0x3f8] sm:$0xff]
      %v856 = vunpack.c.l.b16 %v600
      %v857 = vunpack.c.h.b16 %v600
      %v858 = vunpack.c.l.b16 %v601
      %v859 = vunpack.c.h.b16 %v601
      %v860 = vunpack.c.l.b16 %v602
      %v861 = vunpack.c.h.b16 %v602
      %v862 = vunpack.c.l.b16 %v603
      %v863 = vunpack.c.h.b16 %v603
      %v864 = vunpack.c.l.b16 %v604
      %v865 = vunpack.c.h.b16 %v604
      %v866 = vunpack.c.l.b16 %v605
      %v867 = vunpack.c.h.b16 %v605
      %v868 = vunpack.c.l.b16 %v606
      %v869 = vunpack.c.h.b16 %v606
      %v870 = vunpack.c.l.b16 %v607
      %v871 = vunpack.c.h.b16 %v607
      %v872 = vunpack.c.l.b16 %v608
      %v873 = vunpack.c.h.b16 %v608
      %v874 = vunpack.c.l.b16 %v609
      %v875 = vunpack.c.h.b16 %v609
      %v876 = vunpack.c.l.b16 %v610
      %v877 = vunpack.c.h.b16 %v610
      %v878 = vunpack.c.l.b16 %v611
      %v879 = vunpack.c.h.b16 %v611
      %v880 = vunpack.c.l.b16 %v612
      %v881 = vunpack.c.h.b16 %v612
      %v882 = vunpack.c.l.b16 %v613
      %v883 = vunpack.c.h.b16 %v613
      %v884 = vunpack.c.l.b16 %v614
      %v885 = vunpack.c.h.b16 %v614
      %v886 = vunpack.c.l.b16 %v615
      %v887 = vunpack.c.h.b16 %v615
      %v888 = vunpack.c.l.b16 %v616
      %v889 = vunpack.c.h.b16 %v616
      %v890 = vunpack.c.l.b16 %v617
      %v891 = vunpack.c.h.b16 %v617
      %v892 = vunpack.c.l.b16 %v618
      %v893 = vunpack.c.h.b16 %v618
      %v894 = vunpack.c.l.b16 %v619
      %v895 = vunpack.c.h.b16 %v619
      %v896 = vunpack.c.l.b16 %v620
      %v897 = vunpack.c.h.b16 %v620
      %v898 = vunpack.c.l.b16 %v621
      %v899 = vunpack.c.h.b16 %v621
      %v900 = vunpack.c.l.b16 %v622
      %v901 = vunpack.c.h.b16 %v622
      %v902 = vunpack.c.l.b16 %v623
      %v903 = vunpack.c.h.b16 %v623
      %v904 = vunpack.c.l.b16 %v624
      %v905 = vunpack.c.h.b16 %v624
      %v906 = vunpack.c.l.b16 %v625
      %v907 = vunpack.c.h.b16 %v625
      %v908 = vunpack.c.l.b16 %v626
      %v909 = vunpack.c.h.b16 %v626
      %v910 = vunpack.c.l.b16 %v627
      %v911 = vunpack.c.h.b16 %v627
      %v912 = vunpack.c.l.b16 %v628
      %v913 = vunpack.c.h.b16 %v628
      %v914 = vunpack.c.l.b16 %v629
      %v915 = vunpack.c.h.b16 %v629
      %v916 = vunpack.c.l.b16 %v630
      %v917 = vunpack.c.h.b16 %v630
      %v918 = vunpack.c.l.b16 %v631
      %v919 = vunpack.c.h.b16 %v631
      %v920 = vunpack.c.l.b16 %v632
      %v921 = vunpack.c.h.b16 %v632
      %v922 = vunpack.c.l.b16 %v633
      %v923 = vunpack.c.h.b16 %v633
      %v924 = vunpack.c.l.b16 %v634
      %v925 = vunpack.c.h.b16 %v634
      %v926 = vunpack.c.l.b16 %v635
      %v927 = vunpack.c.h.b16 %v635
      %v928 = vunpack.c.l.b16 %v636
      %v929 = vunpack.c.h.b16 %v636
      %v930 = vunpack.c.l.b16 %v637
      %v931 = vunpack.c.h.b16 %v637
      %v932 = vunpack.c.l.b16 %v638
      %v933 = vunpack.c.h.b16 %v638
      %v934 = vunpack.c.l.b16 %v639
      %v935 = vunpack.c.h.b16 %v639
      %v936 = vunpack.c.l.b16 %v640
      %v937 = vunpack.c.h.b16 %v640
      %v938 = vunpack.c.l.b16 %v641
      %v939 = vunpack.c.h.b16 %v641
      %v940 = vunpack.c.l.b16 %v642
      %v941 = vunpack.c.h.b16 %v642
      %v942 = vunpack.c.l.b16 %v643
      %v943 = vunpack.c.h.b16 %v643
      %v944 = vunpack.c.l.b16 %v644
      %v945 = vunpack.c.h.b16 %v644
      %v946 = vunpack.c.l.b16 %v645
      %v947 = vunpack.c.h.b16 %v645
      %v948 = vunpack.c.l.b16 %v646
      %v949 = vunpack.c.h.b16 %v646
      %v950 = vunpack.c.l.b16 %v647
      %v951 = vunpack.c.h.b16 %v647
      %v952 = vunpack.c.l.b16 %v648
      %v953 = vunpack.c.h.b16 %v648
      %v954 = vunpack.c.l.b16 %v649
      %v955 = vunpack.c.h.b16 %v649
      %v956 = vunpack.c.l.b16 %v650
      %v957 = vunpack.c.h.b16 %v650
      %v958 = vunpack.c.l.b16 %v651
      %v959 = vunpack.c.h.b16 %v651
      %v960 = vunpack.c.l.b16 %v652
      %v961 = vunpack.c.h.b16 %v652
      %v962 = vunpack.c.l.b16 %v653
      %v963 = vunpack.c.h.b16 %v653
      %v964 = vunpack.c.l.b16 %v654
      %v965 = vunpack.c.h.b16 %v654
      %v966 = vunpack.c.l.b16 %v655
      %v967 = vunpack.c.h.b16 %v655
      %v968 = vunpack.c.l.b16 %v656
      %v969 = vunpack.c.h.b16 %v656
      %v970 = vunpack.c.l.b16 %v657
      %v971 = vunpack.c.h.b16 %v657
      %v972 = vunpack.c.l.b16 %v658
      %v973 = vunpack.c.h.b16 %v658
      %v974 = vunpack.c.l.b16 %v659
      %v975 = vunpack.c.h.b16 %v659
      %v976 = vunpack.c.l.b16 %v660
      %v977 = vunpack.c.h.b16 %v660
      %v978 = vunpack.c.l.b16 %v661
      %v979 = vunpack.c.h.b16 %v661
      %v980 = vunpack.c.l.b16 %v662
      %v981 = vunpack.c.h.b16 %v662
      %v982 = vunpack.c.l.b16 %v663
      %v983 = vunpack.c.h.b16 %v663
      %v984 = vunpack.c.l.b16 %v664
      %v985 = vunpack.c.h.b16 %v664
      %v986 = vunpack.c.l.b16 %v665
      %v987 = vunpack.c.h.b16 %v665
      %v988 = vunpack.c.l.b16 %v666
      %v989 = vunpack.c.h.b16 %v666
      %v990 = vunpack.c.l.b16 %v667
      %v991 = vunpack.c.h.b16 %v667
      %v992 = vunpack.c.l.b16 %v668
      %v993 = vunpack.c.h.b16 %v668
      %v994 = vunpack.c.l.b16 %v669
      %v995 = vunpack.c.h.b16 %v669
      %v996 = vunpack.c.l.b16 %v670
      %v997 = vunpack.c.h.b16 %v670
      %v998 = vunpack.c.l.b16 %v671
      %v999 = vunpack.c.h.b16 %v671
      %v1000 = vunpack.c.l.b16 %v672
      %v1001 = vunpack.c.h.b16 %v672
      %v1002 = vunpack.c.l.b16 %v673
      %v1003 = vunpack.c.h.b16 %v673
      %v1004 = vunpack.c.l.b16 %v674
      %v1005 = vunpack.c.h.b16 %v674
      %v1006 = vunpack.c.l.b16 %v675
      %v1007 = vunpack.c.h.b16 %v675
      %v1008 = vunpack.c.l.b16 %v676
      %v1009 = vunpack.c.h.b16 %v676
      %v1010 = vunpack.c.l.b16 %v677
      %v1011 = vunpack.c.h.b16 %v677
      %v1012 = vunpack.c.l.b16 %v678
      %v1013 = vunpack.c.h.b16 %v678
      %v1014 = vunpack.c.l.b16 %v679
      %v1015 = vunpack.c.h.b16 %v679
      %v1016 = vunpack.c.l.b16 %v680
      %v1017 = vunpack.c.h.b16 %v680
      %v1018 = vunpack.c.l.b16 %v681
      %v1019 = vunpack.c.h.b16 %v681
      %v1020 = vunpack.c.l.b16 %v682
      %v1021 = vunpack.c.h.b16 %v682
      %v1022 = vunpack.c.l.b16 %v683
      %v1023 = vunpack.c.h.b16 %v683
      %v1024 = vunpack.c.l.b16 %v684
      %v1025 = vunpack.c.h.b16 %v684
      %v1026 = vunpack.c.l.b16 %v685
      %v1027 = vunpack.c.h.b16 %v685
      %v1028 = vunpack.c.l.b16 %v686
      %v1029 = vunpack.c.h.b16 %v686
      %v1030 = vunpack.c.l.b16 %v687
      %v1031 = vunpack.c.h.b16 %v687
      %v1032 = vunpack.c.l.b16 %v688
      %v1033 = vunpack.c.h.b16 %v688
      %v1034 = vunpack.c.l.b16 %v689
      %v1035 = vunpack.c.h.b16 %v689
      %v1036 = vunpack.c.l.b16 %v690
      %v1037 = vunpack.c.h.b16 %v690
      %v1038 = vunpack.c.l.b16 %v691
      %v1039 = vunpack.c.h.b16 %v691
      %v1040 = vunpack.c.l.b16 %v692
      %v1041 = vunpack.c.h.b16 %v692
      %v1042 = vunpack.c.l.b16 %v693
      %v1043 = vunpack.c.h.b16 %v693
      %v1044 = vunpack.c.l.b16 %v694
      %v1045 = vunpack.c.h.b16 %v694
      %v1046 = vunpack.c.l.b16 %v695
      %v1047 = vunpack.c.h.b16 %v695
      %v1048 = vunpack.c.l.b16 %v696
      %v1049 = vunpack.c.h.b16 %v696
      %v1050 = vunpack.c.l.b16 %v697
      %v1051 = vunpack.c.h.b16 %v697
      %v1052 = vunpack.c.l.b16 %v698
      %v1053 = vunpack.c.h.b16 %v698
      %v1054 = vunpack.c.l.b16 %v699
      %v1055 = vunpack.c.h.b16 %v699
      %v1056 = vunpack.c.l.b16 %v700
      %v1057 = vunpack.c.h.b16 %v700
      %v1058 = vunpack.c.l.b16 %v701
      %v1059 = vunpack.c.h.b16 %v701
      %v1060 = vunpack.c.l.b16 %v702
      %v1061 = vunpack.c.h.b16 %v702
      %v1062 = vunpack.c.l.b16 %v703
      %v1063 = vunpack.c.h.b16 %v703
      %v1064 = vunpack.c.l.b16 %v704
      %v1065 = vunpack.c.h.b16 %v704
      %v1066 = vunpack.c.l.b16 %v705
      %v1067 = vunpack.c.h.b16 %v705
      %v1068 = vunpack.c.l.b16 %v706
      %v1069 = vunpack.c.h.b16 %v706
      %v1070 = vunpack.c.l.b16 %v707
      %v1071 = vunpack.c.h.b16 %v707
      %v1072 = vunpack.c.l.b16 %v708
      %v1073 = vunpack.c.h.b16 %v708
      %v1074 = vunpack.c.l.b16 %v709
      %v1075 = vunpack.c.h.b16 %v709
      %v1076 = vunpack.c.l.b16 %v710
      %v1077 = vunpack.c.h.b16 %v710
      %v1078 = vunpack.c.l.b16 %v711
      %v1079 = vunpack.c.h.b16 %v711
      %v1080 = vunpack.c.l.b16 %v712
      %v1081 = vunpack.c.h.b16 %v712
      %v1082 = vunpack.c.l.b16 %v713
      %v1083 = vunpack.c.h.b16 %v713
      %v1084 = vunpack.c.l.b16 %v714
      %v1085 = vunpack.c.h.b16 %v714
      %v1086 = vunpack.c.l.b16 %v715
      %v1087 = vunpack.c.h.b16 %v715
      %v1088 = vunpack.c.l.b16 %v716
      %v1089 = vunpack.c.h.b16 %v716
      %v1090 = vunpack.c.l.b16 %v717
      %v1091 = vunpack.c.h.b16 %v717
      %v1092 = vunpack.c.l.b16 %v718
      %v1093 = vunpack.c.h.b16 %v718
      %v1094 = vunpack.c.l.b16 %v719
      %v1095 = vunpack.c.h.b16 %v719
      %v1096 = vunpack.c.l.b16 %v720
      %v1097 = vunpack.c.h.b16 %v720
      %v1098 = vunpack.c.l.b16 %v721
      %v1099 = vunpack.c.h.b16 %v721
      %v1100 = vunpack.c.l.b16 %v722
      %v1101 = vunpack.c.h.b16 %v722
      %v1102 = vunpack.c.l.b16 %v723
      %v1103 = vunpack.c.h.b16 %v723
      %v1104 = vunpack.c.l.b16 %v724
      %v1105 = vunpack.c.h.b16 %v724
      %v1106 = vunpack.c.l.b16 %v725
      %v1107 = vunpack.c.h.b16 %v725
      %v1108 = vunpack.c.l.b16 %v726
      %v1109 = vunpack.c.h.b16 %v726
      %v1110 = vunpack.c.l.b16 %v727
      %v1111 = vunpack.c.h.b16 %v727
      %v1112 = vpack.c.b16 %v872, %v856
      %v1113 = vpack.c.b16 %v873, %v857
      %v1114 = vpack.c.b16 %v874, %v858
      %v1115 = vpack.c.b16 %v875, %v859
      %v1116 = vpack.c.b16 %v876, %v860
      %v1117 = vpack.c.b16 %v877, %v861
      %v1118 = vpack.c.b16 %v878, %v862
      %v1119 = vpack.c.b16 %v879, %v863
      %v1120 = vpack.c.b16 %v880, %v864
      %v1121 = vpack.c.b16 %v881, %v865
      %v1122 = vpack.c.b16 %v882, %v866
      %v1123 = vpack.c.b16 %v883, %v867
      %v1124 = vpack.c.b16 %v884, %v868
      %v1125 = vpack.c.b16 %v885, %v869
      %v1126 = vpack.c.b16 %v886, %v870
      %v1127 = vpack.c.b16 %v887, %v871
      %v1128 = vpack.c.b16 %v904, %v888
      %v1129 = vpack.c.b16 %v905, %v889
      %v1130 = vpack.c.b16 %v906, %v890
      %v1131 = vpack.c.b16 %v907, %v891
      %v1132 = vpack.c.b16 %v908, %v892
      %v1133 = vpack.c.b16 %v909, %v893
      %v1134 = vpack.c.b16 %v910, %v894
      %v1135 = vpack.c.b16 %v911, %v895
      %v1136 = vpack.c.b16 %v912, %v896
      %v1137 = vpack.c.b16 %v913, %v897
      %v1138 = vpack.c.b16 %v914, %v898
      %v1139 = vpack.c.b16 %v915, %v899
      %v1140 = vpack.c.b16 %v916, %v900
      %v1141 = vpack.c.b16 %v917, %v901
      %v1142 = vpack.c.b16 %v918, %v902
      %v1143 = vpack.c.b16 %v919, %v903
      %v1144 = vpack.c.b16 %v936, %v920
      %v1145 = vpack.c.b16 %v937, %v921
      %v1146 = vpack.c.b16 %v938, %v922
      %v1147 = vpack.c.b16 %v939, %v923
      %v1148 = vpack.c.b16 %v940, %v924
      %v1149 = vpack.c.b16 %v941, %v925
      %v1150 = vpack.c.b16 %v942, %v926
      %v1151 = vpack.c.b16 %v943, %v927
      %v1152 = vpack.c.b16 %v944, %v928
      %v1153 = vpack.c.b16 %v945, %v929
      %v1154 = vpack.c.b16 %v946, %v930
      %v1155 = vpack.c.b16 %v947, %v931
      %v1156 = vpack.c.b16 %v948, %v932
      %v1157 = vpack.c.b16 %v949, %v933
      %v1158 = vpack.c.b16 %v950, %v934
      %v1159 = vpack.c.b16 %v951, %v935
      %v1160 = vpack.c.b16 %v968, %v952
      %v1161 = vpack.c.b16 %v969, %v953
      %v1162 = vpack.c.b16 %v970, %v954
      %v1163 = vpack.c.b16 %v971, %v955
      %v1164 = vpack.c.b16 %v972, %v956
      %v1165 = vpack.c.b16 %v973, %v957
      %v1166 = vpack.c.b16 %v974, %v958
      %v1167 = vpack.c.b16 %v975, %v959
      %v1168 = vpack.c.b16 %v976, %v960
      %v1169 = vpack.c.b16 %v977, %v961
      %v1170 = vpack.c.b16 %v978, %v962
      %v1171 = vpack.c.b16 %v979, %v963
      %v1172 = vpack.c.b16 %v980, %v964
      %v1173 = vpack.c.b16 %v981, %v965
      %v1174 = vpack.c.b16 %v982, %v966
      %v1175 = vpack.c.b16 %v983, %v967
      %v1176 = vpack.c.b16 %v1000, %v984
      %v1177 = vpack.c.b16 %v1001, %v985
      %v1178 = vpack.c.b16 %v1002, %v986
      %v1179 = vpack.c.b16 %v1003, %v987
      %v1180 = vpack.c.b16 %v1004, %v988
      %v1181 = vpack.c.b16 %v1005, %v989
      %v1182 = vpack.c.b16 %v1006, %v990
      %v1183 = vpack.c.b16 %v1007, %v991
      %v1184 = vpack.c.b16 %v1008, %v992
      %v1185 = vpack.c.b16 %v1009, %v993
      %v1186 = vpack.c.b16 %v1010, %v994
      %v1187 = vpack.c.b16 %v1011, %v995
      %v1188 = vpack.c.b16 %v1012, %v996
      %v1189 = vpack.c.b16 %v1013, %v997
      %v1190 = vpack.c.b16 %v1014, %v998
      %v1191 = vpack.c.b16 %v1015, %v999
      %v1192 = vpack.c.b16 %v1032, %v1016
      %v1193 = vpack.c.b16 %v1033, %v1017
      %v1194 = vpack.c.b16 %v1034, %v1018
      %v1195 = vpack.c.b16 %v1035, %v1019
      %v1196 = vpack.c.b16 %v1036, %v1020
      %v1197 = vpack.c.b16 %v1037, %v1021
      %v1198 = vpack.c.b16 %v1038, %v1022
      %v1199 = vpack.c.b16 %v1039, %v1023
      %v1200 = vpack.c.b16 %v1040, %v1024
      %v1201 = vpack.c.b16 %v1041, %v1025
      %v1202 = vpack.c.b16 %v1042, %v1026
      %v1203 = vpack.c.b16 %v1043, %v1027
      %v1204 = vpack.c.b16 %v1044, %v1028
      %v1205 = vpack.c.b16 %v1045, %v1029
      %v1206 = vpack.c.b16 %v1046, %v1030
      %v1207 = vpack.c.b16 %v1047, %v1031
      %v1208 = vpack.c.b16 %v1064, %v1048
      %v1209 = vpack.c.b16 %v1065, %v1049
      %v1210 = vpack.c.b16 %v1066, %v1050
      %v1211 = vpack.c.b16 %v1067, %v1051
      %v1212 = vpack.c.b16 %v1068, %v1052
      %v1213 = vpack.c.b16 %v1069, %v1053
      %v1214 = vpack.c.b16 %v1070, %v1054
      %v1215 = vpack.c.b16 %v1071, %v1055
      %v1216 = vpack.c.b16 %v1072, %v1056
      %v1217 = vpack.c.b16 %v1073, %v1057
      %v1218 = vpack.c.b16 %v1074, %v1058
      %v1219 = vpack.c.b16 %v1075, %v1059
      %v1220 = vpack.c.b16 %v1076, %v1060
      %v1221 = vpack.c.b16 %v1077, %v1061
      %v1222 = vpack.c.b16 %v1078, %v1062
      %v1223 = vpack.c.b16 %v1079, %v1063
      %v1224 = vpack.c.b16 %v1096, %v1080
      %v1225 = vpack.c.b16 %v1097, %v1081
      %v1226 = vpack.c.b16 %v1098, %v1082
      %v1227 = vpack.c.b16 %v1099, %v1083
      %v1228 = vpack.c.b16 %v1100, %v1084
      %v1229 = vpack.c.b16 %v1101, %v1085
      %v1230 = vpack.c.b16 %v1102, %v1086
      %v1231 = vpack.c.b16 %v1103, %v1087
      %v1232 = vpack.c.b16 %v1104, %v1088
      %v1233 = vpack.c.b16 %v1105, %v1089
      %v1234 = vpack.c.b16 %v1106, %v1090
      %v1235 = vpack.c.b16 %v1107, %v1091
      %v1236 = vpack.c.b16 %v1108, %v1092
      %v1237 = vpack.c.b16 %v1109, %v1093
      %v1238 = vpack.c.b16 %v1110, %v1094
      %v1239 = vpack.c.b16 %v1111, %v1095
      %1368 = vmatprep.subr.bf16.mxu0 %v1225
      %1369 = vmatpush1.bf16.msra.mxu0 %v1224
      %1370 = vmatprep.subr.bf16.mxu0 %v1209
      %1371 = vmatpush1.bf16.msra.mxu0 %v1208
      %1372 = vmatprep.subr.bf16.mxu0 %v1193
      %1373 = vmatpush1.bf16.msra.mxu0 %v1192
      %1374 = vmatprep.subr.bf16.mxu0 %v1177
      %1375 = vmatpush1.bf16.msra.mxu0 %v1176
      %1376 = vmatprep.subr.bf16.mxu0 %v1161
      %1377 = vmatpush1.bf16.msra.mxu0 %v1160
      %1378 = vmatprep.subr.bf16.mxu0 %v1145
      %1379 = vmatpush1.bf16.msra.mxu0 %v1144
      %1380 = vmatprep.subr.bf16.mxu0 %v1129
      %1381 = vmatpush1.bf16.msra.mxu0 %v1128
      %1382 = vmatprep.subr.bf16.mxu0 %v1113
      %1383 = vmatpush1.bf16.msra.mxu0 %v1112
      %1384 = vmatprep.subr.bf16.mxu0 0
      %1385 = vmatpush2.bf16.msra.mxu0 0
      %1386 = vmatprep.subr.bf16.mxu0 0
      %1387 = vmatpush2.bf16.msra.mxu0 0
      %1388 = vmatprep.subr.bf16.mxu0 0
      %1389 = vmatpush2.bf16.msra.mxu0 0
      %1390 = vmatprep.subr.bf16.mxu0 0
      %1391 = vmatpush2.bf16.msra.mxu0 0
      %1392 = vmatprep.subr.bf16.mxu0 0
      %1393 = vmatpush2.bf16.msra.mxu0 0
      %1394 = vmatprep.subr.bf16.mxu0 0
      %1395 = vmatpush2.bf16.msra.mxu0 0
      %1396 = vmatprep.subr.bf16.mxu0 0
      %1397 = vmatpush2.bf16.msra.mxu0 0
      %1398 = vmatprep.subr.bf16.mxu0 0
      %1399 = vmatpush2.bf16.msra.mxu0 0
      %1400 = vmatprep.mubr.bf16.mxu0 0
      %1401 = vmatmul.mubr.bf16.gmra.mxu0 %v599
      %v1402 = vpop.f32.mrf.mxu0
      %v1403 = vadd.f32 0.0, %v1402
      %v1404 = vpop.f32.mrf.mxu0
      %v1405 = vadd.f32 0.0, %v1404
      %v1406 = vpop.f32.mrf.mxu0
      %v1407 = vpop.f32.mrf.mxu0
      %1408 = vdwg.mxu0
      %1409 = vmatprep.subr.bf16.mxu0 %v1227
      %1410 = vmatpush1.bf16.msra.mxu0 %v1226
      %1411 = vmatprep.subr.bf16.mxu0 %v1211
      %1412 = vmatpush1.bf16.msra.mxu0 %v1210
      %1413 = vmatprep.subr.bf16.mxu0 %v1195
      %1414 = vmatpush1.bf16.msra.mxu0 %v1194
      %1415 = vmatprep.subr.bf16.mxu0 %v1179
      %1416 = vmatpush1.bf16.msra.mxu0 %v1178
      %1417 = vmatprep.subr.bf16.mxu0 %v1163
      %1418 = vmatpush1.bf16.msra.mxu0 %v1162
      %1419 = vmatprep.subr.bf16.mxu0 %v1147
      %1420 = vmatpush1.bf16.msra.mxu0 %v1146
      %1421 = vmatprep.subr.bf16.mxu0 %v1131
      %1422 = vmatpush1.bf16.msra.mxu0 %v1130
      %1423 = vmatprep.subr.bf16.mxu0 %v1115
      %1424 = vmatpush1.bf16.msra.mxu0 %v1114
      %1425 = vmatprep.subr.bf16.mxu0 0
      %1426 = vmatpush2.bf16.msra.mxu0 0
      %1427 = vmatprep.subr.bf16.mxu0 0
      %1428 = vmatpush2.bf16.msra.mxu0 0
      %1429 = vmatprep.subr.bf16.mxu0 0
      %1430 = vmatpush2.bf16.msra.mxu0 0
      %1431 = vmatprep.subr.bf16.mxu0 0
      %1432 = vmatpush2.bf16.msra.mxu0 0
      %1433 = vmatprep.subr.bf16.mxu0 0
      %1434 = vmatpush2.bf16.msra.mxu0 0
      %1435 = vmatprep.subr.bf16.mxu0 0
      %1436 = vmatpush2.bf16.msra.mxu0 0
      %1437 = vmatprep.subr.bf16.mxu0 0
      %1438 = vmatpush2.bf16.msra.mxu0 0
      %1439 = vmatprep.subr.bf16.mxu0 0
      %1440 = vmatpush2.bf16.msra.mxu0 0
      %1441 = vmatprep.mubr.bf16.mxu0 0
      %1442 = vmatmul.mubr.bf16.gmra.mxu0 %v599
      %v1443 = vpop.f32.mrf.mxu0
      %v1444 = vadd.f32 0.0, %v1443
      %v1445 = vpop.f32.mrf.mxu0
      %v1446 = vadd.f32 0.0, %v1445
      %v1447 = vpop.f32.mrf.mxu0
      %v1448 = vpop.f32.mrf.mxu0
      %1449 = vdwg.mxu0
      %1450 = vmatprep.subr.bf16.mxu0 %v1229
      %1451 = vmatpush1.bf16.msra.mxu0 %v1228
      %1452 = vmatprep.subr.bf16.mxu0 %v1213
      %1453 = vmatpush1.bf16.msra.mxu0 %v1212
      %1454 = vmatprep.subr.bf16.mxu0 %v1197
      %1455 = vmatpush1.bf16.msra.mxu0 %v1196
      %1456 = vmatprep.subr.bf16.mxu0 %v1181
      %1457 = vmatpush1.bf16.msra.mxu0 %v1180
      %1458 = vmatprep.subr.bf16.mxu0 %v1165
      %1459 = vmatpush1.bf16.msra.mxu0 %v1164
      %1460 = vmatprep.subr.bf16.mxu0 %v1149
      %1461 = vmatpush1.bf16.msra.mxu0 %v1148
      %1462 = vmatprep.subr.bf16.mxu0 %v1133
      %1463 = vmatpush1.bf16.msra.mxu0 %v1132
      %1464 = vmatprep.subr.bf16.mxu0 %v1117
      %1465 = vmatpush1.bf16.msra.mxu0 %v1116
      %1466 = vmatprep.subr.bf16.mxu0 0
      %1467 = vmatpush2.bf16.msra.mxu0 0
      %1468 = vmatprep.subr.bf16.mxu0 0
      %1469 = vmatpush2.bf16.msra.mxu0 0
      %1470 = vmatprep.subr.bf16.mxu0 0
      %1471 = vmatpush2.bf16.msra.mxu0 0
      %1472 = vmatprep.subr.bf16.mxu0 0
      %1473 = vmatpush2.bf16.msra.mxu0 0
      %1474 = vmatprep.subr.bf16.mxu0 0
      %1475 = vmatpush2.bf16.msra.mxu0 0
      %1476 = vmatprep.subr.bf16.mxu0 0
      %1477 = vmatpush2.bf16.msra.mxu0 0
      %1478 = vmatprep.subr.bf16.mxu0 0
      %1479 = vmatpush2.bf16.msra.mxu0 0
      %1480 = vmatprep.subr.bf16.mxu0 0
      %1481 = vmatpush2.bf16.msra.mxu0 0
      %1482 = vmatprep.mubr.bf16.mxu0 0
      %1483 = vmatmul.mubr.bf16.gmra.mxu0 %v599
      %v1484 = vpop.f32.mrf.mxu0
      %v1485 = vadd.f32 0.0, %v1484
      %v1486 = vpop.f32.mrf.mxu0
      %v1487 = vadd.f32 0.0, %v1486
      %v1488 = vpop.f32.mrf.mxu0
      %v1489 = vpop.f32.mrf.mxu0
      %1490 = vdwg.mxu0
      %1491 = vmatprep.subr.bf16.mxu0 %v1231
      %1492 = vmatpush1.bf16.msra.mxu0 %v1230
      %1493 = vmatprep.subr.bf16.mxu0 %v1215
      %1494 = vmatpush1.bf16.msra.mxu0 %v1214
      %1495 = vmatprep.subr.bf16.mxu0 %v1199
      %1496 = vmatpush1.bf16.msra.mxu0 %v1198
      %1497 = vmatprep.subr.bf16.mxu0 %v1183
      %1498 = vmatpush1.bf16.msra.mxu0 %v1182
      %1499 = vmatprep.subr.bf16.mxu0 %v1167
      %1500 = vmatpush1.bf16.msra.mxu0 %v1166
      %1501 = vmatprep.subr.bf16.mxu0 %v1151
      %1502 = vmatpush1.bf16.msra.mxu0 %v1150
      %1503 = vmatprep.subr.bf16.mxu0 %v1135
      %1504 = vmatpush1.bf16.msra.mxu0 %v1134
      %1505 = vmatprep.subr.bf16.mxu0 %v1119
      %1506 = vmatpush1.bf16.msra.mxu0 %v1118
      %1507 = vmatprep.subr.bf16.mxu0 0
      %1508 = vmatpush2.bf16.msra.mxu0 0
      %1509 = vmatprep.subr.bf16.mxu0 0
      %1510 = vmatpush2.bf16.msra.mxu0 0
      %1511 = vmatprep.subr.bf16.mxu0 0
      %1512 = vmatpush2.bf16.msra.mxu0 0
      %1513 = vmatprep.subr.bf16.mxu0 0
      %1514 = vmatpush2.bf16.msra.mxu0 0
      %1515 = vmatprep.subr.bf16.mxu0 0
      %1516 = vmatpush2.bf16.msra.mxu0 0
      %1517 = vmatprep.subr.bf16.mxu0 0
      %1518 = vmatpush2.bf16.msra.mxu0 0
      %1519 = vmatprep.subr.bf16.mxu0 0
      %1520 = vmatpush2.bf16.msra.mxu0 0
      %1521 = vmatprep.subr.bf16.mxu0 0
      %1522 = vmatpush2.bf16.msra.mxu0 0
      %1523 = vmatprep.mubr.bf16.mxu0 0
      %1524 = vmatmul.mubr.bf16.gmra.mxu0 %v599
      %v1525 = vpop.f32.mrf.mxu0
      %v1526 = vadd.f32 0.0, %v1525
      %v1527 = vpop.f32.mrf.mxu0
      %v1528 = vadd.f32 0.0, %v1527
      %v1529 = vpop.f32.mrf.mxu0
      %v1530 = vpop.f32.mrf.mxu0
      %1531 = vdwg.mxu0
      %1532 = vmatprep.subr.bf16.mxu0 %v1233
      %1533 = vmatpush1.bf16.msra.mxu0 %v1232
      %1534 = vmatprep.subr.bf16.mxu0 %v1217
      %1535 = vmatpush1.bf16.msra.mxu0 %v1216
      %1536 = vmatprep.subr.bf16.mxu0 %v1201
      %1537 = vmatpush1.bf16.msra.mxu0 %v1200
      %1538 = vmatprep.subr.bf16.mxu0 %v1185
      %1539 = vmatpush1.bf16.msra.mxu0 %v1184
      %1540 = vmatprep.subr.bf16.mxu0 %v1169
      %1541 = vmatpush1.bf16.msra.mxu0 %v1168
      %1542 = vmatprep.subr.bf16.mxu0 %v1153
      %1543 = vmatpush1.bf16.msra.mxu0 %v1152
      %1544 = vmatprep.subr.bf16.mxu0 %v1137
      %1545 = vmatpush1.bf16.msra.mxu0 %v1136
      %1546 = vmatprep.subr.bf16.mxu0 %v1121
      %1547 = vmatpush1.bf16.msra.mxu0 %v1120
      %1548 = vmatprep.subr.bf16.mxu0 0
      %1549 = vmatpush2.bf16.msra.mxu0 0
      %1550 = vmatprep.subr.bf16.mxu0 0
      %1551 = vmatpush2.bf16.msra.mxu0 0
      %1552 = vmatprep.subr.bf16.mxu0 0
      %1553 = vmatpush2.bf16.msra.mxu0 0
      %1554 = vmatprep.subr.bf16.mxu0 0
      %1555 = vmatpush2.bf16.msra.mxu0 0
      %1556 = vmatprep.subr.bf16.mxu0 0
      %1557 = vmatpush2.bf16.msra.mxu0 0
      %1558 = vmatprep.subr.bf16.mxu0 0
      %1559 = vmatpush2.bf16.msra.mxu0 0
      %1560 = vmatprep.subr.bf16.mxu0 0
      %1561 = vmatpush2.bf16.msra.mxu0 0
      %1562 = vmatprep.subr.bf16.mxu0 0
      %1563 = vmatpush2.bf16.msra.mxu0 0
      %1564 = vmatprep.mubr.bf16.mxu0 0
      %1565 = vmatmul.mubr.bf16.gmra.mxu0 %v599
      %v1566 = vpop.f32.mrf.mxu0
      %v1567 = vadd.f32 0.0, %v1566
      %v1568 = vpop.f32.mrf.mxu0
      %v1569 = vadd.f32 0.0, %v1568
      %v1570 = vpop.f32.mrf.mxu0
      %v1571 = vpop.f32.mrf.mxu0
      %1572 = vdwg.mxu0
      %1573 = vmatprep.subr.bf16.mxu0 %v1235
      %1574 = vmatpush1.bf16.msra.mxu0 %v1234
      %1575 = vmatprep.subr.bf16.mxu0 %v1219
      %1576 = vmatpush1.bf16.msra.mxu0 %v1218
      %1577 = vmatprep.subr.bf16.mxu0 %v1203
      %1578 = vmatpush1.bf16.msra.mxu0 %v1202
      %1579 = vmatprep.subr.bf16.mxu0 %v1187
      %1580 = vmatpush1.bf16.msra.mxu0 %v1186
      %1581 = vmatprep.subr.bf16.mxu0 %v1171
      %1582 = vmatpush1.bf16.msra.mxu0 %v1170
      %1583 = vmatprep.subr.bf16.mxu0 %v1155
      %1584 = vmatpush1.bf16.msra.mxu0 %v1154
      %1585 = vmatprep.subr.bf16.mxu0 %v1139
      %1586 = vmatpush1.bf16.msra.mxu0 %v1138
      %1587 = vmatprep.subr.bf16.mxu0 %v1123
      %1588 = vmatpush1.bf16.msra.mxu0 %v1122
      %1589 = vmatprep.subr.bf16.mxu0 0
      %1590 = vmatpush2.bf16.msra.mxu0 0
      %1591 = vmatprep.subr.bf16.mxu0 0
      %1592 = vmatpush2.bf16.msra.mxu0 0
      %1593 = vmatprep.subr.bf16.mxu0 0
      %1594 = vmatpush2.bf16.msra.mxu0 0
      %1595 = vmatprep.subr.bf16.mxu0 0
      %1596 = vmatpush2.bf16.msra.mxu0 0
      %1597 = vmatprep.subr.bf16.mxu0 0
      %1598 = vmatpush2.bf16.msra.mxu0 0
      %1599 = vmatprep.subr.bf16.mxu0 0
      %1600 = vmatpush2.bf16.msra.mxu0 0
      %1601 = vmatprep.subr.bf16.mxu0 0
      %1602 = vmatpush2.bf16.msra.mxu0 0
      %1603 = vmatprep.subr.bf16.mxu0 0
      %1604 = vmatpush2.bf16.msra.mxu0 0
      %1605 = vmatprep.mubr.bf16.mxu0 0
      %1606 = vmatmul.mubr.bf16.gmra.mxu0 %v599
      %v1607 = vpop.f32.mrf.mxu0
      %v1608 = vadd.f32 0.0, %v1607
      %v1609 = vpop.f32.mrf.mxu0
      %v1610 = vadd.f32 0.0, %v1609
      %v1611 = vpop.f32.mrf.mxu0
      %v1612 = vpop.f32.mrf.mxu0
      %1613 = vdwg.mxu0
      %1614 = vmatprep.subr.bf16.mxu0 %v1237
      %1615 = vmatpush1.bf16.msra.mxu0 %v1236
      %1616 = vmatprep.subr.bf16.mxu0 %v1221
      %1617 = vmatpush1.bf16.msra.mxu0 %v1220
      %1618 = vmatprep.subr.bf16.mxu0 %v1205
      %1619 = vmatpush1.bf16.msra.mxu0 %v1204
      %1620 = vmatprep.subr.bf16.mxu0 %v1189
      %1621 = vmatpush1.bf16.msra.mxu0 %v1188
      %1622 = vmatprep.subr.bf16.mxu0 %v1173
      %1623 = vmatpush1.bf16.msra.mxu0 %v1172
      %1624 = vmatprep.subr.bf16.mxu0 %v1157
      %1625 = vmatpush1.bf16.msra.mxu0 %v1156
      %1626 = vmatprep.subr.bf16.mxu0 %v1141
      %1627 = vmatpush1.bf16.msra.mxu0 %v1140
      %1628 = vmatprep.subr.bf16.mxu0 %v1125
      %1629 = vmatpush1.bf16.msra.mxu0 %v1124
      %1630 = vmatprep.subr.bf16.mxu0 0
      %1631 = vmatpush2.bf16.msra.mxu0 0
      %1632 = vmatprep.subr.bf16.mxu0 0
      %1633 = vmatpush2.bf16.msra.mxu0 0
      %1634 = vmatprep.subr.bf16.mxu0 0
      %1635 = vmatpush2.bf16.msra.mxu0 0
      %1636 = vmatprep.subr.bf16.mxu0 0
      %1637 = vmatpush2.bf16.msra.mxu0 0
      %1638 = vmatprep.subr.bf16.mxu0 0
      %1639 = vmatpush2.bf16.msra.mxu0 0
      %1640 = vmatprep.subr.bf16.mxu0 0
      %1641 = vmatpush2.bf16.msra.mxu0 0
      %1642 = vmatprep.subr.bf16.mxu0 0
      %1643 = vmatpush2.bf16.msra.mxu0 0
      %1644 = vmatprep.subr.bf16.mxu0 0
      %1645 = vmatpush2.bf16.msra.mxu0 0
      %1646 = vmatprep.mubr.bf16.mxu0 0
      %1647 = vmatmul.mubr.bf16.gmra.mxu0 %v599
      %v1648 = vpop.f32.mrf.mxu0
      %v1649 = vadd.f32 0.0, %v1648
      %v1650 = vpop.f32.mrf.mxu0
      %v1651 = vadd.f32 0.0, %v1650
      %v1652 = vpop.f32.mrf.mxu0
      %v1653 = vpop.f32.mrf.mxu0
      %1654 = vdwg.mxu0
      %1655 = vmatprep.subr.bf16.mxu0 %v1239
      %1656 = vmatpush1.bf16.msra.mxu0 %v1238
      %1657 = vmatprep.subr.bf16.mxu0 %v1223
      %1658 = vmatpush1.bf16.msra.mxu0 %v1222
      %1659 = vmatprep.subr.bf16.mxu0 %v1207
      %1660 = vmatpush1.bf16.msra.mxu0 %v1206
      %1661 = vmatprep.subr.bf16.mxu0 %v1191
      %1662 = vmatpush1.bf16.msra.mxu0 %v1190
      %1663 = vmatprep.subr.bf16.mxu0 %v1175
      %1664 = vmatpush1.bf16.msra.mxu0 %v1174
      %1665 = vmatprep.subr.bf16.mxu0 %v1159
      %1666 = vmatpush1.bf16.msra.mxu0 %v1158
      %1667 = vmatprep.subr.bf16.mxu0 %v1143
      %1668 = vmatpush1.bf16.msra.mxu0 %v1142
      %1669 = vmatprep.subr.bf16.mxu0 %v1127
      %1670 = vmatpush1.bf16.msra.mxu0 %v1126
      %1671 = vmatprep.subr.bf16.mxu0 0
      %1672 = vmatpush2.bf16.msra.mxu0 0
      %1673 = vmatprep.subr.bf16.mxu0 0
      %1674 = vmatpush2.bf16.msra.mxu0 0
      %1675 = vmatprep.subr.bf16.mxu0 0
      %1676 = vmatpush2.bf16.msra.mxu0 0
      %1677 = vmatprep.subr.bf16.mxu0 0
      %1678 = vmatpush2.bf16.msra.mxu0 0
      %1679 = vmatprep.subr.bf16.mxu0 0
      %1680 = vmatpush2.bf16.msra.mxu0 0
      %1681 = vmatprep.subr.bf16.mxu0 0
      %1682 = vmatpush2.bf16.msra.mxu0 0
      %1683 = vmatprep.subr.bf16.mxu0 0
      %1684 = vmatpush2.bf16.msra.mxu0 0
      %1685 = vmatprep.subr.bf16.mxu0 0
      %1686 = vmatpush2.bf16.msra.mxu0 0
      %1687 = vmatprep.mubr.bf16.mxu0 0
      %1688 = vmatmul.mubr.bf16.gmra.mxu0 %v599
      %v1689 = vpop.f32.mrf.mxu0
      %v1690 = vadd.f32 0.0, %v1689
      %v1691 = vpop.f32.mrf.mxu0
      %v1692 = vadd.f32 0.0, %v1691
      %v1693 = vpop.f32.mrf.mxu0
      %v1694 = vpop.f32.mrf.mxu0
      %1695 = vdwg.mxu0
      %v1700 = vrot.slane %v1485, 7
      %v1701 = vrot.slane %v1487, 7
      %v1702 = vrot.slane %v1526, 7
      %v1703 = vrot.slane %v1528, 7
      %v1712 = vrot.slane %v1567, 6
      %v1713 = vrot.slane %v1569, 6
      %v1714 = vrot.slane %v1608, 6
      %v1715 = vrot.slane %v1610, 6
      %v1724 = vrot.slane %v1649, 5
      %v1725 = vrot.slane %v1651, 5
      %v1726 = vrot.slane %v1690, 5
      %v1727 = vrot.slane %v1692, 5
      %vm1732 = vcmask 1040384
      %v1733 = vsel %vm1732, %v1403, %v1700
      %v1734 = vsel %vm1732, %v1405, %v1701
      %v1735 = vsel %vm1732, %v1444, %v1702
      %v1736 = vsel %vm1732, %v1446, %v1703
      %vm1737 = vcmask 1041408
      %v1738 = vsel %vm1737, %v1733, %v1712
      %v1739 = vsel %vm1737, %v1734, %v1713
      %v1740 = vsel %vm1737, %v1735, %v1714
      %v1741 = vsel %vm1737, %v1736, %v1715
      %vm1742 = vcmask 1042432
      %v1743 = vsel %vm1742, %v1738, %v1724
      %v1744 = vsel %vm1742, %v1739, %v1725
      %v1745 = vsel %vm1742, %v1740, %v1726
      %v1746 = vsel %vm1742, %v1741, %v1727
      %v1747 = vld [vmem:[%s3] sm:$0x3]
      %v1748 = vpack.c.bf16 %v1743, %v1743
      %v1749 = vpack.c.bf16 %v1744, %v1744
      %v1750 = vpack.c.bf16 %v1745, %v1745
      %v1751 = vpack.c.bf16 %v1746, %v1746
      %v1752 = vld [vmem:[%s2] sm:$0xf]
      %v1754 = vlaneseq
      %v1755 = vshrl.u32 %v1754, 7
      %v1756 = vsub.s32 0, %v1755
      %v1757 = vrot.slane %v1752, %v1756
      %v1758 = vlaneseq
      %v1759 = vshrl.u32 %v1758, 7
      %v1760 = vsub.s32 1, %v1759
      %v1761 = vrot.slane %v1752, %v1760
      %v1762 = vlaneseq
      %v1763 = vshrl.u32 %v1762, 7
      %v1764 = vsub.s32 2, %v1763
      %v1765 = vrot.slane %v1752, %v1764
      %v1766 = vlaneseq
      %v1767 = vshrl.u32 %v1766, 7
      %v1768 = vsub.s32 3, %v1767
      %v1769 = vrot.slane %v1752, %v1768
      %vm1774 = vcmask 31744
      %v1776 = vsel %vm1774, %v1747, 0
      %v1779 = vsel %vm1737, %v1748, 0
      %v1782 = vsel %vm1737, %v1749, 0
      %v1785 = vsel %vm1737, %v1750, 0
      %v1788 = vsel %vm1737, %v1751, 0
      %1790 = vmatprep.subr.bf16.mxu0 0
      %1791 = vmatpush1.bf16.msra.mxu0 0
      %1792 = vmatprep.subr.bf16.mxu0 0
      %1793 = vmatpush1.bf16.msra.mxu0 0
      %1794 = vmatprep.subr.bf16.mxu0 0
      %1795 = vmatpush1.bf16.msra.mxu0 0
      %1796 = vmatprep.subr.bf16.mxu0 0
      %1797 = vmatpush1.bf16.msra.mxu0 0
      %1798 = vmatprep.subr.bf16.mxu0 0
      %1799 = vmatpush1.bf16.msra.mxu0 0
      %1800 = vmatprep.subr.bf16.mxu0 0
      %1801 = vmatpush1.bf16.msra.mxu0 0
      %1802 = vmatprep.subr.bf16.mxu0 0
      %1803 = vmatpush1.bf16.msra.mxu0 0
      %1804 = vmatprep.subr.bf16.mxu0 %v1782
      %1805 = vmatpush1.bf16.msra.mxu0 %v1779
      %1806 = vmatprep.subr.bf16.mxu0 0
      %1807 = vmatpush2.bf16.msra.mxu0 0
      %1808 = vmatprep.subr.bf16.mxu0 0
      %1809 = vmatpush2.bf16.msra.mxu0 0
      %1810 = vmatprep.subr.bf16.mxu0 0
      %1811 = vmatpush2.bf16.msra.mxu0 0
      %1812 = vmatprep.subr.bf16.mxu0 0
      %1813 = vmatpush2.bf16.msra.mxu0 0
      %1814 = vmatprep.subr.bf16.mxu0 0
      %1815 = vmatpush2.bf16.msra.mxu0 0
      %1816 = vmatprep.subr.bf16.mxu0 0
      %1817 = vmatpush2.bf16.msra.mxu0 0
      %1818 = vmatprep.subr.bf16.mxu0 0
      %1819 = vmatpush2.bf16.msra.mxu0 0
      %1820 = vmatprep.subr.bf16.mxu0 0
      %1821 = vmatpush2.bf16.msra.mxu0 0
      %1822 = vmatprep.mubr.bf16.mxu0 0
      %1823 = vmatmul.mubr.bf16.gmra.mxu0 %v1776
      %v1824 = vpop.f32.mrf.mxu0
      %v1825 = vadd.f32 %v1757, %v1824
      %v1826 = vpop.f32.mrf.mxu0
      %v1827 = vadd.f32 %v1761, %v1826
      %v1828 = vpop.f32.mrf.mxu0
      %v1829 = vpop.f32.mrf.mxu0
      %1830 = vdwg.mxu0
      %1831 = vmatprep.subr.bf16.mxu0 0
      %1832 = vmatpush1.bf16.msra.mxu0 0
      %1833 = vmatprep.subr.bf16.mxu0 0
      %1834 = vmatpush1.bf16.msra.mxu0 0
      %1835 = vmatprep.subr.bf16.mxu0 0
      %1836 = vmatpush1.bf16.msra.mxu0 0
      %1837 = vmatprep.subr.bf16.mxu0 0
      %1838 = vmatpush1.bf16.msra.mxu0 0
      %1839 = vmatprep.subr.bf16.mxu0 0
      %1840 = vmatpush1.bf16.msra.mxu0 0
      %1841 = vmatprep.subr.bf16.mxu0 0
      %1842 = vmatpush1.bf16.msra.mxu0 0
      %1843 = vmatprep.subr.bf16.mxu0 0
      %1844 = vmatpush1.bf16.msra.mxu0 0
      %1845 = vmatprep.subr.bf16.mxu0 %v1788
      %1846 = vmatpush1.bf16.msra.mxu0 %v1785
      %1847 = vmatprep.subr.bf16.mxu0 0
      %1848 = vmatpush2.bf16.msra.mxu0 0
      %1849 = vmatprep.subr.bf16.mxu0 0
      %1850 = vmatpush2.bf16.msra.mxu0 0
      %1851 = vmatprep.subr.bf16.mxu0 0
      %1852 = vmatpush2.bf16.msra.mxu0 0
      %1853 = vmatprep.subr.bf16.mxu0 0
      %1854 = vmatpush2.bf16.msra.mxu0 0
      %1855 = vmatprep.subr.bf16.mxu0 0
      %1856 = vmatpush2.bf16.msra.mxu0 0
      %1857 = vmatprep.subr.bf16.mxu0 0
      %1858 = vmatpush2.bf16.msra.mxu0 0
      %1859 = vmatprep.subr.bf16.mxu0 0
      %1860 = vmatpush2.bf16.msra.mxu0 0
      %1861 = vmatprep.subr.bf16.mxu0 0
      %1862 = vmatpush2.bf16.msra.mxu0 0
      %1863 = vmatprep.mubr.bf16.mxu0 0
      %1864 = vmatmul.mubr.bf16.gmra.mxu0 %v1776
      %v1865 = vpop.f32.mrf.mxu0
      %v1866 = vadd.f32 %v1765, %v1865
      %v1867 = vpop.f32.mrf.mxu0
      %v1868 = vadd.f32 %v1769, %v1867
      %v1869 = vpop.f32.mrf.mxu0
      %v1870 = vpop.f32.mrf.mxu0
      %1871 = vdwg.mxu0
      %vm1872 = vcmp.ge.f32.partialorder %v1825, 0.0
      %vm1873 = vcmp.ge.f32.partialorder %v1827, 0.0
      %vm1874 = vcmp.ge.f32.partialorder %v1866, 0.0
      %vm1875 = vcmp.ge.f32.partialorder %v1868, 0.0
      %v1876 = vmul.f32 %v1825, 0.2
      %v1877 = vmul.f32 %v1827, 0.2
      %v1878 = vmul.f32 %v1866, 0.2
      %v1879 = vmul.f32 %v1868, 0.2
      %v1880 = vsel %vm1872, %v1825, %v1876
      %v1881 = vsel %vm1873, %v1827, %v1877
      %v1882 = vsel %vm1874, %v1866, %v1878
      %v1883 = vsel %vm1875, %v1868, %v1879
      %v1884 = vpack.c.bf16 %v1880, %v1880
      %v1885 = vpack.c.bf16 %v1881, %v1881
      %v1886 = vpack.c.bf16 %v1882, %v1882
      %v1887 = vpack.c.bf16 %v1883, %v1883
      %v1888 = vld [vmem:[%s4] sm:$0xff]
      %v1889 = vld [vmem:[%s4 + $0x8] sm:$0xff]
      %v1890 = vld [vmem:[%s4 + $0x10] sm:$0xff]
      %v1891 = vld [vmem:[%s4 + $0x18] sm:$0xff]
      %v1892 = vld [vmem:[%s4 + $0x20] sm:$0xff]
      %v1893 = vld [vmem:[%s4 + $0x28] sm:$0xff]
      %v1894 = vld [vmem:[%s4 + $0x30] sm:$0xff]
      %v1895 = vld [vmem:[%s4 + $0x38] sm:$0xff]
      %v1896 = vld [vmem:[%s4 + $0x40] sm:$0xff]
      %v1897 = vld [vmem:[%s4 + $0x48] sm:$0xff]
      %v1898 = vld [vmem:[%s4 + $0x50] sm:$0xff]
      %v1899 = vld [vmem:[%s4 + $0x58] sm:$0xff]
      %v1900 = vld [vmem:[%s4 + $0x60] sm:$0xff]
      %v1901 = vld [vmem:[%s4 + $0x68] sm:$0xff]
      %v1902 = vld [vmem:[%s4 + $0x70] sm:$0xff]
      %v1903 = vld [vmem:[%s4 + $0x78] sm:$0xff]
      %v1904 = vld [vmem:[%s4 + $0x80] sm:$0xff]
      %v1905 = vld [vmem:[%s4 + $0x88] sm:$0xff]
      %v1906 = vld [vmem:[%s4 + $0x90] sm:$0xff]
      %v1907 = vld [vmem:[%s4 + $0x98] sm:$0xff]
      %v1908 = vld [vmem:[%s4 + $0xa0] sm:$0xff]
      %v1909 = vld [vmem:[%s4 + $0xa8] sm:$0xff]
      %v1910 = vld [vmem:[%s4 + $0xb0] sm:$0xff]
      %v1911 = vld [vmem:[%s4 + $0xb8] sm:$0xff]
      %v1912 = vld [vmem:[%s4 + $0xc0] sm:$0xff]
      %v1913 = vld [vmem:[%s4 + $0xc8] sm:$0xff]
      %v1914 = vld [vmem:[%s4 + $0xd0] sm:$0xff]
      %v1915 = vld [vmem:[%s4 + $0xd8] sm:$0xff]
      %v1916 = vld [vmem:[%s4 + $0xe0] sm:$0xff]
      %v1917 = vld [vmem:[%s4 + $0xe8] sm:$0xff]
      %v1918 = vld [vmem:[%s4 + $0xf0] sm:$0xff]
      %v1919 = vld [vmem:[%s4 + $0xf8] sm:$0xff]
      %v1920 = vld [vmem:[%s4 + $0x100] sm:$0xff]
      %v1921 = vld [vmem:[%s4 + $0x108] sm:$0xff]
      %v1922 = vld [vmem:[%s4 + $0x110] sm:$0xff]
      %v1923 = vld [vmem:[%s4 + $0x118] sm:$0xff]
      %v1924 = vld [vmem:[%s4 + $0x120] sm:$0xff]
      %v1925 = vld [vmem:[%s4 + $0x128] sm:$0xff]
      %v1926 = vld [vmem:[%s4 + $0x130] sm:$0xff]
      %v1927 = vld [vmem:[%s4 + $0x138] sm:$0xff]
      %v1928 = vld [vmem:[%s4 + $0x140] sm:$0xff]
      %v1929 = vld [vmem:[%s4 + $0x148] sm:$0xff]
      %v1930 = vld [vmem:[%s4 + $0x150] sm:$0xff]
      %v1931 = vld [vmem:[%s4 + $0x158] sm:$0xff]
      %v1932 = vld [vmem:[%s4 + $0x160] sm:$0xff]
      %v1933 = vld [vmem:[%s4 + $0x168] sm:$0xff]
      %v1934 = vld [vmem:[%s4 + $0x170] sm:$0xff]
      %v1935 = vld [vmem:[%s4 + $0x178] sm:$0xff]
      %v1936 = vld [vmem:[%s4 + $0x180] sm:$0xff]
      %v1937 = vld [vmem:[%s4 + $0x188] sm:$0xff]
      %v1938 = vld [vmem:[%s4 + $0x190] sm:$0xff]
      %v1939 = vld [vmem:[%s4 + $0x198] sm:$0xff]
      %v1940 = vld [vmem:[%s4 + $0x1a0] sm:$0xff]
      %v1941 = vld [vmem:[%s4 + $0x1a8] sm:$0xff]
      %v1942 = vld [vmem:[%s4 + $0x1b0] sm:$0xff]
      %v1943 = vld [vmem:[%s4 + $0x1b8] sm:$0xff]
      %v1944 = vld [vmem:[%s4 + $0x1c0] sm:$0xff]
      %v1945 = vld [vmem:[%s4 + $0x1c8] sm:$0xff]
      %v1946 = vld [vmem:[%s4 + $0x1d0] sm:$0xff]
      %v1947 = vld [vmem:[%s4 + $0x1d8] sm:$0xff]
      %v1948 = vld [vmem:[%s4 + $0x1e0] sm:$0xff]
      %v1949 = vld [vmem:[%s4 + $0x1e8] sm:$0xff]
      %v1950 = vld [vmem:[%s4 + $0x1f0] sm:$0xff]
      %v1951 = vld [vmem:[%s4 + $0x1f8] sm:$0xff]
      %v1952 = vld [vmem:[%s4 + $0x200] sm:$0xff]
      %v1953 = vld [vmem:[%s4 + $0x208] sm:$0xff]
      %v1954 = vld [vmem:[%s4 + $0x210] sm:$0xff]
      %v1955 = vld [vmem:[%s4 + $0x218] sm:$0xff]
      %v1956 = vld [vmem:[%s4 + $0x220] sm:$0xff]
      %v1957 = vld [vmem:[%s4 + $0x228] sm:$0xff]
      %v1958 = vld [vmem:[%s4 + $0x230] sm:$0xff]
      %v1959 = vld [vmem:[%s4 + $0x238] sm:$0xff]
      %v1960 = vld [vmem:[%s4 + $0x240] sm:$0xff]
      %v1961 = vld [vmem:[%s4 + $0x248] sm:$0xff]
      %v1962 = vld [vmem:[%s4 + $0x250] sm:$0xff]
      %v1963 = vld [vmem:[%s4 + $0x258] sm:$0xff]
      %v1964 = vld [vmem:[%s4 + $0x260] sm:$0xff]
      %v1965 = vld [vmem:[%s4 + $0x268] sm:$0xff]
      %v1966 = vld [vmem:[%s4 + $0x270] sm:$0xff]
      %v1967 = vld [vmem:[%s4 + $0x278] sm:$0xff]
      %v1968 = vld [vmem:[%s4 + $0x280] sm:$0xff]
      %v1969 = vld [vmem:[%s4 + $0x288] sm:$0xff]
      %v1970 = vld [vmem:[%s4 + $0x290] sm:$0xff]
      %v1971 = vld [vmem:[%s4 + $0x298] sm:$0xff]
      %v1972 = vld [vmem:[%s4 + $0x2a0] sm:$0xff]
      %v1973 = vld [vmem:[%s4 + $0x2a8] sm:$0xff]
      %v1974 = vld [vmem:[%s4 + $0x2b0] sm:$0xff]
      %v1975 = vld [vmem:[%s4 + $0x2b8] sm:$0xff]
      %v1976 = vld [vmem:[%s4 + $0x2c0] sm:$0xff]
      %v1977 = vld [vmem:[%s4 + $0x2c8] sm:$0xff]
      %v1978 = vld [vmem:[%s4 + $0x2d0] sm:$0xff]
      %v1979 = vld [vmem:[%s4 + $0x2d8] sm:$0xff]
      %v1980 = vld [vmem:[%s4 + $0x2e0] sm:$0xff]
      %v1981 = vld [vmem:[%s4 + $0x2e8] sm:$0xff]
      %v1982 = vld [vmem:[%s4 + $0x2f0] sm:$0xff]
      %v1983 = vld [vmem:[%s4 + $0x2f8] sm:$0xff]
      %v1984 = vld [vmem:[%s4 + $0x300] sm:$0xff]
      %v1985 = vld [vmem:[%s4 + $0x308] sm:$0xff]
      %v1986 = vld [vmem:[%s4 + $0x310] sm:$0xff]
      %v1987 = vld [vmem:[%s4 + $0x318] sm:$0xff]
      %v1988 = vld [vmem:[%s4 + $0x320] sm:$0xff]
      %v1989 = vld [vmem:[%s4 + $0x328] sm:$0xff]
      %v1990 = vld [vmem:[%s4 + $0x330] sm:$0xff]
      %v1991 = vld [vmem:[%s4 + $0x338] sm:$0xff]
      %v1992 = vld [vmem:[%s4 + $0x340] sm:$0xff]
      %v1993 = vld [vmem:[%s4 + $0x348] sm:$0xff]
      %v1994 = vld [vmem:[%s4 + $0x350] sm:$0xff]
      %v1995 = vld [vmem:[%s4 + $0x358] sm:$0xff]
      %v1996 = vld [vmem:[%s4 + $0x360] sm:$0xff]
      %v1997 = vld [vmem:[%s4 + $0x368] sm:$0xff]
      %v1998 = vld [vmem:[%s4 + $0x370] sm:$0xff]
      %v1999 = vld [vmem:[%s4 + $0x378] sm:$0xff]
      %v2000 = vld [vmem:[%s4 + $0x380] sm:$0xff]
      %v2001 = vld [vmem:[%s4 + $0x388] sm:$0xff]
      %v2002 = vld [vmem:[%s4 + $0x390] sm:$0xff]
      %v2003 = vld [vmem:[%s4 + $0x398] sm:$0xff]
      %v2004 = vld [vmem:[%s4 + $0x3a0] sm:$0xff]
      %v2005 = vld [vmem:[%s4 + $0x3a8] sm:$0xff]
      %v2006 = vld [vmem:[%s4 + $0x3b0] sm:$0xff]
      %v2007 = vld [vmem:[%s4 + $0x3b8] sm:$0xff]
      %v2008 = vld [vmem:[%s4 + $0x3c0] sm:$0xff]
      %v2009 = vld [vmem:[%s4 + $0x3c8] sm:$0xff]
      %v2010 = vld [vmem:[%s4 + $0x3d0] sm:$0xff]
      %v2011 = vld [vmem:[%s4 + $0x3d8] sm:$0xff]
      %v2012 = vld [vmem:[%s4 + $0x3e0] sm:$0xff]
      %v2013 = vld [vmem:[%s4 + $0x3e8] sm:$0xff]
      %v2014 = vld [vmem:[%s4 + $0x3f0] sm:$0xff]
      %v2015 = vld [vmem:[%s4 + $0x3f8] sm:$0xff]
      %v2016 = vld [vmem:[%s4 + $0x400] sm:$0xff]
      %v2017 = vld [vmem:[%s4 + $0x408] sm:$0xff]
      %v2018 = vld [vmem:[%s4 + $0x410] sm:$0xff]
      %v2019 = vld [vmem:[%s4 + $0x418] sm:$0xff]
      %v2020 = vld [vmem:[%s4 + $0x420] sm:$0xff]
      %v2021 = vld [vmem:[%s4 + $0x428] sm:$0xff]
      %v2022 = vld [vmem:[%s4 + $0x430] sm:$0xff]
      %v2023 = vld [vmem:[%s4 + $0x438] sm:$0xff]
      %v2024 = vld [vmem:[%s4 + $0x440] sm:$0xff]
      %v2025 = vld [vmem:[%s4 + $0x448] sm:$0xff]
      %v2026 = vld [vmem:[%s4 + $0x450] sm:$0xff]
      %v2027 = vld [vmem:[%s4 + $0x458] sm:$0xff]
      %v2028 = vld [vmem:[%s4 + $0x460] sm:$0xff]
      %v2029 = vld [vmem:[%s4 + $0x468] sm:$0xff]
      %v2030 = vld [vmem:[%s4 + $0x470] sm:$0xff]
      %v2031 = vld [vmem:[%s4 + $0x478] sm:$0xff]
      %v2032 = vld [vmem:[%s4 + $0x480] sm:$0xff]
      %v2033 = vld [vmem:[%s4 + $0x488] sm:$0xff]
      %v2034 = vld [vmem:[%s4 + $0x490] sm:$0xff]
      %v2035 = vld [vmem:[%s4 + $0x498] sm:$0xff]
      %v2036 = vld [vmem:[%s4 + $0x4a0] sm:$0xff]
      %v2037 = vld [vmem:[%s4 + $0x4a8] sm:$0xff]
      %v2038 = vld [vmem:[%s4 + $0x4b0] sm:$0xff]
      %v2039 = vld [vmem:[%s4 + $0x4b8] sm:$0xff]
      %v2040 = vld [vmem:[%s4 + $0x4c0] sm:$0xff]
      %v2041 = vld [vmem:[%s4 + $0x4c8] sm:$0xff]
      %v2042 = vld [vmem:[%s4 + $0x4d0] sm:$0xff]
      %v2043 = vld [vmem:[%s4 + $0x4d8] sm:$0xff]
      %v2044 = vld [vmem:[%s4 + $0x4e0] sm:$0xff]
      %v2045 = vld [vmem:[%s4 + $0x4e8] sm:$0xff]
      %v2046 = vld [vmem:[%s4 + $0x4f0] sm:$0xff]
      %v2047 = vld [vmem:[%s4 + $0x4f8] sm:$0xff]
      %v2048 = vld [vmem:[%s4 + $0x500] sm:$0xff]
      %v2049 = vld [vmem:[%s4 + $0x508] sm:$0xff]
      %v2050 = vld [vmem:[%s4 + $0x510] sm:$0xff]
      %v2051 = vld [vmem:[%s4 + $0x518] sm:$0xff]
      %v2052 = vld [vmem:[%s4 + $0x520] sm:$0xff]
      %v2053 = vld [vmem:[%s4 + $0x528] sm:$0xff]
      %v2054 = vld [vmem:[%s4 + $0x530] sm:$0xff]
      %v2055 = vld [vmem:[%s4 + $0x538] sm:$0xff]
      %v2056 = vld [vmem:[%s4 + $0x540] sm:$0xff]
      %v2057 = vld [vmem:[%s4 + $0x548] sm:$0xff]
      %v2058 = vld [vmem:[%s4 + $0x550] sm:$0xff]
      %v2059 = vld [vmem:[%s4 + $0x558] sm:$0xff]
      %v2060 = vld [vmem:[%s4 + $0x560] sm:$0xff]
      %v2061 = vld [vmem:[%s4 + $0x568] sm:$0xff]
      %v2062 = vld [vmem:[%s4 + $0x570] sm:$0xff]
      %v2063 = vld [vmem:[%s4 + $0x578] sm:$0xff]
      %v2064 = vld [vmem:[%s4 + $0x580] sm:$0xff]
      %v2065 = vld [vmem:[%s4 + $0x588] sm:$0xff]
      %v2066 = vld [vmem:[%s4 + $0x590] sm:$0xff]
      %v2067 = vld [vmem:[%s4 + $0x598] sm:$0xff]
      %v2068 = vld [vmem:[%s4 + $0x5a0] sm:$0xff]
      %v2069 = vld [vmem:[%s4 + $0x5a8] sm:$0xff]
      %v2070 = vld [vmem:[%s4 + $0x5b0] sm:$0xff]
      %v2071 = vld [vmem:[%s4 + $0x5b8] sm:$0xff]
      %v2072 = vld [vmem:[%s4 + $0x5c0] sm:$0xff]
      %v2073 = vld [vmem:[%s4 + $0x5c8] sm:$0xff]
      %v2074 = vld [vmem:[%s4 + $0x5d0] sm:$0xff]
      %v2075 = vld [vmem:[%s4 + $0x5d8] sm:$0xff]
      %v2076 = vld [vmem:[%s4 + $0x5e0] sm:$0xff]
      %v2077 = vld [vmem:[%s4 + $0x5e8] sm:$0xff]
      %v2078 = vld [vmem:[%s4 + $0x5f0] sm:$0xff]
      %v2079 = vld [vmem:[%s4 + $0x5f8] sm:$0xff]
      %v2080 = vld [vmem:[%s4 + $0x600] sm:$0xff]
      %v2081 = vld [vmem:[%s4 + $0x608] sm:$0xff]
      %v2082 = vld [vmem:[%s4 + $0x610] sm:$0xff]
      %v2083 = vld [vmem:[%s4 + $0x618] sm:$0xff]
      %v2084 = vld [vmem:[%s4 + $0x620] sm:$0xff]
      %v2085 = vld [vmem:[%s4 + $0x628] sm:$0xff]
      %v2086 = vld [vmem:[%s4 + $0x630] sm:$0xff]
      %v2087 = vld [vmem:[%s4 + $0x638] sm:$0xff]
      %v2088 = vld [vmem:[%s4 + $0x640] sm:$0xff]
      %v2089 = vld [vmem:[%s4 + $0x648] sm:$0xff]
      %v2090 = vld [vmem:[%s4 + $0x650] sm:$0xff]
      %v2091 = vld [vmem:[%s4 + $0x658] sm:$0xff]
      %v2092 = vld [vmem:[%s4 + $0x660] sm:$0xff]
      %v2093 = vld [vmem:[%s4 + $0x668] sm:$0xff]
      %v2094 = vld [vmem:[%s4 + $0x670] sm:$0xff]
      %v2095 = vld [vmem:[%s4 + $0x678] sm:$0xff]
      %v2096 = vld [vmem:[%s4 + $0x680] sm:$0xff]
      %v2097 = vld [vmem:[%s4 + $0x688] sm:$0xff]
      %v2098 = vld [vmem:[%s4 + $0x690] sm:$0xff]
      %v2099 = vld [vmem:[%s4 + $0x698] sm:$0xff]
      %v2100 = vld [vmem:[%s4 + $0x6a0] sm:$0xff]
      %v2101 = vld [vmem:[%s4 + $0x6a8] sm:$0xff]
      %v2102 = vld [vmem:[%s4 + $0x6b0] sm:$0xff]
      %v2103 = vld [vmem:[%s4 + $0x6b8] sm:$0xff]
      %v2104 = vld [vmem:[%s4 + $0x6c0] sm:$0xff]
      %v2105 = vld [vmem:[%s4 + $0x6c8] sm:$0xff]
      %v2106 = vld [vmem:[%s4 + $0x6d0] sm:$0xff]
      %v2107 = vld [vmem:[%s4 + $0x6d8] sm:$0xff]
      %v2108 = vld [vmem:[%s4 + $0x6e0] sm:$0xff]
      %v2109 = vld [vmem:[%s4 + $0x6e8] sm:$0xff]
      %v2110 = vld [vmem:[%s4 + $0x6f0] sm:$0xff]
      %v2111 = vld [vmem:[%s4 + $0x6f8] sm:$0xff]
      %v2112 = vld [vmem:[%s4 + $0x700] sm:$0xff]
      %v2113 = vld [vmem:[%s4 + $0x708] sm:$0xff]
      %v2114 = vld [vmem:[%s4 + $0x710] sm:$0xff]
      %v2115 = vld [vmem:[%s4 + $0x718] sm:$0xff]
      %v2116 = vld [vmem:[%s4 + $0x720] sm:$0xff]
      %v2117 = vld [vmem:[%s4 + $0x728] sm:$0xff]
      %v2118 = vld [vmem:[%s4 + $0x730] sm:$0xff]
      %v2119 = vld [vmem:[%s4 + $0x738] sm:$0xff]
      %v2120 = vld [vmem:[%s4 + $0x740] sm:$0xff]
      %v2121 = vld [vmem:[%s4 + $0x748] sm:$0xff]
      %v2122 = vld [vmem:[%s4 + $0x750] sm:$0xff]
      %v2123 = vld [vmem:[%s4 + $0x758] sm:$0xff]
      %v2124 = vld [vmem:[%s4 + $0x760] sm:$0xff]
      %v2125 = vld [vmem:[%s4 + $0x768] sm:$0xff]
      %v2126 = vld [vmem:[%s4 + $0x770] sm:$0xff]
      %v2127 = vld [vmem:[%s4 + $0x778] sm:$0xff]
      %v2128 = vld [vmem:[%s4 + $0x780] sm:$0xff]
      %v2129 = vld [vmem:[%s4 + $0x788] sm:$0xff]
      %v2130 = vld [vmem:[%s4 + $0x790] sm:$0xff]
      %v2131 = vld [vmem:[%s4 + $0x798] sm:$0xff]
      %v2132 = vld [vmem:[%s4 + $0x7a0] sm:$0xff]
      %v2133 = vld [vmem:[%s4 + $0x7a8] sm:$0xff]
      %v2134 = vld [vmem:[%s4 + $0x7b0] sm:$0xff]
      %v2135 = vld [vmem:[%s4 + $0x7b8] sm:$0xff]
      %v2136 = vld [vmem:[%s4 + $0x7c0] sm:$0xff]
      %v2137 = vld [vmem:[%s4 + $0x7c8] sm:$0xff]
      %v2138 = vld [vmem:[%s4 + $0x7d0] sm:$0xff]
      %v2139 = vld [vmem:[%s4 + $0x7d8] sm:$0xff]
      %v2140 = vld [vmem:[%s4 + $0x7e0] sm:$0xff]
      %v2141 = vld [vmem:[%s4 + $0x7e8] sm:$0xff]
      %v2142 = vld [vmem:[%s4 + $0x7f0] sm:$0xff]
      %v2143 = vld [vmem:[%s4 + $0x7f8] sm:$0xff]
      %v2144 = vld [vmem:[%s4 + $0x800] sm:$0xff]
      %v2145 = vld [vmem:[%s4 + $0x808] sm:$0xff]
      %v2146 = vld [vmem:[%s4 + $0x810] sm:$0xff]
      %v2147 = vld [vmem:[%s4 + $0x818] sm:$0xff]
      %v2148 = vld [vmem:[%s4 + $0x820] sm:$0xff]
      %v2149 = vld [vmem:[%s4 + $0x828] sm:$0xff]
      %v2150 = vld [vmem:[%s4 + $0x830] sm:$0xff]
      %v2151 = vld [vmem:[%s4 + $0x838] sm:$0xff]
      %v2152 = vld [vmem:[%s4 + $0x840] sm:$0xff]
      %v2153 = vld [vmem:[%s4 + $0x848] sm:$0xff]
      %v2154 = vld [vmem:[%s4 + $0x850] sm:$0xff]
      %v2155 = vld [vmem:[%s4 + $0x858] sm:$0xff]
      %v2156 = vld [vmem:[%s4 + $0x860] sm:$0xff]
      %v2157 = vld [vmem:[%s4 + $0x868] sm:$0xff]
      %v2158 = vld [vmem:[%s4 + $0x870] sm:$0xff]
      %v2159 = vld [vmem:[%s4 + $0x878] sm:$0xff]
      %v2160 = vld [vmem:[%s4 + $0x880] sm:$0xff]
      %v2161 = vld [vmem:[%s4 + $0x888] sm:$0xff]
      %v2162 = vld [vmem:[%s4 + $0x890] sm:$0xff]
      %v2163 = vld [vmem:[%s4 + $0x898] sm:$0xff]
      %v2164 = vld [vmem:[%s4 + $0x8a0] sm:$0xff]
      %v2165 = vld [vmem:[%s4 + $0x8a8] sm:$0xff]
      %v2166 = vld [vmem:[%s4 + $0x8b0] sm:$0xff]
      %v2167 = vld [vmem:[%s4 + $0x8b8] sm:$0xff]
      %v2168 = vld [vmem:[%s4 + $0x8c0] sm:$0xff]
      %v2169 = vld [vmem:[%s4 + $0x8c8] sm:$0xff]
      %v2170 = vld [vmem:[%s4 + $0x8d0] sm:$0xff]
      %v2171 = vld [vmem:[%s4 + $0x8d8] sm:$0xff]
      %v2172 = vld [vmem:[%s4 + $0x8e0] sm:$0xff]
      %v2173 = vld [vmem:[%s4 + $0x8e8] sm:$0xff]
      %v2174 = vld [vmem:[%s4 + $0x8f0] sm:$0xff]
      %v2175 = vld [vmem:[%s4 + $0x8f8] sm:$0xff]
      %v2176 = vld [vmem:[%s4 + $0x900] sm:$0xff]
      %v2177 = vld [vmem:[%s4 + $0x908] sm:$0xff]
      %v2178 = vld [vmem:[%s4 + $0x910] sm:$0xff]
      %v2179 = vld [vmem:[%s4 + $0x918] sm:$0xff]
      %v2180 = vld [vmem:[%s4 + $0x920] sm:$0xff]
      %v2181 = vld [vmem:[%s4 + $0x928] sm:$0xff]
      %v2182 = vld [vmem:[%s4 + $0x930] sm:$0xff]
      %v2183 = vld [vmem:[%s4 + $0x938] sm:$0xff]
      %v2184 = vld [vmem:[%s4 + $0x940] sm:$0xff]
      %v2185 = vld [vmem:[%s4 + $0x948] sm:$0xff]
      %v2186 = vld [vmem:[%s4 + $0x950] sm:$0xff]
      %v2187 = vld [vmem:[%s4 + $0x958] sm:$0xff]
      %v2188 = vld [vmem:[%s4 + $0x960] sm:$0xff]
      %v2189 = vld [vmem:[%s4 + $0x968] sm:$0xff]
      %v2190 = vld [vmem:[%s4 + $0x970] sm:$0xff]
      %v2191 = vld [vmem:[%s4 + $0x978] sm:$0xff]
      %v2192 = vld [vmem:[%s4 + $0x980] sm:$0xff]
      %v2193 = vld [vmem:[%s4 + $0x988] sm:$0xff]
      %v2194 = vld [vmem:[%s4 + $0x990] sm:$0xff]
      %v2195 = vld [vmem:[%s4 + $0x998] sm:$0xff]
      %v2196 = vld [vmem:[%s4 + $0x9a0] sm:$0xff]
      %v2197 = vld [vmem:[%s4 + $0x9a8] sm:$0xff]
      %v2198 = vld [vmem:[%s4 + $0x9b0] sm:$0xff]
      %v2199 = vld [vmem:[%s4 + $0x9b8] sm:$0xff]
      %v2200 = vld [vmem:[%s4 + $0x9c0] sm:$0xff]
      %v2201 = vld [vmem:[%s4 + $0x9c8] sm:$0xff]
      %v2202 = vld [vmem:[%s4 + $0x9d0] sm:$0xff]
      %v2203 = vld [vmem:[%s4 + $0x9d8] sm:$0xff]
      %v2204 = vld [vmem:[%s4 + $0x9e0] sm:$0xff]
      %v2205 = vld [vmem:[%s4 + $0x9e8] sm:$0xff]
      %v2206 = vld [vmem:[%s4 + $0x9f0] sm:$0xff]
      %v2207 = vld [vmem:[%s4 + $0x9f8] sm:$0xff]
      %v2528 = vunpack.c.l.b16 %v1888
      %v2529 = vunpack.c.h.b16 %v1888
      %v2530 = vunpack.c.l.b16 %v1889
      %v2531 = vunpack.c.h.b16 %v1889
      %v2532 = vunpack.c.l.b16 %v1890
      %v2533 = vunpack.c.h.b16 %v1890
      %v2534 = vunpack.c.l.b16 %v1891
      %v2535 = vunpack.c.h.b16 %v1891
      %v2536 = vunpack.c.l.b16 %v1892
      %v2537 = vunpack.c.h.b16 %v1892
      %v2538 = vunpack.c.l.b16 %v1893
      %v2539 = vunpack.c.h.b16 %v1893
      %v2540 = vunpack.c.l.b16 %v1894
      %v2541 = vunpack.c.h.b16 %v1894
      %v2542 = vunpack.c.l.b16 %v1895
      %v2543 = vunpack.c.h.b16 %v1895
      %v2544 = vunpack.c.l.b16 %v1896
      %v2545 = vunpack.c.h.b16 %v1896
      %v2546 = vunpack.c.l.b16 %v1897
      %v2547 = vunpack.c.h.b16 %v1897
      %v2548 = vunpack.c.l.b16 %v1898
      %v2549 = vunpack.c.h.b16 %v1898
      %v2550 = vunpack.c.l.b16 %v1899
      %v2551 = vunpack.c.h.b16 %v1899
      %v2552 = vunpack.c.l.b16 %v1900
      %v2553 = vunpack.c.h.b16 %v1900
      %v2554 = vunpack.c.l.b16 %v1901
      %v2555 = vunpack.c.h.b16 %v1901
      %v2556 = vunpack.c.l.b16 %v1902
      %v2557 = vunpack.c.h.b16 %v1902
      %v2558 = vunpack.c.l.b16 %v1903
      %v2559 = vunpack.c.h.b16 %v1903
      %v2560 = vunpack.c.l.b16 %v1904
      %v2561 = vunpack.c.h.b16 %v1904
      %v2562 = vunpack.c.l.b16 %v1905
      %v2563 = vunpack.c.h.b16 %v1905
      %v2564 = vunpack.c.l.b16 %v1906
      %v2565 = vunpack.c.h.b16 %v1906
      %v2566 = vunpack.c.l.b16 %v1907
      %v2567 = vunpack.c.h.b16 %v1907
      %v2568 = vunpack.c.l.b16 %v1908
      %v2569 = vunpack.c.h.b16 %v1908
      %v2570 = vunpack.c.l.b16 %v1909
      %v2571 = vunpack.c.h.b16 %v1909
      %v2572 = vunpack.c.l.b16 %v1910
      %v2573 = vunpack.c.h.b16 %v1910
      %v2574 = vunpack.c.l.b16 %v1911
      %v2575 = vunpack.c.h.b16 %v1911
      %v2576 = vunpack.c.l.b16 %v1912
      %v2577 = vunpack.c.h.b16 %v1912
      %v2578 = vunpack.c.l.b16 %v1913
      %v2579 = vunpack.c.h.b16 %v1913
      %v2580 = vunpack.c.l.b16 %v1914
      %v2581 = vunpack.c.h.b16 %v1914
      %v2582 = vunpack.c.l.b16 %v1915
      %v2583 = vunpack.c.h.b16 %v1915
      %v2584 = vunpack.c.l.b16 %v1916
      %v2585 = vunpack.c.h.b16 %v1916
      %v2586 = vunpack.c.l.b16 %v1917
      %v2587 = vunpack.c.h.b16 %v1917
      %v2588 = vunpack.c.l.b16 %v1918
      %v2589 = vunpack.c.h.b16 %v1918
      %v2590 = vunpack.c.l.b16 %v1919
      %v2591 = vunpack.c.h.b16 %v1919
      %v2592 = vunpack.c.l.b16 %v1920
      %v2593 = vunpack.c.h.b16 %v1920
      %v2594 = vunpack.c.l.b16 %v1921
      %v2595 = vunpack.c.h.b16 %v1921
      %v2596 = vunpack.c.l.b16 %v1922
      %v2597 = vunpack.c.h.b16 %v1922
      %v2598 = vunpack.c.l.b16 %v1923
      %v2599 = vunpack.c.h.b16 %v1923
      %v2600 = vunpack.c.l.b16 %v1924
      %v2601 = vunpack.c.h.b16 %v1924
      %v2602 = vunpack.c.l.b16 %v1925
      %v2603 = vunpack.c.h.b16 %v1925
      %v2604 = vunpack.c.l.b16 %v1926
      %v2605 = vunpack.c.h.b16 %v1926
      %v2606 = vunpack.c.l.b16 %v1927
      %v2607 = vunpack.c.h.b16 %v1927
      %v2608 = vunpack.c.l.b16 %v1928
      %v2609 = vunpack.c.h.b16 %v1928
      %v2610 = vunpack.c.l.b16 %v1929
      %v2611 = vunpack.c.h.b16 %v1929
      %v2612 = vunpack.c.l.b16 %v1930
      %v2613 = vunpack.c.h.b16 %v1930
      %v2614 = vunpack.c.l.b16 %v1931
      %v2615 = vunpack.c.h.b16 %v1931
      %v2616 = vunpack.c.l.b16 %v1932
      %v2617 = vunpack.c.h.b16 %v1932
      %v2618 = vunpack.c.l.b16 %v1933
      %v2619 = vunpack.c.h.b16 %v1933
      %v2620 = vunpack.c.l.b16 %v1934
      %v2621 = vunpack.c.h.b16 %v1934
      %v2622 = vunpack.c.l.b16 %v1935
      %v2623 = vunpack.c.h.b16 %v1935
      %v2624 = vunpack.c.l.b16 %v1936
      %v2625 = vunpack.c.h.b16 %v1936
      %v2626 = vunpack.c.l.b16 %v1937
      %v2627 = vunpack.c.h.b16 %v1937
      %v2628 = vunpack.c.l.b16 %v1938
      %v2629 = vunpack.c.h.b16 %v1938
      %v2630 = vunpack.c.l.b16 %v1939
      %v2631 = vunpack.c.h.b16 %v1939
      %v2632 = vunpack.c.l.b16 %v1940
      %v2633 = vunpack.c.h.b16 %v1940
      %v2634 = vunpack.c.l.b16 %v1941
      %v2635 = vunpack.c.h.b16 %v1941
      %v2636 = vunpack.c.l.b16 %v1942
      %v2637 = vunpack.c.h.b16 %v1942
      %v2638 = vunpack.c.l.b16 %v1943
      %v2639 = vunpack.c.h.b16 %v1943
      %v2640 = vunpack.c.l.b16 %v1944
      %v2641 = vunpack.c.h.b16 %v1944
      %v2642 = vunpack.c.l.b16 %v1945
      %v2643 = vunpack.c.h.b16 %v1945
      %v2644 = vunpack.c.l.b16 %v1946
      %v2645 = vunpack.c.h.b16 %v1946
      %v2646 = vunpack.c.l.b16 %v1947
      %v2647 = vunpack.c.h.b16 %v1947
      %v2648 = vunpack.c.l.b16 %v1948
      %v2649 = vunpack.c.h.b16 %v1948
      %v2650 = vunpack.c.l.b16 %v1949
      %v2651 = vunpack.c.h.b16 %v1949
      %v2652 = vunpack.c.l.b16 %v1950
      %v2653 = vunpack.c.h.b16 %v1950
      %v2654 = vunpack.c.l.b16 %v1951
      %v2655 = vunpack.c.h.b16 %v1951
      %v2656 = vunpack.c.l.b16 %v1952
      %v2657 = vunpack.c.h.b16 %v1952
      %v2658 = vunpack.c.l.b16 %v1953
      %v2659 = vunpack.c.h.b16 %v1953
      %v2660 = vunpack.c.l.b16 %v1954
      %v2661 = vunpack.c.h.b16 %v1954
      %v2662 = vunpack.c.l.b16 %v1955
      %v2663 = vunpack.c.h.b16 %v1955
      %v2664 = vunpack.c.l.b16 %v1956
      %v2665 = vunpack.c.h.b16 %v1956
      %v2666 = vunpack.c.l.b16 %v1957
      %v2667 = vunpack.c.h.b16 %v1957
      %v2668 = vunpack.c.l.b16 %v1958
      %v2669 = vunpack.c.h.b16 %v1958
      %v2670 = vunpack.c.l.b16 %v1959
      %v2671 = vunpack.c.h.b16 %v1959
      %v2672 = vunpack.c.l.b16 %v1960
      %v2673 = vunpack.c.h.b16 %v1960
      %v2674 = vunpack.c.l.b16 %v1961
      %v2675 = vunpack.c.h.b16 %v1961
      %v2676 = vunpack.c.l.b16 %v1962
      %v2677 = vunpack.c.h.b16 %v1962
      %v2678 = vunpack.c.l.b16 %v1963
      %v2679 = vunpack.c.h.b16 %v1963
      %v2680 = vunpack.c.l.b16 %v1964
      %v2681 = vunpack.c.h.b16 %v1964
      %v2682 = vunpack.c.l.b16 %v1965
      %v2683 = vunpack.c.h.b16 %v1965
      %v2684 = vunpack.c.l.b16 %v1966
      %v2685 = vunpack.c.h.b16 %v1966
      %v2686 = vunpack.c.l.b16 %v1967
      %v2687 = vunpack.c.h.b16 %v1967
      %v2688 = vunpack.c.l.b16 %v1968
      %v2689 = vunpack.c.h.b16 %v1968
      %v2690 = vunpack.c.l.b16 %v1969
      %v2691 = vunpack.c.h.b16 %v1969
      %v2692 = vunpack.c.l.b16 %v1970
      %v2693 = vunpack.c.h.b16 %v1970
      %v2694 = vunpack.c.l.b16 %v1971
      %v2695 = vunpack.c.h.b16 %v1971
      %v2696 = vunpack.c.l.b16 %v1972
      %v2697 = vunpack.c.h.b16 %v1972
      %v2698 = vunpack.c.l.b16 %v1973
      %v2699 = vunpack.c.h.b16 %v1973
      %v2700 = vunpack.c.l.b16 %v1974
      %v2701 = vunpack.c.h.b16 %v1974
      %v2702 = vunpack.c.l.b16 %v1975
      %v2703 = vunpack.c.h.b16 %v1975
      %v2704 = vunpack.c.l.b16 %v1976
      %v2705 = vunpack.c.h.b16 %v1976
      %v2706 = vunpack.c.l.b16 %v1977
      %v2707 = vunpack.c.h.b16 %v1977
      %v2708 = vunpack.c.l.b16 %v1978
      %v2709 = vunpack.c.h.b16 %v1978
      %v2710 = vunpack.c.l.b16 %v1979
      %v2711 = vunpack.c.h.b16 %v1979
      %v2712 = vunpack.c.l.b16 %v1980
      %v2713 = vunpack.c.h.b16 %v1980
      %v2714 = vunpack.c.l.b16 %v1981
      %v2715 = vunpack.c.h.b16 %v1981
      %v2716 = vunpack.c.l.b16 %v1982
      %v2717 = vunpack.c.h.b16 %v1982
      %v2718 = vunpack.c.l.b16 %v1983
      %v2719 = vunpack.c.h.b16 %v1983
      %v2720 = vunpack.c.l.b16 %v1984
      %v2721 = vunpack.c.h.b16 %v1984
      %v2722 = vunpack.c.l.b16 %v1985
      %v2723 = vunpack.c.h.b16 %v1985
      %v2724 = vunpack.c.l.b16 %v1986
      %v2725 = vunpack.c.h.b16 %v1986
      %v2726 = vunpack.c.l.b16 %v1987
      %v2727 = vunpack.c.h.b16 %v1987
      %v2728 = vunpack.c.l.b16 %v1988
      %v2729 = vunpack.c.h.b16 %v1988
      %v2730 = vunpack.c.l.b16 %v1989
      %v2731 = vunpack.c.h.b16 %v1989
      %v2732 = vunpack.c.l.b16 %v1990
      %v2733 = vunpack.c.h.b16 %v1990
      %v2734 = vunpack.c.l.b16 %v1991
      %v2735 = vunpack.c.h.b16 %v1991
      %v2736 = vunpack.c.l.b16 %v1992
      %v2737 = vunpack.c.h.b16 %v1992
      %v2738 = vunpack.c.l.b16 %v1993
      %v2739 = vunpack.c.h.b16 %v1993
      %v2740 = vunpack.c.l.b16 %v1994
      %v2741 = vunpack.c.h.b16 %v1994
      %v2742 = vunpack.c.l.b16 %v1995
      %v2743 = vunpack.c.h.b16 %v1995
      %v2744 = vunpack.c.l.b16 %v1996
      %v2745 = vunpack.c.h.b16 %v1996
      %v2746 = vunpack.c.l.b16 %v1997
      %v2747 = vunpack.c.h.b16 %v1997
      %v2748 = vunpack.c.l.b16 %v1998
      %v2749 = vunpack.c.h.b16 %v1998
      %v2750 = vunpack.c.l.b16 %v1999
      %v2751 = vunpack.c.h.b16 %v1999
      %v2752 = vunpack.c.l.b16 %v2000
      %v2753 = vunpack.c.h.b16 %v2000
      %v2754 = vunpack.c.l.b16 %v2001
      %v2755 = vunpack.c.h.b16 %v2001
      %v2756 = vunpack.c.l.b16 %v2002
      %v2757 = vunpack.c.h.b16 %v2002
      %v2758 = vunpack.c.l.b16 %v2003
      %v2759 = vunpack.c.h.b16 %v2003
      %v2760 = vunpack.c.l.b16 %v2004
      %v2761 = vunpack.c.h.b16 %v2004
      %v2762 = vunpack.c.l.b16 %v2005
      %v2763 = vunpack.c.h.b16 %v2005
      %v2764 = vunpack.c.l.b16 %v2006
      %v2765 = vunpack.c.h.b16 %v2006
      %v2766 = vunpack.c.l.b16 %v2007
      %v2767 = vunpack.c.h.b16 %v2007
      %v2768 = vunpack.c.l.b16 %v2008
      %v2769 = vunpack.c.h.b16 %v2008
      %v2770 = vunpack.c.l.b16 %v2009
      %v2771 = vunpack.c.h.b16 %v2009
      %v2772 = vunpack.c.l.b16 %v2010
      %v2773 = vunpack.c.h.b16 %v2010
      %v2774 = vunpack.c.l.b16 %v2011
      %v2775 = vunpack.c.h.b16 %v2011
      %v2776 = vunpack.c.l.b16 %v2012
      %v2777 = vunpack.c.h.b16 %v2012
      %v2778 = vunpack.c.l.b16 %v2013
      %v2779 = vunpack.c.h.b16 %v2013
      %v2780 = vunpack.c.l.b16 %v2014
      %v2781 = vunpack.c.h.b16 %v2014
      %v2782 = vunpack.c.l.b16 %v2015
      %v2783 = vunpack.c.h.b16 %v2015
      %v2784 = vunpack.c.l.b16 %v2016
      %v2785 = vunpack.c.h.b16 %v2016
      %v2786 = vunpack.c.l.b16 %v2017
      %v2787 = vunpack.c.h.b16 %v2017
      %v2788 = vunpack.c.l.b16 %v2018
      %v2789 = vunpack.c.h.b16 %v2018
      %v2790 = vunpack.c.l.b16 %v2019
      %v2791 = vunpack.c.h.b16 %v2019
      %v2792 = vunpack.c.l.b16 %v2020
      %v2793 = vunpack.c.h.b16 %v2020
      %v2794 = vunpack.c.l.b16 %v2021
      %v2795 = vunpack.c.h.b16 %v2021
      %v2796 = vunpack.c.l.b16 %v2022
      %v2797 = vunpack.c.h.b16 %v2022
      %v2798 = vunpack.c.l.b16 %v2023
      %v2799 = vunpack.c.h.b16 %v2023
      %v2800 = vunpack.c.l.b16 %v2024
      %v2801 = vunpack.c.h.b16 %v2024
      %v2802 = vunpack.c.l.b16 %v2025
      %v2803 = vunpack.c.h.b16 %v2025
      %v2804 = vunpack.c.l.b16 %v2026
      %v2805 = vunpack.c.h.b16 %v2026
      %v2806 = vunpack.c.l.b16 %v2027
      %v2807 = vunpack.c.h.b16 %v2027
      %v2808 = vunpack.c.l.b16 %v2028
      %v2809 = vunpack.c.h.b16 %v2028
      %v2810 = vunpack.c.l.b16 %v2029
      %v2811 = vunpack.c.h.b16 %v2029
      %v2812 = vunpack.c.l.b16 %v2030
      %v2813 = vunpack.c.h.b16 %v2030
      %v2814 = vunpack.c.l.b16 %v2031
      %v2815 = vunpack.c.h.b16 %v2031
      %v2816 = vunpack.c.l.b16 %v2032
      %v2817 = vunpack.c.h.b16 %v2032
      %v2818 = vunpack.c.l.b16 %v2033
      %v2819 = vunpack.c.h.b16 %v2033
      %v2820 = vunpack.c.l.b16 %v2034
      %v2821 = vunpack.c.h.b16 %v2034
      %v2822 = vunpack.c.l.b16 %v2035
      %v2823 = vunpack.c.h.b16 %v2035
      %v2824 = vunpack.c.l.b16 %v2036
      %v2825 = vunpack.c.h.b16 %v2036
      %v2826 = vunpack.c.l.b16 %v2037
      %v2827 = vunpack.c.h.b16 %v2037
      %v2828 = vunpack.c.l.b16 %v2038
      %v2829 = vunpack.c.h.b16 %v2038
      %v2830 = vunpack.c.l.b16 %v2039
      %v2831 = vunpack.c.h.b16 %v2039
      %v2832 = vunpack.c.l.b16 %v2040
      %v2833 = vunpack.c.h.b16 %v2040
      %v2834 = vunpack.c.l.b16 %v2041
      %v2835 = vunpack.c.h.b16 %v2041
      %v2836 = vunpack.c.l.b16 %v2042
      %v2837 = vunpack.c.h.b16 %v2042
      %v2838 = vunpack.c.l.b16 %v2043
      %v2839 = vunpack.c.h.b16 %v2043
      %v2840 = vunpack.c.l.b16 %v2044
      %v2841 = vunpack.c.h.b16 %v2044
      %v2842 = vunpack.c.l.b16 %v2045
      %v2843 = vunpack.c.h.b16 %v2045
      %v2844 = vunpack.c.l.b16 %v2046
      %v2845 = vunpack.c.h.b16 %v2046
      %v2846 = vunpack.c.l.b16 %v2047
      %v2847 = vunpack.c.h.b16 %v2047
      %v2848 = vunpack.c.l.b16 %v2048
      %v2849 = vunpack.c.h.b16 %v2048
      %v2850 = vunpack.c.l.b16 %v2049
      %v2851 = vunpack.c.h.b16 %v2049
      %v2852 = vunpack.c.l.b16 %v2050
      %v2853 = vunpack.c.h.b16 %v2050
      %v2854 = vunpack.c.l.b16 %v2051
      %v2855 = vunpack.c.h.b16 %v2051
      %v2856 = vunpack.c.l.b16 %v2052
      %v2857 = vunpack.c.h.b16 %v2052
      %v2858 = vunpack.c.l.b16 %v2053
      %v2859 = vunpack.c.h.b16 %v2053
      %v2860 = vunpack.c.l.b16 %v2054
      %v2861 = vunpack.c.h.b16 %v2054
      %v2862 = vunpack.c.l.b16 %v2055
      %v2863 = vunpack.c.h.b16 %v2055
      %v2864 = vunpack.c.l.b16 %v2056
      %v2865 = vunpack.c.h.b16 %v2056
      %v2866 = vunpack.c.l.b16 %v2057
      %v2867 = vunpack.c.h.b16 %v2057
      %v2868 = vunpack.c.l.b16 %v2058
      %v2869 = vunpack.c.h.b16 %v2058
      %v2870 = vunpack.c.l.b16 %v2059
      %v2871 = vunpack.c.h.b16 %v2059
      %v2872 = vunpack.c.l.b16 %v2060
      %v2873 = vunpack.c.h.b16 %v2060
      %v2874 = vunpack.c.l.b16 %v2061
      %v2875 = vunpack.c.h.b16 %v2061
      %v2876 = vunpack.c.l.b16 %v2062
      %v2877 = vunpack.c.h.b16 %v2062
      %v2878 = vunpack.c.l.b16 %v2063
      %v2879 = vunpack.c.h.b16 %v2063
      %v2880 = vunpack.c.l.b16 %v2064
      %v2881 = vunpack.c.h.b16 %v2064
      %v2882 = vunpack.c.l.b16 %v2065
      %v2883 = vunpack.c.h.b16 %v2065
      %v2884 = vunpack.c.l.b16 %v2066
      %v2885 = vunpack.c.h.b16 %v2066
      %v2886 = vunpack.c.l.b16 %v2067
      %v2887 = vunpack.c.h.b16 %v2067
      %v2888 = vunpack.c.l.b16 %v2068
      %v2889 = vunpack.c.h.b16 %v2068
      %v2890 = vunpack.c.l.b16 %v2069
      %v2891 = vunpack.c.h.b16 %v2069
      %v2892 = vunpack.c.l.b16 %v2070
      %v2893 = vunpack.c.h.b16 %v2070
      %v2894 = vunpack.c.l.b16 %v2071
      %v2895 = vunpack.c.h.b16 %v2071
      %v2896 = vunpack.c.l.b16 %v2072
      %v2897 = vunpack.c.h.b16 %v2072
      %v2898 = vunpack.c.l.b16 %v2073
      %v2899 = vunpack.c.h.b16 %v2073
      %v2900 = vunpack.c.l.b16 %v2074
      %v2901 = vunpack.c.h.b16 %v2074
      %v2902 = vunpack.c.l.b16 %v2075
      %v2903 = vunpack.c.h.b16 %v2075
      %v2904 = vunpack.c.l.b16 %v2076
      %v2905 = vunpack.c.h.b16 %v2076
      %v2906 = vunpack.c.l.b16 %v2077
      %v2907 = vunpack.c.h.b16 %v2077
      %v2908 = vunpack.c.l.b16 %v2078
      %v2909 = vunpack.c.h.b16 %v2078
      %v2910 = vunpack.c.l.b16 %v2079
      %v2911 = vunpack.c.h.b16 %v2079
      %v2912 = vunpack.c.l.b16 %v2080
      %v2913 = vunpack.c.h.b16 %v2080
      %v2914 = vunpack.c.l.b16 %v2081
      %v2915 = vunpack.c.h.b16 %v2081
      %v2916 = vunpack.c.l.b16 %v2082
      %v2917 = vunpack.c.h.b16 %v2082
      %v2918 = vunpack.c.l.b16 %v2083
      %v2919 = vunpack.c.h.b16 %v2083
      %v2920 = vunpack.c.l.b16 %v2084
      %v2921 = vunpack.c.h.b16 %v2084
      %v2922 = vunpack.c.l.b16 %v2085
      %v2923 = vunpack.c.h.b16 %v2085
      %v2924 = vunpack.c.l.b16 %v2086
      %v2925 = vunpack.c.h.b16 %v2086
      %v2926 = vunpack.c.l.b16 %v2087
      %v2927 = vunpack.c.h.b16 %v2087
      %v2928 = vunpack.c.l.b16 %v2088
      %v2929 = vunpack.c.h.b16 %v2088
      %v2930 = vunpack.c.l.b16 %v2089
      %v2931 = vunpack.c.h.b16 %v2089
      %v2932 = vunpack.c.l.b16 %v2090
      %v2933 = vunpack.c.h.b16 %v2090
      %v2934 = vunpack.c.l.b16 %v2091
      %v2935 = vunpack.c.h.b16 %v2091
      %v2936 = vunpack.c.l.b16 %v2092
      %v2937 = vunpack.c.h.b16 %v2092
      %v2938 = vunpack.c.l.b16 %v2093
      %v2939 = vunpack.c.h.b16 %v2093
      %v2940 = vunpack.c.l.b16 %v2094
      %v2941 = vunpack.c.h.b16 %v2094
      %v2942 = vunpack.c.l.b16 %v2095
      %v2943 = vunpack.c.h.b16 %v2095
      %v2944 = vunpack.c.l.b16 %v2096
      %v2945 = vunpack.c.h.b16 %v2096
      %v2946 = vunpack.c.l.b16 %v2097
      %v2947 = vunpack.c.h.b16 %v2097
      %v2948 = vunpack.c.l.b16 %v2098
      %v2949 = vunpack.c.h.b16 %v2098
      %v2950 = vunpack.c.l.b16 %v2099
      %v2951 = vunpack.c.h.b16 %v2099
      %v2952 = vunpack.c.l.b16 %v2100
      %v2953 = vunpack.c.h.b16 %v2100
      %v2954 = vunpack.c.l.b16 %v2101
      %v2955 = vunpack.c.h.b16 %v2101
      %v2956 = vunpack.c.l.b16 %v2102
      %v2957 = vunpack.c.h.b16 %v2102
      %v2958 = vunpack.c.l.b16 %v2103
      %v2959 = vunpack.c.h.b16 %v2103
      %v2960 = vunpack.c.l.b16 %v2104
      %v2961 = vunpack.c.h.b16 %v2104
      %v2962 = vunpack.c.l.b16 %v2105
      %v2963 = vunpack.c.h.b16 %v2105
      %v2964 = vunpack.c.l.b16 %v2106
      %v2965 = vunpack.c.h.b16 %v2106
      %v2966 = vunpack.c.l.b16 %v2107
      %v2967 = vunpack.c.h.b16 %v2107
      %v2968 = vunpack.c.l.b16 %v2108
      %v2969 = vunpack.c.h.b16 %v2108
      %v2970 = vunpack.c.l.b16 %v2109
      %v2971 = vunpack.c.h.b16 %v2109
      %v2972 = vunpack.c.l.b16 %v2110
      %v2973 = vunpack.c.h.b16 %v2110
      %v2974 = vunpack.c.l.b16 %v2111
      %v2975 = vunpack.c.h.b16 %v2111
      %v2976 = vunpack.c.l.b16 %v2112
      %v2977 = vunpack.c.h.b16 %v2112
      %v2978 = vunpack.c.l.b16 %v2113
      %v2979 = vunpack.c.h.b16 %v2113
      %v2980 = vunpack.c.l.b16 %v2114
      %v2981 = vunpack.c.h.b16 %v2114
      %v2982 = vunpack.c.l.b16 %v2115
      %v2983 = vunpack.c.h.b16 %v2115
      %v2984 = vunpack.c.l.b16 %v2116
      %v2985 = vunpack.c.h.b16 %v2116
      %v2986 = vunpack.c.l.b16 %v2117
      %v2987 = vunpack.c.h.b16 %v2117
      %v2988 = vunpack.c.l.b16 %v2118
      %v2989 = vunpack.c.h.b16 %v2118
      %v2990 = vunpack.c.l.b16 %v2119
      %v2991 = vunpack.c.h.b16 %v2119
      %v2992 = vunpack.c.l.b16 %v2120
      %v2993 = vunpack.c.h.b16 %v2120
      %v2994 = vunpack.c.l.b16 %v2121
      %v2995 = vunpack.c.h.b16 %v2121
      %v2996 = vunpack.c.l.b16 %v2122
      %v2997 = vunpack.c.h.b16 %v2122
      %v2998 = vunpack.c.l.b16 %v2123
      %v2999 = vunpack.c.h.b16 %v2123
      %v3000 = vunpack.c.l.b16 %v2124
      %v3001 = vunpack.c.h.b16 %v2124
      %v3002 = vunpack.c.l.b16 %v2125
      %v3003 = vunpack.c.h.b16 %v2125
      %v3004 = vunpack.c.l.b16 %v2126
      %v3005 = vunpack.c.h.b16 %v2126
      %v3006 = vunpack.c.l.b16 %v2127
      %v3007 = vunpack.c.h.b16 %v2127
      %v3008 = vunpack.c.l.b16 %v2128
      %v3009 = vunpack.c.h.b16 %v2128
      %v3010 = vunpack.c.l.b16 %v2129
      %v3011 = vunpack.c.h.b16 %v2129
      %v3012 = vunpack.c.l.b16 %v2130
      %v3013 = vunpack.c.h.b16 %v2130
      %v3014 = vunpack.c.l.b16 %v2131
      %v3015 = vunpack.c.h.b16 %v2131
      %v3016 = vunpack.c.l.b16 %v2132
      %v3017 = vunpack.c.h.b16 %v2132
      %v3018 = vunpack.c.l.b16 %v2133
      %v3019 = vunpack.c.h.b16 %v2133
      %v3020 = vunpack.c.l.b16 %v2134
      %v3021 = vunpack.c.h.b16 %v2134
      %v3022 = vunpack.c.l.b16 %v2135
      %v3023 = vunpack.c.h.b16 %v2135
      %v3024 = vunpack.c.l.b16 %v2136
      %v3025 = vunpack.c.h.b16 %v2136
      %v3026 = vunpack.c.l.b16 %v2137
      %v3027 = vunpack.c.h.b16 %v2137
      %v3028 = vunpack.c.l.b16 %v2138
      %v3029 = vunpack.c.h.b16 %v2138
      %v3030 = vunpack.c.l.b16 %v2139
      %v3031 = vunpack.c.h.b16 %v2139
      %v3032 = vunpack.c.l.b16 %v2140
      %v3033 = vunpack.c.h.b16 %v2140
      %v3034 = vunpack.c.l.b16 %v2141
      %v3035 = vunpack.c.h.b16 %v2141
      %v3036 = vunpack.c.l.b16 %v2142
      %v3037 = vunpack.c.h.b16 %v2142
      %v3038 = vunpack.c.l.b16 %v2143
      %v3039 = vunpack.c.h.b16 %v2143
      %v3040 = vunpack.c.l.b16 %v2144
      %v3041 = vunpack.c.h.b16 %v2144
      %v3042 = vunpack.c.l.b16 %v2145
      %v3043 = vunpack.c.h.b16 %v2145
      %v3044 = vunpack.c.l.b16 %v2146
      %v3045 = vunpack.c.h.b16 %v2146
      %v3046 = vunpack.c.l.b16 %v2147
      %v3047 = vunpack.c.h.b16 %v2147
      %v3048 = vunpack.c.l.b16 %v2148
      %v3049 = vunpack.c.h.b16 %v2148
      %v3050 = vunpack.c.l.b16 %v2149
      %v3051 = vunpack.c.h.b16 %v2149
      %v3052 = vunpack.c.l.b16 %v2150
      %v3053 = vunpack.c.h.b16 %v2150
      %v3054 = vunpack.c.l.b16 %v2151
      %v3055 = vunpack.c.h.b16 %v2151
      %v3056 = vunpack.c.l.b16 %v2152
      %v3057 = vunpack.c.h.b16 %v2152
      %v3058 = vunpack.c.l.b16 %v2153
      %v3059 = vunpack.c.h.b16 %v2153
      %v3060 = vunpack.c.l.b16 %v2154
      %v3061 = vunpack.c.h.b16 %v2154
      %v3062 = vunpack.c.l.b16 %v2155
      %v3063 = vunpack.c.h.b16 %v2155
      %v3064 = vunpack.c.l.b16 %v2156
      %v3065 = vunpack.c.h.b16 %v2156
      %v3066 = vunpack.c.l.b16 %v2157
      %v3067 = vunpack.c.h.b16 %v2157
      %v3068 = vunpack.c.l.b16 %v2158
      %v3069 = vunpack.c.h.b16 %v2158
      %v3070 = vunpack.c.l.b16 %v2159
      %v3071 = vunpack.c.h.b16 %v2159
      %v3072 = vunpack.c.l.b16 %v2160
      %v3073 = vunpack.c.h.b16 %v2160
      %v3074 = vunpack.c.l.b16 %v2161
      %v3075 = vunpack.c.h.b16 %v2161
      %v3076 = vunpack.c.l.b16 %v2162
      %v3077 = vunpack.c.h.b16 %v2162
      %v3078 = vunpack.c.l.b16 %v2163
      %v3079 = vunpack.c.h.b16 %v2163
      %v3080 = vunpack.c.l.b16 %v2164
      %v3081 = vunpack.c.h.b16 %v2164
      %v3082 = vunpack.c.l.b16 %v2165
      %v3083 = vunpack.c.h.b16 %v2165
      %v3084 = vunpack.c.l.b16 %v2166
      %v3085 = vunpack.c.h.b16 %v2166
      %v3086 = vunpack.c.l.b16 %v2167
      %v3087 = vunpack.c.h.b16 %v2167
      %v3088 = vunpack.c.l.b16 %v2168
      %v3089 = vunpack.c.h.b16 %v2168
      %v3090 = vunpack.c.l.b16 %v2169
      %v3091 = vunpack.c.h.b16 %v2169
      %v3092 = vunpack.c.l.b16 %v2170
      %v3093 = vunpack.c.h.b16 %v2170
      %v3094 = vunpack.c.l.b16 %v2171
      %v3095 = vunpack.c.h.b16 %v2171
      %v3096 = vunpack.c.l.b16 %v2172
      %v3097 = vunpack.c.h.b16 %v2172
      %v3098 = vunpack.c.l.b16 %v2173
      %v3099 = vunpack.c.h.b16 %v2173
      %v3100 = vunpack.c.l.b16 %v2174
      %v3101 = vunpack.c.h.b16 %v2174
      %v3102 = vunpack.c.l.b16 %v2175
      %v3103 = vunpack.c.h.b16 %v2175
      %v3104 = vunpack.c.l.b16 %v2176
      %v3105 = vunpack.c.h.b16 %v2176
      %v3106 = vunpack.c.l.b16 %v2177
      %v3107 = vunpack.c.h.b16 %v2177
      %v3108 = vunpack.c.l.b16 %v2178
      %v3109 = vunpack.c.h.b16 %v2178
      %v3110 = vunpack.c.l.b16 %v2179
      %v3111 = vunpack.c.h.b16 %v2179
      %v3112 = vunpack.c.l.b16 %v2180
      %v3113 = vunpack.c.h.b16 %v2180
      %v3114 = vunpack.c.l.b16 %v2181
      %v3115 = vunpack.c.h.b16 %v2181
      %v3116 = vunpack.c.l.b16 %v2182
      %v3117 = vunpack.c.h.b16 %v2182
      %v3118 = vunpack.c.l.b16 %v2183
      %v3119 = vunpack.c.h.b16 %v2183
      %v3120 = vunpack.c.l.b16 %v2184
      %v3121 = vunpack.c.h.b16 %v2184
      %v3122 = vunpack.c.l.b16 %v2185
      %v3123 = vunpack.c.h.b16 %v2185
      %v3124 = vunpack.c.l.b16 %v2186
      %v3125 = vunpack.c.h.b16 %v2186
      %v3126 = vunpack.c.l.b16 %v2187
      %v3127 = vunpack.c.h.b16 %v2187
      %v3128 = vunpack.c.l.b16 %v2188
      %v3129 = vunpack.c.h.b16 %v2188
      %v3130 = vunpack.c.l.b16 %v2189
      %v3131 = vunpack.c.h.b16 %v2189
      %v3132 = vunpack.c.l.b16 %v2190
      %v3133 = vunpack.c.h.b16 %v2190
      %v3134 = vunpack.c.l.b16 %v2191
      %v3135 = vunpack.c.h.b16 %v2191
      %v3136 = vunpack.c.l.b16 %v2192
      %v3137 = vunpack.c.h.b16 %v2192
      %v3138 = vunpack.c.l.b16 %v2193
      %v3139 = vunpack.c.h.b16 %v2193
      %v3140 = vunpack.c.l.b16 %v2194
      %v3141 = vunpack.c.h.b16 %v2194
      %v3142 = vunpack.c.l.b16 %v2195
      %v3143 = vunpack.c.h.b16 %v2195
      %v3144 = vunpack.c.l.b16 %v2196
      %v3145 = vunpack.c.h.b16 %v2196
      %v3146 = vunpack.c.l.b16 %v2197
      %v3147 = vunpack.c.h.b16 %v2197
      %v3148 = vunpack.c.l.b16 %v2198
      %v3149 = vunpack.c.h.b16 %v2198
      %v3150 = vunpack.c.l.b16 %v2199
      %v3151 = vunpack.c.h.b16 %v2199
      %v3152 = vunpack.c.l.b16 %v2200
      %v3153 = vunpack.c.h.b16 %v2200
      %v3154 = vunpack.c.l.b16 %v2201
      %v3155 = vunpack.c.h.b16 %v2201
      %v3156 = vunpack.c.l.b16 %v2202
      %v3157 = vunpack.c.h.b16 %v2202
      %v3158 = vunpack.c.l.b16 %v2203
      %v3159 = vunpack.c.h.b16 %v2203
      %v3160 = vunpack.c.l.b16 %v2204
      %v3161 = vunpack.c.h.b16 %v2204
      %v3162 = vunpack.c.l.b16 %v2205
      %v3163 = vunpack.c.h.b16 %v2205
      %v3164 = vunpack.c.l.b16 %v2206
      %v3165 = vunpack.c.h.b16 %v2206
      %v3166 = vunpack.c.l.b16 %v2207
      %v3167 = vunpack.c.h.b16 %v2207
      %v3168 = vpack.c.b16 %v2538, %v2528
      %v3169 = vpack.c.b16 %v2539, %v2529
      %v3170 = vpack.c.b16 %v2540, %v2530
      %v3171 = vpack.c.b16 %v2541, %v2531
      %v3172 = vpack.c.b16 %v2542, %v2532
      %v3173 = vpack.c.b16 %v2543, %v2533
      %v3174 = vpack.c.b16 %v2544, %v2534
      %v3175 = vpack.c.b16 %v2545, %v2535
      %v3176 = vpack.c.b16 %v2546, %v2536
      %v3177 = vpack.c.b16 %v2547, %v2537
      %v3178 = vpack.c.b16 %v2558, %v2548
      %v3179 = vpack.c.b16 %v2559, %v2549
      %v3180 = vpack.c.b16 %v2560, %v2550
      %v3181 = vpack.c.b16 %v2561, %v2551
      %v3182 = vpack.c.b16 %v2562, %v2552
      %v3183 = vpack.c.b16 %v2563, %v2553
      %v3184 = vpack.c.b16 %v2564, %v2554
      %v3185 = vpack.c.b16 %v2565, %v2555
      %v3186 = vpack.c.b16 %v2566, %v2556
      %v3187 = vpack.c.b16 %v2567, %v2557
      %v3188 = vpack.c.b16 %v2578, %v2568
      %v3189 = vpack.c.b16 %v2579, %v2569
      %v3190 = vpack.c.b16 %v2580, %v2570
      %v3191 = vpack.c.b16 %v2581, %v2571
      %v3192 = vpack.c.b16 %v2582, %v2572
      %v3193 = vpack.c.b16 %v2583, %v2573
      %v3194 = vpack.c.b16 %v2584, %v2574
      %v3195 = vpack.c.b16 %v2585, %v2575
      %v3196 = vpack.c.b16 %v2586, %v2576
      %v3197 = vpack.c.b16 %v2587, %v2577
      %v3198 = vpack.c.b16 %v2598, %v2588
      %v3199 = vpack.c.b16 %v2599, %v2589
      %v3200 = vpack.c.b16 %v2600, %v2590
      %v3201 = vpack.c.b16 %v2601, %v2591
      %v3202 = vpack.c.b16 %v2602, %v2592
      %v3203 = vpack.c.b16 %v2603, %v2593
      %v3204 = vpack.c.b16 %v2604, %v2594
      %v3205 = vpack.c.b16 %v2605, %v2595
      %v3206 = vpack.c.b16 %v2606, %v2596
      %v3207 = vpack.c.b16 %v2607, %v2597
      %v3208 = vpack.c.b16 %v2618, %v2608
      %v3209 = vpack.c.b16 %v2619, %v2609
      %v3210 = vpack.c.b16 %v2620, %v2610
      %v3211 = vpack.c.b16 %v2621, %v2611
      %v3212 = vpack.c.b16 %v2622, %v2612
      %v3213 = vpack.c.b16 %v2623, %v2613
      %v3214 = vpack.c.b16 %v2624, %v2614
      %v3215 = vpack.c.b16 %v2625, %v2615
      %v3216 = vpack.c.b16 %v2626, %v2616
      %v3217 = vpack.c.b16 %v2627, %v2617
      %v3218 = vpack.c.b16 %v2638, %v2628
      %v3219 = vpack.c.b16 %v2639, %v2629
      %v3220 = vpack.c.b16 %v2640, %v2630
      %v3221 = vpack.c.b16 %v2641, %v2631
      %v3222 = vpack.c.b16 %v2642, %v2632
      %v3223 = vpack.c.b16 %v2643, %v2633
      %v3224 = vpack.c.b16 %v2644, %v2634
      %v3225 = vpack.c.b16 %v2645, %v2635
      %v3226 = vpack.c.b16 %v2646, %v2636
      %v3227 = vpack.c.b16 %v2647, %v2637
      %v3228 = vpack.c.b16 %v2658, %v2648
      %v3229 = vpack.c.b16 %v2659, %v2649
      %v3230 = vpack.c.b16 %v2660, %v2650
      %v3231 = vpack.c.b16 %v2661, %v2651
      %v3232 = vpack.c.b16 %v2662, %v2652
      %v3233 = vpack.c.b16 %v2663, %v2653
      %v3234 = vpack.c.b16 %v2664, %v2654
      %v3235 = vpack.c.b16 %v2665, %v2655
      %v3236 = vpack.c.b16 %v2666, %v2656
      %v3237 = vpack.c.b16 %v2667, %v2657
      %v3238 = vpack.c.b16 %v2678, %v2668
      %v3239 = vpack.c.b16 %v2679, %v2669
      %v3240 = vpack.c.b16 %v2680, %v2670
      %v3241 = vpack.c.b16 %v2681, %v2671
      %v3242 = vpack.c.b16 %v2682, %v2672
      %v3243 = vpack.c.b16 %v2683, %v2673
      %v3244 = vpack.c.b16 %v2684, %v2674
      %v3245 = vpack.c.b16 %v2685, %v2675
      %v3246 = vpack.c.b16 %v2686, %v2676
      %v3247 = vpack.c.b16 %v2687, %v2677
      %v3248 = vpack.c.b16 %v2698, %v2688
      %v3249 = vpack.c.b16 %v2699, %v2689
      %v3250 = vpack.c.b16 %v2700, %v2690
      %v3251 = vpack.c.b16 %v2701, %v2691
      %v3252 = vpack.c.b16 %v2702, %v2692
      %v3253 = vpack.c.b16 %v2703, %v2693
      %v3254 = vpack.c.b16 %v2704, %v2694
      %v3255 = vpack.c.b16 %v2705, %v2695
      %v3256 = vpack.c.b16 %v2706, %v2696
      %v3257 = vpack.c.b16 %v2707, %v2697
      %v3258 = vpack.c.b16 %v2718, %v2708
      %v3259 = vpack.c.b16 %v2719, %v2709
      %v3260 = vpack.c.b16 %v2720, %v2710
      %v3261 = vpack.c.b16 %v2721, %v2711
      %v3262 = vpack.c.b16 %v2722, %v2712
      %v3263 = vpack.c.b16 %v2723, %v2713
      %v3264 = vpack.c.b16 %v2724, %v2714
      %v3265 = vpack.c.b16 %v2725, %v2715
      %v3266 = vpack.c.b16 %v2726, %v2716
      %v3267 = vpack.c.b16 %v2727, %v2717
      %v3268 = vpack.c.b16 %v2738, %v2728
      %v3269 = vpack.c.b16 %v2739, %v2729
      %v3270 = vpack.c.b16 %v2740, %v2730
      %v3271 = vpack.c.b16 %v2741, %v2731
      %v3272 = vpack.c.b16 %v2742, %v2732
      %v3273 = vpack.c.b16 %v2743, %v2733
      %v3274 = vpack.c.b16 %v2744, %v2734
      %v3275 = vpack.c.b16 %v2745, %v2735
      %v3276 = vpack.c.b16 %v2746, %v2736
      %v3277 = vpack.c.b16 %v2747, %v2737
      %v3278 = vpack.c.b16 %v2758, %v2748
      %v3279 = vpack.c.b16 %v2759, %v2749
      %v3280 = vpack.c.b16 %v2760, %v2750
      %v3281 = vpack.c.b16 %v2761, %v2751
      %v3282 = vpack.c.b16 %v2762, %v2752
      %v3283 = vpack.c.b16 %v2763, %v2753
      %v3284 = vpack.c.b16 %v2764, %v2754
      %v3285 = vpack.c.b16 %v2765, %v2755
      %v3286 = vpack.c.b16 %v2766, %v2756
      %v3287 = vpack.c.b16 %v2767, %v2757
      %v3288 = vpack.c.b16 %v2778, %v2768
      %v3289 = vpack.c.b16 %v2779, %v2769
      %v3290 = vpack.c.b16 %v2780, %v2770
      %v3291 = vpack.c.b16 %v2781, %v2771
      %v3292 = vpack.c.b16 %v2782, %v2772
      %v3293 = vpack.c.b16 %v2783, %v2773
      %v3294 = vpack.c.b16 %v2784, %v2774
      %v3295 = vpack.c.b16 %v2785, %v2775
      %v3296 = vpack.c.b16 %v2786, %v2776
      %v3297 = vpack.c.b16 %v2787, %v2777
      %v3298 = vpack.c.b16 %v2798, %v2788
      %v3299 = vpack.c.b16 %v2799, %v2789
      %v3300 = vpack.c.b16 %v2800, %v2790
      %v3301 = vpack.c.b16 %v2801, %v2791
      %v3302 = vpack.c.b16 %v2802, %v2792
      %v3303 = vpack.c.b16 %v2803, %v2793
      %v3304 = vpack.c.b16 %v2804, %v2794
      %v3305 = vpack.c.b16 %v2805, %v2795
      %v3306 = vpack.c.b16 %v2806, %v2796
      %v3307 = vpack.c.b16 %v2807, %v2797
      %v3308 = vpack.c.b16 %v2818, %v2808
      %v3309 = vpack.c.b16 %v2819, %v2809
      %v3310 = vpack.c.b16 %v2820, %v2810
      %v3311 = vpack.c.b16 %v2821, %v2811
      %v3312 = vpack.c.b16 %v2822, %v2812
      %v3313 = vpack.c.b16 %v2823, %v2813
      %v3314 = vpack.c.b16 %v2824, %v2814
      %v3315 = vpack.c.b16 %v2825, %v2815
      %v3316 = vpack.c.b16 %v2826, %v2816
      %v3317 = vpack.c.b16 %v2827, %v2817
      %v3318 = vpack.c.b16 %v2838, %v2828
      %v3319 = vpack.c.b16 %v2839, %v2829
      %v3320 = vpack.c.b16 %v2840, %v2830
      %v3321 = vpack.c.b16 %v2841, %v2831
      %v3322 = vpack.c.b16 %v2842, %v2832
      %v3323 = vpack.c.b16 %v2843, %v2833
      %v3324 = vpack.c.b16 %v2844, %v2834
      %v3325 = vpack.c.b16 %v2845, %v2835
      %v3326 = vpack.c.b16 %v2846, %v2836
      %v3327 = vpack.c.b16 %v2847, %v2837
      %v3328 = vpack.c.b16 %v2858, %v2848
      %v3329 = vpack.c.b16 %v2859, %v2849
      %v3330 = vpack.c.b16 %v2860, %v2850
      %v3331 = vpack.c.b16 %v2861, %v2851
      %v3332 = vpack.c.b16 %v2862, %v2852
      %v3333 = vpack.c.b16 %v2863, %v2853
      %v3334 = vpack.c.b16 %v2864, %v2854
      %v3335 = vpack.c.b16 %v2865, %v2855
      %v3336 = vpack.c.b16 %v2866, %v2856
      %v3337 = vpack.c.b16 %v2867, %v2857
      %v3338 = vpack.c.b16 %v2878, %v2868
      %v3339 = vpack.c.b16 %v2879, %v2869
      %v3340 = vpack.c.b16 %v2880, %v2870
      %v3341 = vpack.c.b16 %v2881, %v2871
      %v3342 = vpack.c.b16 %v2882, %v2872
      %v3343 = vpack.c.b16 %v2883, %v2873
      %v3344 = vpack.c.b16 %v2884, %v2874
      %v3345 = vpack.c.b16 %v2885, %v2875
      %v3346 = vpack.c.b16 %v2886, %v2876
      %v3347 = vpack.c.b16 %v2887, %v2877
      %v3348 = vpack.c.b16 %v2898, %v2888
      %v3349 = vpack.c.b16 %v2899, %v2889
      %v3350 = vpack.c.b16 %v2900, %v2890
      %v3351 = vpack.c.b16 %v2901, %v2891
      %v3352 = vpack.c.b16 %v2902, %v2892
      %v3353 = vpack.c.b16 %v2903, %v2893
      %v3354 = vpack.c.b16 %v2904, %v2894
      %v3355 = vpack.c.b16 %v2905, %v2895
      %v3356 = vpack.c.b16 %v2906, %v2896
      %v3357 = vpack.c.b16 %v2907, %v2897
      %v3358 = vpack.c.b16 %v2918, %v2908
      %v3359 = vpack.c.b16 %v2919, %v2909
      %v3360 = vpack.c.b16 %v2920, %v2910
      %v3361 = vpack.c.b16 %v2921, %v2911
      %v3362 = vpack.c.b16 %v2922, %v2912
      %v3363 = vpack.c.b16 %v2923, %v2913
      %v3364 = vpack.c.b16 %v2924, %v2914
      %v3365 = vpack.c.b16 %v2925, %v2915
      %v3366 = vpack.c.b16 %v2926, %v2916
      %v3367 = vpack.c.b16 %v2927, %v2917
      %v3368 = vpack.c.b16 %v2938, %v2928
      %v3369 = vpack.c.b16 %v2939, %v2929
      %v3370 = vpack.c.b16 %v2940, %v2930
      %v3371 = vpack.c.b16 %v2941, %v2931
      %v3372 = vpack.c.b16 %v2942, %v2932
      %v3373 = vpack.c.b16 %v2943, %v2933
      %v3374 = vpack.c.b16 %v2944, %v2934
      %v3375 = vpack.c.b16 %v2945, %v2935
      %v3376 = vpack.c.b16 %v2946, %v2936
      %v3377 = vpack.c.b16 %v2947, %v2937
      %v3378 = vpack.c.b16 %v2958, %v2948
      %v3379 = vpack.c.b16 %v2959, %v2949
      %v3380 = vpack.c.b16 %v2960, %v2950
      %v3381 = vpack.c.b16 %v2961, %v2951
      %v3382 = vpack.c.b16 %v2962, %v2952
      %v3383 = vpack.c.b16 %v2963, %v2953
      %v3384 = vpack.c.b16 %v2964, %v2954
      %v3385 = vpack.c.b16 %v2965, %v2955
      %v3386 = vpack.c.b16 %v2966, %v2956
      %v3387 = vpack.c.b16 %v2967, %v2957
      %v3388 = vpack.c.b16 %v2978, %v2968
      %v3389 = vpack.c.b16 %v2979, %v2969
      %v3390 = vpack.c.b16 %v2980, %v2970
      %v3391 = vpack.c.b16 %v2981, %v2971
      %v3392 = vpack.c.b16 %v2982, %v2972
      %v3393 = vpack.c.b16 %v2983, %v2973
      %v3394 = vpack.c.b16 %v2984, %v2974
      %v3395 = vpack.c.b16 %v2985, %v2975
      %v3396 = vpack.c.b16 %v2986, %v2976
      %v3397 = vpack.c.b16 %v2987, %v2977
      %v3398 = vpack.c.b16 %v2998, %v2988
      %v3399 = vpack.c.b16 %v2999, %v2989
      %v3400 = vpack.c.b16 %v3000, %v2990
      %v3401 = vpack.c.b16 %v3001, %v2991
      %v3402 = vpack.c.b16 %v3002, %v2992
      %v3403 = vpack.c.b16 %v3003, %v2993
      %v3404 = vpack.c.b16 %v3004, %v2994
      %v3405 = vpack.c.b16 %v3005, %v2995
      %v3406 = vpack.c.b16 %v3006, %v2996
      %v3407 = vpack.c.b16 %v3007, %v2997
      %v3408 = vpack.c.b16 %v3018, %v3008
      %v3409 = vpack.c.b16 %v3019, %v3009
      %v3410 = vpack.c.b16 %v3020, %v3010
      %v3411 = vpack.c.b16 %v3021, %v3011
      %v3412 = vpack.c.b16 %v3022, %v3012
      %v3413 = vpack.c.b16 %v3023, %v3013
      %v3414 = vpack.c.b16 %v3024, %v3014
      %v3415 = vpack.c.b16 %v3025, %v3015
      %v3416 = vpack.c.b16 %v3026, %v3016
      %v3417 = vpack.c.b16 %v3027, %v3017
      %v3418 = vpack.c.b16 %v3038, %v3028
      %v3419 = vpack.c.b16 %v3039, %v3029
      %v3420 = vpack.c.b16 %v3040, %v3030
      %v3421 = vpack.c.b16 %v3041, %v3031
      %v3422 = vpack.c.b16 %v3042, %v3032
      %v3423 = vpack.c.b16 %v3043, %v3033
      %v3424 = vpack.c.b16 %v3044, %v3034
      %v3425 = vpack.c.b16 %v3045, %v3035
      %v3426 = vpack.c.b16 %v3046, %v3036
      %v3427 = vpack.c.b16 %v3047, %v3037
      %v3428 = vpack.c.b16 %v3058, %v3048
      %v3429 = vpack.c.b16 %v3059, %v3049
      %v3430 = vpack.c.b16 %v3060, %v3050
      %v3431 = vpack.c.b16 %v3061, %v3051
      %v3432 = vpack.c.b16 %v3062, %v3052
      %v3433 = vpack.c.b16 %v3063, %v3053
      %v3434 = vpack.c.b16 %v3064, %v3054
      %v3435 = vpack.c.b16 %v3065, %v3055
      %v3436 = vpack.c.b16 %v3066, %v3056
      %v3437 = vpack.c.b16 %v3067, %v3057
      %v3438 = vpack.c.b16 %v3078, %v3068
      %v3439 = vpack.c.b16 %v3079, %v3069
      %v3440 = vpack.c.b16 %v3080, %v3070
      %v3441 = vpack.c.b16 %v3081, %v3071
      %v3442 = vpack.c.b16 %v3082, %v3072
      %v3443 = vpack.c.b16 %v3083, %v3073
      %v3444 = vpack.c.b16 %v3084, %v3074
      %v3445 = vpack.c.b16 %v3085, %v3075
      %v3446 = vpack.c.b16 %v3086, %v3076
      %v3447 = vpack.c.b16 %v3087, %v3077
      %v3448 = vpack.c.b16 %v3098, %v3088
      %v3449 = vpack.c.b16 %v3099, %v3089
      %v3450 = vpack.c.b16 %v3100, %v3090
      %v3451 = vpack.c.b16 %v3101, %v3091
      %v3452 = vpack.c.b16 %v3102, %v3092
      %v3453 = vpack.c.b16 %v3103, %v3093
      %v3454 = vpack.c.b16 %v3104, %v3094
      %v3455 = vpack.c.b16 %v3105, %v3095
      %v3456 = vpack.c.b16 %v3106, %v3096
      %v3457 = vpack.c.b16 %v3107, %v3097
      %v3458 = vpack.c.b16 %v3118, %v3108
      %v3459 = vpack.c.b16 %v3119, %v3109
      %v3460 = vpack.c.b16 %v3120, %v3110
      %v3461 = vpack.c.b16 %v3121, %v3111
      %v3462 = vpack.c.b16 %v3122, %v3112
      %v3463 = vpack.c.b16 %v3123, %v3113
      %v3464 = vpack.c.b16 %v3124, %v3114
      %v3465 = vpack.c.b16 %v3125, %v3115
      %v3466 = vpack.c.b16 %v3126, %v3116
      %v3467 = vpack.c.b16 %v3127, %v3117
      %v3468 = vpack.c.b16 %v3138, %v3128
      %v3469 = vpack.c.b16 %v3139, %v3129
      %v3470 = vpack.c.b16 %v3140, %v3130
      %v3471 = vpack.c.b16 %v3141, %v3131
      %v3472 = vpack.c.b16 %v3142, %v3132
      %v3473 = vpack.c.b16 %v3143, %v3133
      %v3474 = vpack.c.b16 %v3144, %v3134
      %v3475 = vpack.c.b16 %v3145, %v3135
      %v3476 = vpack.c.b16 %v3146, %v3136
      %v3477 = vpack.c.b16 %v3147, %v3137
      %v3478 = vpack.c.b16 %v3158, %v3148
      %v3479 = vpack.c.b16 %v3159, %v3149
      %v3480 = vpack.c.b16 %v3160, %v3150
      %v3481 = vpack.c.b16 %v3161, %v3151
      %v3482 = vpack.c.b16 %v3162, %v3152
      %v3483 = vpack.c.b16 %v3163, %v3153
      %v3484 = vpack.c.b16 %v3164, %v3154
      %v3485 = vpack.c.b16 %v3165, %v3155
      %v3486 = vpack.c.b16 %v3166, %v3156
      %v3487 = vpack.c.b16 %v3167, %v3157
      %3808 = vmatprep.subr.bf16.mxu0 %v3239
      %3809 = vmatpush1.bf16.msra.mxu0 %v3238
      %3810 = vmatprep.subr.bf16.mxu0 %v3229
      %3811 = vmatpush1.bf16.msra.mxu0 %v3228
      %3812 = vmatprep.subr.bf16.mxu0 %v3219
      %3813 = vmatpush1.bf16.msra.mxu0 %v3218
      %3814 = vmatprep.subr.bf16.mxu0 %v3209
      %3815 = vmatpush1.bf16.msra.mxu0 %v3208
      %3816 = vmatprep.subr.bf16.mxu0 %v3199
      %3817 = vmatpush1.bf16.msra.mxu0 %v3198
      %3818 = vmatprep.subr.bf16.mxu0 %v3189
      %3819 = vmatpush1.bf16.msra.mxu0 %v3188
      %3820 = vmatprep.subr.bf16.mxu0 %v3179
      %3821 = vmatpush1.bf16.msra.mxu0 %v3178
      %3822 = vmatprep.subr.bf16.mxu0 %v3169
      %3823 = vmatpush1.bf16.msra.mxu0 %v3168
      %3824 = vmatprep.subr.bf16.mxu0 %v3319
      %3825 = vmatpush2.bf16.msra.mxu0 %v3318
      %3826 = vmatprep.subr.bf16.mxu0 %v3309
      %3827 = vmatpush2.bf16.msra.mxu0 %v3308
      %3828 = vmatprep.subr.bf16.mxu0 %v3299
      %3829 = vmatpush2.bf16.msra.mxu0 %v3298
      %3830 = vmatprep.subr.bf16.mxu0 %v3289
      %3831 = vmatpush2.bf16.msra.mxu0 %v3288
      %3832 = vmatprep.subr.bf16.mxu0 %v3279
      %3833 = vmatpush2.bf16.msra.mxu0 %v3278
      %3834 = vmatprep.subr.bf16.mxu0 %v3269
      %3835 = vmatpush2.bf16.msra.mxu0 %v3268
      %3836 = vmatprep.subr.bf16.mxu0 %v3259
      %3837 = vmatpush2.bf16.msra.mxu0 %v3258
      %3838 = vmatprep.subr.bf16.mxu0 %v3249
      %3839 = vmatpush2.bf16.msra.mxu0 %v3248
      %3840 = vmatprep.mubr.bf16.mxu0 %v1885
      %3841 = vmatmul.mubr.bf16.gmra.mxu0 %v1884
      %v3842 = vpop.f32.mrf.mxu0
      %v3843 = vadd.f32 0.0, %v3842
      %v3844 = vpop.f32.mrf.mxu0
      %v3845 = vadd.f32 0.0, %v3844
      %v3846 = vpop.f32.mrf.mxu0
      %v3847 = vpop.f32.mrf.mxu0
      %3848 = vdwg.mxu0
      %3849 = vmatprep.subr.bf16.mxu0 %v3399
      %3850 = vmatpush1.bf16.msra.mxu0 %v3398
      %3851 = vmatprep.subr.bf16.mxu0 %v3389
      %3852 = vmatpush1.bf16.msra.mxu0 %v3388
      %3853 = vmatprep.subr.bf16.mxu0 %v3379
      %3854 = vmatpush1.bf16.msra.mxu0 %v3378
      %3855 = vmatprep.subr.bf16.mxu0 %v3369
      %3856 = vmatpush1.bf16.msra.mxu0 %v3368
      %3857 = vmatprep.subr.bf16.mxu0 %v3359
      %3858 = vmatpush1.bf16.msra.mxu0 %v3358
      %3859 = vmatprep.subr.bf16.mxu0 %v3349
      %3860 = vmatpush1.bf16.msra.mxu0 %v3348
      %3861 = vmatprep.subr.bf16.mxu0 %v3339
      %3862 = vmatpush1.bf16.msra.mxu0 %v3338
      %3863 = vmatprep.subr.bf16.mxu0 %v3329
      %3864 = vmatpush1.bf16.msra.mxu0 %v3328
      %3865 = vmatprep.subr.bf16.mxu0 %v3479
      %3866 = vmatpush2.bf16.msra.mxu0 %v3478
      %3867 = vmatprep.subr.bf16.mxu0 %v3469
      %3868 = vmatpush2.bf16.msra.mxu0 %v3468
      %3869 = vmatprep.subr.bf16.mxu0 %v3459
      %3870 = vmatpush2.bf16.msra.mxu0 %v3458
      %3871 = vmatprep.subr.bf16.mxu0 %v3449
      %3872 = vmatpush2.bf16.msra.mxu0 %v3448
      %3873 = vmatprep.subr.bf16.mxu0 %v3439
      %3874 = vmatpush2.bf16.msra.mxu0 %v3438
      %3875 = vmatprep.subr.bf16.mxu0 %v3429
      %3876 = vmatpush2.bf16.msra.mxu0 %v3428
      %3877 = vmatprep.subr.bf16.mxu0 %v3419
      %3878 = vmatpush2.bf16.msra.mxu0 %v3418
      %3879 = vmatprep.subr.bf16.mxu0 %v3409
      %3880 = vmatpush2.bf16.msra.mxu0 %v3408
      %3881 = vmatprep.mubr.bf16.mxu0 %v1887
      %3882 = vmatmul.mubr.bf16.gmra.mxu0 %v1886
      %v3883 = vpop.f32.mrf.mxu0
      %v3884 = vadd.f32 %v3843, %v3883
      %v3885 = vpop.f32.mrf.mxu0
      %v3886 = vadd.f32 %v3845, %v3885
      %v3887 = vpop.f32.mrf.mxu0
      %v3888 = vpop.f32.mrf.mxu0
      %3889 = vdwg.mxu0
      %3890 = vmatprep.subr.bf16.mxu0 %v3241
      %3891 = vmatpush1.bf16.msra.mxu0 %v3240
      %3892 = vmatprep.subr.bf16.mxu0 %v3231
      %3893 = vmatpush1.bf16.msra.mxu0 %v3230
      %3894 = vmatprep.subr.bf16.mxu0 %v3221
      %3895 = vmatpush1.bf16.msra.mxu0 %v3220
      %3896 = vmatprep.subr.bf16.mxu0 %v3211
      %3897 = vmatpush1.bf16.msra.mxu0 %v3210
      %3898 = vmatprep.subr.bf16.mxu0 %v3201
      %3899 = vmatpush1.bf16.msra.mxu0 %v3200
      %3900 = vmatprep.subr.bf16.mxu0 %v3191
      %3901 = vmatpush1.bf16.msra.mxu0 %v3190
      %3902 = vmatprep.subr.bf16.mxu0 %v3181
      %3903 = vmatpush1.bf16.msra.mxu0 %v3180
      %3904 = vmatprep.subr.bf16.mxu0 %v3171
      %3905 = vmatpush1.bf16.msra.mxu0 %v3170
      %3906 = vmatprep.subr.bf16.mxu0 %v3321
      %3907 = vmatpush2.bf16.msra.mxu0 %v3320
      %3908 = vmatprep.subr.bf16.mxu0 %v3311
      %3909 = vmatpush2.bf16.msra.mxu0 %v3310
      %3910 = vmatprep.subr.bf16.mxu0 %v3301
      %3911 = vmatpush2.bf16.msra.mxu0 %v3300
      %3912 = vmatprep.subr.bf16.mxu0 %v3291
      %3913 = vmatpush2.bf16.msra.mxu0 %v3290
      %3914 = vmatprep.subr.bf16.mxu0 %v3281
      %3915 = vmatpush2.bf16.msra.mxu0 %v3280
      %3916 = vmatprep.subr.bf16.mxu0 %v3271
      %3917 = vmatpush2.bf16.msra.mxu0 %v3270
      %3918 = vmatprep.subr.bf16.mxu0 %v3261
      %3919 = vmatpush2.bf16.msra.mxu0 %v3260
      %3920 = vmatprep.subr.bf16.mxu0 %v3251
      %3921 = vmatpush2.bf16.msra.mxu0 %v3250
      %3922 = vmatprep.mubr.bf16.mxu0 %v1885
      %3923 = vmatmul.mubr.bf16.gmra.mxu0 %v1884
      %v3924 = vpop.f32.mrf.mxu0
      %v3925 = vadd.f32 0.0, %v3924
      %v3926 = vpop.f32.mrf.mxu0
      %v3927 = vadd.f32 0.0, %v3926
      %v3928 = vpop.f32.mrf.mxu0
      %v3929 = vpop.f32.mrf.mxu0
      %3930 = vdwg.mxu0
      %3931 = vmatprep.subr.bf16.mxu0 %v3401
      %3932 = vmatpush1.bf16.msra.mxu0 %v3400
      %3933 = vmatprep.subr.bf16.mxu0 %v3391
      %3934 = vmatpush1.bf16.msra.mxu0 %v3390
      %3935 = vmatprep.subr.bf16.mxu0 %v3381
      %3936 = vmatpush1.bf16.msra.mxu0 %v3380
      %3937 = vmatprep.subr.bf16.mxu0 %v3371
      %3938 = vmatpush1.bf16.msra.mxu0 %v3370
      %3939 = vmatprep.subr.bf16.mxu0 %v3361
      %3940 = vmatpush1.bf16.msra.mxu0 %v3360
      %3941 = vmatprep.subr.bf16.mxu0 %v3351
      %3942 = vmatpush1.bf16.msra.mxu0 %v3350
      %3943 = vmatprep.subr.bf16.mxu0 %v3341
      %3944 = vmatpush1.bf16.msra.mxu0 %v3340
      %3945 = vmatprep.subr.bf16.mxu0 %v3331
      %3946 = vmatpush1.bf16.msra.mxu0 %v3330
      %3947 = vmatprep.subr.bf16.mxu0 %v3481
      %3948 = vmatpush2.bf16.msra.mxu0 %v3480
      %3949 = vmatprep.subr.bf16.mxu0 %v3471
      %3950 = vmatpush2.bf16.msra.mxu0 %v3470
      %3951 = vmatprep.subr.bf16.mxu0 %v3461
      %3952 = vmatpush2.bf16.msra.mxu0 %v3460
      %3953 = vmatprep.subr.bf16.mxu0 %v3451
      %3954 = vmatpush2.bf16.msra.mxu0 %v3450
      %3955 = vmatprep.subr.bf16.mxu0 %v3441
      %3956 = vmatpush2.bf16.msra.mxu0 %v3440
      %3957 = vmatprep.subr.bf16.mxu0 %v3431
      %3958 = vmatpush2.bf16.msra.mxu0 %v3430
      %3959 = vmatprep.subr.bf16.mxu0 %v3421
      %3960 = vmatpush2.bf16.msra.mxu0 %v3420
      %3961 = vmatprep.subr.bf16.mxu0 %v3411
      %3962 = vmatpush2.bf16.msra.mxu0 %v3410
      %3963 = vmatprep.mubr.bf16.mxu0 %v1887
      %3964 = vmatmul.mubr.bf16.gmra.mxu0 %v1886
      %v3965 = vpop.f32.mrf.mxu0
      %v3966 = vadd.f32 %v3925, %v3965
      %v3967 = vpop.f32.mrf.mxu0
      %v3968 = vadd.f32 %v3927, %v3967
      %v3969 = vpop.f32.mrf.mxu0
      %v3970 = vpop.f32.mrf.mxu0
      %3971 = vdwg.mxu0
      %3972 = vmatprep.subr.bf16.mxu0 %v3243
      %3973 = vmatpush1.bf16.msra.mxu0 %v3242
      %3974 = vmatprep.subr.bf16.mxu0 %v3233
      %3975 = vmatpush1.bf16.msra.mxu0 %v3232
      %3976 = vmatprep.subr.bf16.mxu0 %v3223
      %3977 = vmatpush1.bf16.msra.mxu0 %v3222
      %3978 = vmatprep.subr.bf16.mxu0 %v3213
      %3979 = vmatpush1.bf16.msra.mxu0 %v3212
      %3980 = vmatprep.subr.bf16.mxu0 %v3203
      %3981 = vmatpush1.bf16.msra.mxu0 %v3202
      %3982 = vmatprep.subr.bf16.mxu0 %v3193
      %3983 = vmatpush1.bf16.msra.mxu0 %v3192
      %3984 = vmatprep.subr.bf16.mxu0 %v3183
      %3985 = vmatpush1.bf16.msra.mxu0 %v3182
      %3986 = vmatprep.subr.bf16.mxu0 %v3173
      %3987 = vmatpush1.bf16.msra.mxu0 %v3172
      %3988 = vmatprep.subr.bf16.mxu0 %v3323
      %3989 = vmatpush2.bf16.msra.mxu0 %v3322
      %3990 = vmatprep.subr.bf16.mxu0 %v3313
      %3991 = vmatpush2.bf16.msra.mxu0 %v3312
      %3992 = vmatprep.subr.bf16.mxu0 %v3303
      %3993 = vmatpush2.bf16.msra.mxu0 %v3302
      %3994 = vmatprep.subr.bf16.mxu0 %v3293
      %3995 = vmatpush2.bf16.msra.mxu0 %v3292
      %3996 = vmatprep.subr.bf16.mxu0 %v3283
      %3997 = vmatpush2.bf16.msra.mxu0 %v3282
      %3998 = vmatprep.subr.bf16.mxu0 %v3273
      %3999 = vmatpush2.bf16.msra.mxu0 %v3272
      %4000 = vmatprep.subr.bf16.mxu0 %v3263
      %4001 = vmatpush2.bf16.msra.mxu0 %v3262
      %4002 = vmatprep.subr.bf16.mxu0 %v3253
      %4003 = vmatpush2.bf16.msra.mxu0 %v3252
      %4004 = vmatprep.mubr.bf16.mxu0 %v1885
      %4005 = vmatmul.mubr.bf16.gmra.mxu0 %v1884
      %v4006 = vpop.f32.mrf.mxu0
      %v4007 = vadd.f32 0.0, %v4006
      %v4008 = vpop.f32.mrf.mxu0
      %v4009 = vadd.f32 0.0, %v4008
      %v4010 = vpop.f32.mrf.mxu0
      %v4011 = vpop.f32.mrf.mxu0
      %4012 = vdwg.mxu0
      %4013 = vmatprep.subr.bf16.mxu0 %v3403
      %4014 = vmatpush1.bf16.msra.mxu0 %v3402
      %4015 = vmatprep.subr.bf16.mxu0 %v3393
      %4016 = vmatpush1.bf16.msra.mxu0 %v3392
      %4017 = vmatprep.subr.bf16.mxu0 %v3383
      %4018 = vmatpush1.bf16.msra.mxu0 %v3382
      %4019 = vmatprep.subr.bf16.mxu0 %v3373
      %4020 = vmatpush1.bf16.msra.mxu0 %v3372
      %4021 = vmatprep.subr.bf16.mxu0 %v3363
      %4022 = vmatpush1.bf16.msra.mxu0 %v3362
      %4023 = vmatprep.subr.bf16.mxu0 %v3353
      %4024 = vmatpush1.bf16.msra.mxu0 %v3352
      %4025 = vmatprep.subr.bf16.mxu0 %v3343
      %4026 = vmatpush1.bf16.msra.mxu0 %v3342
      %4027 = vmatprep.subr.bf16.mxu0 %v3333
      %4028 = vmatpush1.bf16.msra.mxu0 %v3332
      %4029 = vmatprep.subr.bf16.mxu0 %v3483
      %4030 = vmatpush2.bf16.msra.mxu0 %v3482
      %4031 = vmatprep.subr.bf16.mxu0 %v3473
      %4032 = vmatpush2.bf16.msra.mxu0 %v3472
      %4033 = vmatprep.subr.bf16.mxu0 %v3463
      %4034 = vmatpush2.bf16.msra.mxu0 %v3462
      %4035 = vmatprep.subr.bf16.mxu0 %v3453
      %4036 = vmatpush2.bf16.msra.mxu0 %v3452
      %4037 = vmatprep.subr.bf16.mxu0 %v3443
      %4038 = vmatpush2.bf16.msra.mxu0 %v3442
      %4039 = vmatprep.subr.bf16.mxu0 %v3433
      %4040 = vmatpush2.bf16.msra.mxu0 %v3432
      %4041 = vmatprep.subr.bf16.mxu0 %v3423
      %4042 = vmatpush2.bf16.msra.mxu0 %v3422
      %4043 = vmatprep.subr.bf16.mxu0 %v3413
      %4044 = vmatpush2.bf16.msra.mxu0 %v3412
      %4045 = vmatprep.mubr.bf16.mxu0 %v1887
      %4046 = vmatmul.mubr.bf16.gmra.mxu0 %v1886
      %v4047 = vpop.f32.mrf.mxu0
      %v4048 = vadd.f32 %v4007, %v4047
      %v4049 = vpop.f32.mrf.mxu0
      %v4050 = vadd.f32 %v4009, %v4049
      %v4051 = vpop.f32.mrf.mxu0
      %v4052 = vpop.f32.mrf.mxu0
      %4053 = vdwg.mxu0
      %4054 = vmatprep.subr.bf16.mxu0 %v3245
      %4055 = vmatpush1.bf16.msra.mxu0 %v3244
      %4056 = vmatprep.subr.bf16.mxu0 %v3235
      %4057 = vmatpush1.bf16.msra.mxu0 %v3234
      %4058 = vmatprep.subr.bf16.mxu0 %v3225
      %4059 = vmatpush1.bf16.msra.mxu0 %v3224
      %4060 = vmatprep.subr.bf16.mxu0 %v3215
      %4061 = vmatpush1.bf16.msra.mxu0 %v3214
      %4062 = vmatprep.subr.bf16.mxu0 %v3205
      %4063 = vmatpush1.bf16.msra.mxu0 %v3204
      %4064 = vmatprep.subr.bf16.mxu0 %v3195
      %4065 = vmatpush1.bf16.msra.mxu0 %v3194
      %4066 = vmatprep.subr.bf16.mxu0 %v3185
      %4067 = vmatpush1.bf16.msra.mxu0 %v3184
      %4068 = vmatprep.subr.bf16.mxu0 %v3175
      %4069 = vmatpush1.bf16.msra.mxu0 %v3174
      %4070 = vmatprep.subr.bf16.mxu0 %v3325
      %4071 = vmatpush2.bf16.msra.mxu0 %v3324
      %4072 = vmatprep.subr.bf16.mxu0 %v3315
      %4073 = vmatpush2.bf16.msra.mxu0 %v3314
      %4074 = vmatprep.subr.bf16.mxu0 %v3305
      %4075 = vmatpush2.bf16.msra.mxu0 %v3304
      %4076 = vmatprep.subr.bf16.mxu0 %v3295
      %4077 = vmatpush2.bf16.msra.mxu0 %v3294
      %4078 = vmatprep.subr.bf16.mxu0 %v3285
      %4079 = vmatpush2.bf16.msra.mxu0 %v3284
      %4080 = vmatprep.subr.bf16.mxu0 %v3275
      %4081 = vmatpush2.bf16.msra.mxu0 %v3274
      %4082 = vmatprep.subr.bf16.mxu0 %v3265
      %4083 = vmatpush2.bf16.msra.mxu0 %v3264
      %4084 = vmatprep.subr.bf16.mxu0 %v3255
      %4085 = vmatpush2.bf16.msra.mxu0 %v3254
      %4086 = vmatprep.mubr.bf16.mxu0 %v1885
      %4087 = vmatmul.mubr.bf16.gmra.mxu0 %v1884
      %v4088 = vpop.f32.mrf.mxu0
      %v4089 = vadd.f32 0.0, %v4088
      %v4090 = vpop.f32.mrf.mxu0
      %v4091 = vadd.f32 0.0, %v4090
      %v4092 = vpop.f32.mrf.mxu0
      %v4093 = vpop.f32.mrf.mxu0
      %4094 = vdwg.mxu0
      %4095 = vmatprep.subr.bf16.mxu0 %v3405
      %4096 = vmatpush1.bf16.msra.mxu0 %v3404
      %4097 = vmatprep.subr.bf16.mxu0 %v3395
      %4098 = vmatpush1.bf16.msra.mxu0 %v3394
      %4099 = vmatprep.subr.bf16.mxu0 %v3385
      %4100 = vmatpush1.bf16.msra.mxu0 %v3384
      %4101 = vmatprep.subr.bf16.mxu0 %v3375
      %4102 = vmatpush1.bf16.msra.mxu0 %v3374
      %4103 = vmatprep.subr.bf16.mxu0 %v3365
      %4104 = vmatpush1.bf16.msra.mxu0 %v3364
      %4105 = vmatprep.subr.bf16.mxu0 %v3355
      %4106 = vmatpush1.bf16.msra.mxu0 %v3354
      %4107 = vmatprep.subr.bf16.mxu0 %v3345
      %4108 = vmatpush1.bf16.msra.mxu0 %v3344
      %4109 = vmatprep.subr.bf16.mxu0 %v3335
      %4110 = vmatpush1.bf16.msra.mxu0 %v3334
      %4111 = vmatprep.subr.bf16.mxu0 %v3485
      %4112 = vmatpush2.bf16.msra.mxu0 %v3484
      %4113 = vmatprep.subr.bf16.mxu0 %v3475
      %4114 = vmatpush2.bf16.msra.mxu0 %v3474
      %4115 = vmatprep.subr.bf16.mxu0 %v3465
      %4116 = vmatpush2.bf16.msra.mxu0 %v3464
      %4117 = vmatprep.subr.bf16.mxu0 %v3455
      %4118 = vmatpush2.bf16.msra.mxu0 %v3454
      %4119 = vmatprep.subr.bf16.mxu0 %v3445
      %4120 = vmatpush2.bf16.msra.mxu0 %v3444
      %4121 = vmatprep.subr.bf16.mxu0 %v3435
      %4122 = vmatpush2.bf16.msra.mxu0 %v3434
      %4123 = vmatprep.subr.bf16.mxu0 %v3425
      %4124 = vmatpush2.bf16.msra.mxu0 %v3424
      %4125 = vmatprep.subr.bf16.mxu0 %v3415
      %4126 = vmatpush2.bf16.msra.mxu0 %v3414
      %4127 = vmatprep.mubr.bf16.mxu0 %v1887
      %4128 = vmatmul.mubr.bf16.gmra.mxu0 %v1886
      %v4129 = vpop.f32.mrf.mxu0
      %v4130 = vadd.f32 %v4089, %v4129
      %v4131 = vpop.f32.mrf.mxu0
      %v4132 = vadd.f32 %v4091, %v4131
      %v4133 = vpop.f32.mrf.mxu0
      %v4134 = vpop.f32.mrf.mxu0
      %4135 = vdwg.mxu0
      %4136 = vmatprep.subr.bf16.mxu0 %v3247
      %4137 = vmatpush1.bf16.msra.mxu0 %v3246
      %4138 = vmatprep.subr.bf16.mxu0 %v3237
      %4139 = vmatpush1.bf16.msra.mxu0 %v3236
      %4140 = vmatprep.subr.bf16.mxu0 %v3227
      %4141 = vmatpush1.bf16.msra.mxu0 %v3226
      %4142 = vmatprep.subr.bf16.mxu0 %v3217
      %4143 = vmatpush1.bf16.msra.mxu0 %v3216
      %4144 = vmatprep.subr.bf16.mxu0 %v3207
      %4145 = vmatpush1.bf16.msra.mxu0 %v3206
      %4146 = vmatprep.subr.bf16.mxu0 %v3197
      %4147 = vmatpush1.bf16.msra.mxu0 %v3196
      %4148 = vmatprep.subr.bf16.mxu0 %v3187
      %4149 = vmatpush1.bf16.msra.mxu0 %v3186
      %4150 = vmatprep.subr.bf16.mxu0 %v3177
      %4151 = vmatpush1.bf16.msra.mxu0 %v3176
      %4152 = vmatprep.subr.bf16.mxu0 %v3327
      %4153 = vmatpush2.bf16.msra.mxu0 %v3326
      %4154 = vmatprep.subr.bf16.mxu0 %v3317
      %4155 = vmatpush2.bf16.msra.mxu0 %v3316
      %4156 = vmatprep.subr.bf16.mxu0 %v3307
      %4157 = vmatpush2.bf16.msra.mxu0 %v3306
      %4158 = vmatprep.subr.bf16.mxu0 %v3297
      %4159 = vmatpush2.bf16.msra.mxu0 %v3296
      %4160 = vmatprep.subr.bf16.mxu0 %v3287
      %4161 = vmatpush2.bf16.msra.mxu0 %v3286
      %4162 = vmatprep.subr.bf16.mxu0 %v3277
      %4163 = vmatpush2.bf16.msra.mxu0 %v3276
      %4164 = vmatprep.subr.bf16.mxu0 %v3267
      %4165 = vmatpush2.bf16.msra.mxu0 %v3266
      %4166 = vmatprep.subr.bf16.mxu0 %v3257
      %4167 = vmatpush2.bf16.msra.mxu0 %v3256
      %4168 = vmatprep.mubr.bf16.mxu0 %v1885
      %4169 = vmatmul.mubr.bf16.gmra.mxu0 %v1884
      %v4170 = vpop.f32.mrf.mxu0
      %v4171 = vadd.f32 0.0, %v4170
      %v4172 = vpop.f32.mrf.mxu0
      %v4173 = vadd.f32 0.0, %v4172
      %v4174 = vpop.f32.mrf.mxu0
      %v4175 = vpop.f32.mrf.mxu0
      %4176 = vdwg.mxu0
      %4177 = vmatprep.subr.bf16.mxu0 %v3407
      %4178 = vmatpush1.bf16.msra.mxu0 %v3406
      %4179 = vmatprep.subr.bf16.mxu0 %v3397
      %4180 = vmatpush1.bf16.msra.mxu0 %v3396
      %4181 = vmatprep.subr.bf16.mxu0 %v3387
      %4182 = vmatpush1.bf16.msra.mxu0 %v3386
      %4183 = vmatprep.subr.bf16.mxu0 %v3377
      %4184 = vmatpush1.bf16.msra.mxu0 %v3376
      %4185 = vmatprep.subr.bf16.mxu0 %v3367
      %4186 = vmatpush1.bf16.msra.mxu0 %v3366
      %4187 = vmatprep.subr.bf16.mxu0 %v3357
      %4188 = vmatpush1.bf16.msra.mxu0 %v3356
      %4189 = vmatprep.subr.bf16.mxu0 %v3347
      %4190 = vmatpush1.bf16.msra.mxu0 %v3346
      %4191 = vmatprep.subr.bf16.mxu0 %v3337
      %4192 = vmatpush1.bf16.msra.mxu0 %v3336
      %4193 = vmatprep.subr.bf16.mxu0 %v3487
      %4194 = vmatpush2.bf16.msra.mxu0 %v3486
      %4195 = vmatprep.subr.bf16.mxu0 %v3477
      %4196 = vmatpush2.bf16.msra.mxu0 %v3476
      %4197 = vmatprep.subr.bf16.mxu0 %v3467
      %4198 = vmatpush2.bf16.msra.mxu0 %v3466
      %4199 = vmatprep.subr.bf16.mxu0 %v3457
      %4200 = vmatpush2.bf16.msra.mxu0 %v3456
      %4201 = vmatprep.subr.bf16.mxu0 %v3447
      %4202 = vmatpush2.bf16.msra.mxu0 %v3446
      %4203 = vmatprep.subr.bf16.mxu0 %v3437
      %4204 = vmatpush2.bf16.msra.mxu0 %v3436
      %4205 = vmatprep.subr.bf16.mxu0 %v3427
      %4206 = vmatpush2.bf16.msra.mxu0 %v3426
      %4207 = vmatprep.subr.bf16.mxu0 %v3417
      %4208 = vmatpush2.bf16.msra.mxu0 %v3416
      %4209 = vmatprep.mubr.bf16.mxu0 %v1887
      %4210 = vmatmul.mubr.bf16.gmra.mxu0 %v1886
      %v4211 = vpop.f32.mrf.mxu0
      %v4212 = vadd.f32 %v4171, %v4211
      %v4213 = vpop.f32.mrf.mxu0
      %v4214 = vadd.f32 %v4173, %v4213
      %v4215 = vpop.f32.mrf.mxu0
      %v4216 = vpop.f32.mrf.mxu0
      %4217 = vdwg.mxu0
      %v4220 = vrot.slane %v3966, 4
      %v4221 = vrot.slane %v3968, 4
      %v4226 = vrot.slane %v4130, 4
      %v4227 = vrot.slane %v4132, 4
      %vm4230 = vcmask 1043456
      %v4231 = vsel %vm4230, %v3884, %v4220
      %v4232 = vsel %vm4230, %v3886, %v4221
      %v4233 = vsel %vm4230, %v4048, %v4226
      %v4234 = vsel %vm4230, %v4050, %v4227
      %v4235 = vld [vmem:[%s6] sm:$0xf]
      %v4236 = vld [vmem:[%s6 + $0x4] sm:$0x3]
      %v4237 = vpack.c.bf16 %v4233, %v4231
      %v4238 = vpack.c.bf16 %v4234, %v4232
      %v4239 = vpack.c.bf16 %v4212, %v4212
      %v4240 = vpack.c.bf16 %v4214, %v4214
      %v4241 = vld [vmem:[%s5] sm:$0x3]
      %v4243 = vlaneseq
      %v4244 = vshrl.u32 %v4243, 7
      %v4245 = vsub.s32 0, %v4244
      %v4246 = vrot.slane %v4241, %v4245
      %v4247 = vlaneseq
      %v4248 = vshrl.u32 %v4247, 7
      %v4249 = vsub.s32 1, %v4248
      %v4250 = vrot.slane %v4241, %v4249
      %v4255 = vunpack.c.l.b16 %v4235
      %v4256 = vunpack.c.l.b16 %v4236
      %v4257 = vpack.c.b16 %v4256, %v4255
      %vm4258 = vcmask 162816
      %v4260 = vsel %vm4258, %v4257, 0
      %v4263 = vsel %vm1737, %v4239, 0
      %v4266 = vsel %vm1737, %v4240, 0
      %4268 = vmatprep.subr.bf16.mxu0 0
      %4269 = vmatpush1.bf16.msra.mxu0 0
      %4270 = vmatprep.subr.bf16.mxu0 0
      %4271 = vmatpush1.bf16.msra.mxu0 0
      %4272 = vmatprep.subr.bf16.mxu0 0
      %4273 = vmatpush1.bf16.msra.mxu0 0
      %4274 = vmatprep.subr.bf16.mxu0 0
      %4275 = vmatpush1.bf16.msra.mxu0 0
      %4276 = vmatprep.subr.bf16.mxu0 0
      %4277 = vmatpush1.bf16.msra.mxu0 0
      %4278 = vmatprep.subr.bf16.mxu0 0
      %4279 = vmatpush1.bf16.msra.mxu0 0
      %4280 = vmatprep.subr.bf16.mxu0 %v4266
      %4281 = vmatpush1.bf16.msra.mxu0 %v4263
      %4282 = vmatprep.subr.bf16.mxu0 %v4238
      %4283 = vmatpush1.bf16.msra.mxu0 %v4237
      %4284 = vmatprep.subr.bf16.mxu0 0
      %4285 = vmatpush2.bf16.msra.mxu0 0
      %4286 = vmatprep.subr.bf16.mxu0 0
      %4287 = vmatpush2.bf16.msra.mxu0 0
      %4288 = vmatprep.subr.bf16.mxu0 0
      %4289 = vmatpush2.bf16.msra.mxu0 0
      %4290 = vmatprep.subr.bf16.mxu0 0
      %4291 = vmatpush2.bf16.msra.mxu0 0
      %4292 = vmatprep.subr.bf16.mxu0 0
      %4293 = vmatpush2.bf16.msra.mxu0 0
      %4294 = vmatprep.subr.bf16.mxu0 0
      %4295 = vmatpush2.bf16.msra.mxu0 0
      %4296 = vmatprep.subr.bf16.mxu0 0
      %4297 = vmatpush2.bf16.msra.mxu0 0
      %4298 = vmatprep.subr.bf16.mxu0 0
      %4299 = vmatpush2.bf16.msra.mxu0 0
      %4300 = vmatprep.mubr.bf16.mxu0 0
      %4301 = vmatmul.mubr.bf16.gmra.mxu0 %v4260
      %v4302 = vpop.f32.mrf.mxu0
      %v4303 = vadd.f32 %v4246, %v4302
      %v4304 = vpop.f32.mrf.mxu0
      %v4305 = vadd.f32 %v4250, %v4304
      %v4306 = vpop.f32.mrf.mxu0
      %v4307 = vadd.f32 %v4246, %v4306
      %v4308 = vpop.f32.mrf.mxu0
      %v4309 = vadd.f32 %v4250, %v4308
      %4310 = vdwg.mxu0
      %vm4311 = vcmp.ge.f32.partialorder %v4303, 0.0
      %vm4312 = vcmp.ge.f32.partialorder %v4305, 0.0
      %vm4313 = vcmp.ge.f32.partialorder %v4307, 0.0
      %vm4314 = vcmp.ge.f32.partialorder %v4309, 0.0
      %v4315 = vmul.f32 %v4303, 0.2
      %v4316 = vmul.f32 %v4305, 0.2
      %v4317 = vmul.f32 %v4307, 0.2
      %v4318 = vmul.f32 %v4309, 0.2
      %v4319 = vsel %vm4311, %v4303, %v4315
      %v4320 = vsel %vm4312, %v4305, %v4316
      %v4321 = vsel %vm4313, %v4307, %v4317
      %v4322 = vsel %vm4314, %v4309, %v4318
      %v4323 = vpack.c.bf16 %v4321, %v4319
      %v4324 = vpack.c.bf16 %v4322, %v4320
      %v4325 = vld [vmem:[%s7] sm:$0xff]
      %v4326 = vld [vmem:[%s7 + $0x8] sm:$0xff]
      %v4327 = vld [vmem:[%s7 + $0x10] sm:$0xff]
      %v4328 = vld [vmem:[%s7 + $0x18] sm:$0xff]
      %v4329 = vld [vmem:[%s7 + $0x20] sm:$0xff]
      %v4330 = vld [vmem:[%s7 + $0x28] sm:$0xff]
      %v4331 = vld [vmem:[%s7 + $0x30] sm:$0xff]
      %v4332 = vld [vmem:[%s7 + $0x38] sm:$0xff]
      %v4333 = vld [vmem:[%s7 + $0x40] sm:$0xff]
      %v4334 = vld [vmem:[%s7 + $0x48] sm:$0xff]
      %v4335 = vld [vmem:[%s7 + $0x50] sm:$0xff]
      %v4336 = vld [vmem:[%s7 + $0x58] sm:$0xff]
      %v4337 = vld [vmem:[%s7 + $0x60] sm:$0xff]
      %v4338 = vld [vmem:[%s7 + $0x68] sm:$0xff]
      %v4339 = vld [vmem:[%s7 + $0x70] sm:$0xff]
      %v4340 = vld [vmem:[%s7 + $0x78] sm:$0xff]
      %v4341 = vld [vmem:[%s7 + $0x80] sm:$0xff]
      %v4342 = vld [vmem:[%s7 + $0x88] sm:$0xff]
      %v4343 = vld [vmem:[%s7 + $0x90] sm:$0xff]
      %v4344 = vld [vmem:[%s7 + $0x98] sm:$0xff]
      %v4345 = vld [vmem:[%s7 + $0xa0] sm:$0xff]
      %v4346 = vld [vmem:[%s7 + $0xa8] sm:$0xff]
      %v4347 = vld [vmem:[%s7 + $0xb0] sm:$0xff]
      %v4348 = vld [vmem:[%s7 + $0xb8] sm:$0xff]
      %v4349 = vld [vmem:[%s7 + $0xc0] sm:$0xff]
      %v4350 = vld [vmem:[%s7 + $0xc8] sm:$0xff]
      %v4351 = vld [vmem:[%s7 + $0xd0] sm:$0xff]
      %v4352 = vld [vmem:[%s7 + $0xd8] sm:$0xff]
      %v4353 = vld [vmem:[%s7 + $0xe0] sm:$0xff]
      %v4354 = vld [vmem:[%s7 + $0xe8] sm:$0xff]
      %v4355 = vld [vmem:[%s7 + $0xf0] sm:$0xff]
      %v4356 = vld [vmem:[%s7 + $0xf8] sm:$0xff]
      %v4357 = vld [vmem:[%s7 + $0x100] sm:$0xff]
      %v4358 = vld [vmem:[%s7 + $0x108] sm:$0xff]
      %v4359 = vld [vmem:[%s7 + $0x110] sm:$0xff]
      %v4360 = vld [vmem:[%s7 + $0x118] sm:$0xff]
      %v4361 = vld [vmem:[%s7 + $0x120] sm:$0xff]
      %v4362 = vld [vmem:[%s7 + $0x128] sm:$0xff]
      %v4363 = vld [vmem:[%s7 + $0x130] sm:$0xff]
      %v4364 = vld [vmem:[%s7 + $0x138] sm:$0xff]
      %v4365 = vld [vmem:[%s7 + $0x140] sm:$0xff]
      %v4366 = vld [vmem:[%s7 + $0x148] sm:$0xff]
      %v4367 = vld [vmem:[%s7 + $0x150] sm:$0xff]
      %v4368 = vld [vmem:[%s7 + $0x158] sm:$0xff]
      %v4369 = vld [vmem:[%s7 + $0x160] sm:$0xff]
      %v4370 = vld [vmem:[%s7 + $0x168] sm:$0xff]
      %v4371 = vld [vmem:[%s7 + $0x170] sm:$0xff]
      %v4372 = vld [vmem:[%s7 + $0x178] sm:$0xff]
      %v4373 = vld [vmem:[%s7 + $0x180] sm:$0xff]
      %v4374 = vld [vmem:[%s7 + $0x188] sm:$0xff]
      %v4375 = vld [vmem:[%s7 + $0x190] sm:$0xff]
      %v4376 = vld [vmem:[%s7 + $0x198] sm:$0xff]
      %v4377 = vld [vmem:[%s7 + $0x1a0] sm:$0xff]
      %v4378 = vld [vmem:[%s7 + $0x1a8] sm:$0xff]
      %v4379 = vld [vmem:[%s7 + $0x1b0] sm:$0xff]
      %v4380 = vld [vmem:[%s7 + $0x1b8] sm:$0xff]
      %v4381 = vld [vmem:[%s7 + $0x1c0] sm:$0xff]
      %v4382 = vld [vmem:[%s7 + $0x1c8] sm:$0xff]
      %v4383 = vld [vmem:[%s7 + $0x1d0] sm:$0xff]
      %v4384 = vld [vmem:[%s7 + $0x1d8] sm:$0xff]
      %v4385 = vld [vmem:[%s7 + $0x1e0] sm:$0xff]
      %v4386 = vld [vmem:[%s7 + $0x1e8] sm:$0xff]
      %v4387 = vld [vmem:[%s7 + $0x1f0] sm:$0xff]
      %v4388 = vld [vmem:[%s7 + $0x1f8] sm:$0xff]
      %v4453 = vunpack.c.l.b16 %v4325
      %v4454 = vunpack.c.h.b16 %v4325
      %v4455 = vunpack.c.l.b16 %v4326
      %v4456 = vunpack.c.h.b16 %v4326
      %v4457 = vunpack.c.l.b16 %v4327
      %v4458 = vunpack.c.h.b16 %v4327
      %v4459 = vunpack.c.l.b16 %v4328
      %v4460 = vunpack.c.h.b16 %v4328
      %v4461 = vunpack.c.l.b16 %v4329
      %v4462 = vunpack.c.h.b16 %v4329
      %v4463 = vunpack.c.l.b16 %v4330
      %v4464 = vunpack.c.h.b16 %v4330
      %v4465 = vunpack.c.l.b16 %v4331
      %v4466 = vunpack.c.h.b16 %v4331
      %v4467 = vunpack.c.l.b16 %v4332
      %v4468 = vunpack.c.h.b16 %v4332
      %v4469 = vunpack.c.l.b16 %v4333
      %v4470 = vunpack.c.h.b16 %v4333
      %v4471 = vunpack.c.l.b16 %v4334
      %v4472 = vunpack.c.h.b16 %v4334
      %v4473 = vunpack.c.l.b16 %v4335
      %v4474 = vunpack.c.h.b16 %v4335
      %v4475 = vunpack.c.l.b16 %v4336
      %v4476 = vunpack.c.h.b16 %v4336
      %v4477 = vunpack.c.l.b16 %v4337
      %v4478 = vunpack.c.h.b16 %v4337
      %v4479 = vunpack.c.l.b16 %v4338
      %v4480 = vunpack.c.h.b16 %v4338
      %v4481 = vunpack.c.l.b16 %v4339
      %v4482 = vunpack.c.h.b16 %v4339
      %v4483 = vunpack.c.l.b16 %v4340
      %v4484 = vunpack.c.h.b16 %v4340
      %v4485 = vunpack.c.l.b16 %v4341
      %v4486 = vunpack.c.h.b16 %v4341
      %v4487 = vunpack.c.l.b16 %v4342
      %v4488 = vunpack.c.h.b16 %v4342
      %v4489 = vunpack.c.l.b16 %v4343
      %v4490 = vunpack.c.h.b16 %v4343
      %v4491 = vunpack.c.l.b16 %v4344
      %v4492 = vunpack.c.h.b16 %v4344
      %v4493 = vunpack.c.l.b16 %v4345
      %v4494 = vunpack.c.h.b16 %v4345
      %v4495 = vunpack.c.l.b16 %v4346
      %v4496 = vunpack.c.h.b16 %v4346
      %v4497 = vunpack.c.l.b16 %v4347
      %v4498 = vunpack.c.h.b16 %v4347
      %v4499 = vunpack.c.l.b16 %v4348
      %v4500 = vunpack.c.h.b16 %v4348
      %v4501 = vunpack.c.l.b16 %v4349
      %v4502 = vunpack.c.h.b16 %v4349
      %v4503 = vunpack.c.l.b16 %v4350
      %v4504 = vunpack.c.h.b16 %v4350
      %v4505 = vunpack.c.l.b16 %v4351
      %v4506 = vunpack.c.h.b16 %v4351
      %v4507 = vunpack.c.l.b16 %v4352
      %v4508 = vunpack.c.h.b16 %v4352
      %v4509 = vunpack.c.l.b16 %v4353
      %v4510 = vunpack.c.h.b16 %v4353
      %v4511 = vunpack.c.l.b16 %v4354
      %v4512 = vunpack.c.h.b16 %v4354
      %v4513 = vunpack.c.l.b16 %v4355
      %v4514 = vunpack.c.h.b16 %v4355
      %v4515 = vunpack.c.l.b16 %v4356
      %v4516 = vunpack.c.h.b16 %v4356
      %v4517 = vunpack.c.l.b16 %v4357
      %v4518 = vunpack.c.h.b16 %v4357
      %v4519 = vunpack.c.l.b16 %v4358
      %v4520 = vunpack.c.h.b16 %v4358
      %v4521 = vunpack.c.l.b16 %v4359
      %v4522 = vunpack.c.h.b16 %v4359
      %v4523 = vunpack.c.l.b16 %v4360
      %v4524 = vunpack.c.h.b16 %v4360
      %v4525 = vunpack.c.l.b16 %v4361
      %v4526 = vunpack.c.h.b16 %v4361
      %v4527 = vunpack.c.l.b16 %v4362
      %v4528 = vunpack.c.h.b16 %v4362
      %v4529 = vunpack.c.l.b16 %v4363
      %v4530 = vunpack.c.h.b16 %v4363
      %v4531 = vunpack.c.l.b16 %v4364
      %v4532 = vunpack.c.h.b16 %v4364
      %v4533 = vunpack.c.l.b16 %v4365
      %v4534 = vunpack.c.h.b16 %v4365
      %v4535 = vunpack.c.l.b16 %v4366
      %v4536 = vunpack.c.h.b16 %v4366
      %v4537 = vunpack.c.l.b16 %v4367
      %v4538 = vunpack.c.h.b16 %v4367
      %v4539 = vunpack.c.l.b16 %v4368
      %v4540 = vunpack.c.h.b16 %v4368
      %v4541 = vunpack.c.l.b16 %v4369
      %v4542 = vunpack.c.h.b16 %v4369
      %v4543 = vunpack.c.l.b16 %v4370
      %v4544 = vunpack.c.h.b16 %v4370
      %v4545 = vunpack.c.l.b16 %v4371
      %v4546 = vunpack.c.h.b16 %v4371
      %v4547 = vunpack.c.l.b16 %v4372
      %v4548 = vunpack.c.h.b16 %v4372
      %v4549 = vunpack.c.l.b16 %v4373
      %v4550 = vunpack.c.h.b16 %v4373
      %v4551 = vunpack.c.l.b16 %v4374
      %v4552 = vunpack.c.h.b16 %v4374
      %v4553 = vunpack.c.l.b16 %v4375
      %v4554 = vunpack.c.h.b16 %v4375
      %v4555 = vunpack.c.l.b16 %v4376
      %v4556 = vunpack.c.h.b16 %v4376
      %v4557 = vunpack.c.l.b16 %v4377
      %v4558 = vunpack.c.h.b16 %v4377
      %v4559 = vunpack.c.l.b16 %v4378
      %v4560 = vunpack.c.h.b16 %v4378
      %v4561 = vunpack.c.l.b16 %v4379
      %v4562 = vunpack.c.h.b16 %v4379
      %v4563 = vunpack.c.l.b16 %v4380
      %v4564 = vunpack.c.h.b16 %v4380
      %v4565 = vunpack.c.l.b16 %v4381
      %v4566 = vunpack.c.h.b16 %v4381
      %v4567 = vunpack.c.l.b16 %v4382
      %v4568 = vunpack.c.h.b16 %v4382
      %v4569 = vunpack.c.l.b16 %v4383
      %v4570 = vunpack.c.h.b16 %v4383
      %v4571 = vunpack.c.l.b16 %v4384
      %v4572 = vunpack.c.h.b16 %v4384
      %v4573 = vunpack.c.l.b16 %v4385
      %v4574 = vunpack.c.h.b16 %v4385
      %v4575 = vunpack.c.l.b16 %v4386
      %v4576 = vunpack.c.h.b16 %v4386
      %v4577 = vunpack.c.l.b16 %v4387
      %v4578 = vunpack.c.h.b16 %v4387
      %v4579 = vunpack.c.l.b16 %v4388
      %v4580 = vunpack.c.h.b16 %v4388
      %v4581 = vpack.c.b16 %v4457, %v4453
      %v4582 = vpack.c.b16 %v4458, %v4454
      %v4583 = vpack.c.b16 %v4459, %v4455
      %v4584 = vpack.c.b16 %v4460, %v4456
      %v4585 = vpack.c.b16 %v4465, %v4461
      %v4586 = vpack.c.b16 %v4466, %v4462
      %v4587 = vpack.c.b16 %v4467, %v4463
      %v4588 = vpack.c.b16 %v4468, %v4464
      %v4589 = vpack.c.b16 %v4473, %v4469
      %v4590 = vpack.c.b16 %v4474, %v4470
      %v4591 = vpack.c.b16 %v4475, %v4471
      %v4592 = vpack.c.b16 %v4476, %v4472
      %v4593 = vpack.c.b16 %v4481, %v4477
      %v4594 = vpack.c.b16 %v4482, %v4478
      %v4595 = vpack.c.b16 %v4483, %v4479
      %v4596 = vpack.c.b16 %v4484, %v4480
      %v4597 = vpack.c.b16 %v4489, %v4485
      %v4598 = vpack.c.b16 %v4490, %v4486
      %v4599 = vpack.c.b16 %v4491, %v4487
      %v4600 = vpack.c.b16 %v4492, %v4488
      %v4601 = vpack.c.b16 %v4497, %v4493
      %v4602 = vpack.c.b16 %v4498, %v4494
      %v4603 = vpack.c.b16 %v4499, %v4495
      %v4604 = vpack.c.b16 %v4500, %v4496
      %v4605 = vpack.c.b16 %v4505, %v4501
      %v4606 = vpack.c.b16 %v4506, %v4502
      %v4607 = vpack.c.b16 %v4507, %v4503
      %v4608 = vpack.c.b16 %v4508, %v4504
      %v4609 = vpack.c.b16 %v4513, %v4509
      %v4610 = vpack.c.b16 %v4514, %v4510
      %v4611 = vpack.c.b16 %v4515, %v4511
      %v4612 = vpack.c.b16 %v4516, %v4512
      %v4613 = vpack.c.b16 %v4521, %v4517
      %v4614 = vpack.c.b16 %v4522, %v4518
      %v4615 = vpack.c.b16 %v4523, %v4519
      %v4616 = vpack.c.b16 %v4524, %v4520
      %v4617 = vpack.c.b16 %v4529, %v4525
      %v4618 = vpack.c.b16 %v4530, %v4526
      %v4619 = vpack.c.b16 %v4531, %v4527
      %v4620 = vpack.c.b16 %v4532, %v4528
      %v4621 = vpack.c.b16 %v4537, %v4533
      %v4622 = vpack.c.b16 %v4538, %v4534
      %v4623 = vpack.c.b16 %v4539, %v4535
      %v4624 = vpack.c.b16 %v4540, %v4536
      %v4625 = vpack.c.b16 %v4545, %v4541
      %v4626 = vpack.c.b16 %v4546, %v4542
      %v4627 = vpack.c.b16 %v4547, %v4543
      %v4628 = vpack.c.b16 %v4548, %v4544
      %v4629 = vpack.c.b16 %v4553, %v4549
      %v4630 = vpack.c.b16 %v4554, %v4550
      %v4631 = vpack.c.b16 %v4555, %v4551
      %v4632 = vpack.c.b16 %v4556, %v4552
      %v4633 = vpack.c.b16 %v4561, %v4557
      %v4634 = vpack.c.b16 %v4562, %v4558
      %v4635 = vpack.c.b16 %v4563, %v4559
      %v4636 = vpack.c.b16 %v4564, %v4560
      %v4637 = vpack.c.b16 %v4569, %v4565
      %v4638 = vpack.c.b16 %v4570, %v4566
      %v4639 = vpack.c.b16 %v4571, %v4567
      %v4640 = vpack.c.b16 %v4572, %v4568
      %v4641 = vpack.c.b16 %v4577, %v4573
      %v4642 = vpack.c.b16 %v4578, %v4574
      %v4643 = vpack.c.b16 %v4579, %v4575
      %v4644 = vpack.c.b16 %v4580, %v4576
      %4709 = vmatprep.subr.bf16.mxu0 %v4610
      %4710 = vmatpush1.bf16.msra.mxu0 %v4609
      %4711 = vmatprep.subr.bf16.mxu0 %v4606
      %4712 = vmatpush1.bf16.msra.mxu0 %v4605
      %4713 = vmatprep.subr.bf16.mxu0 %v4602
      %4714 = vmatpush1.bf16.msra.mxu0 %v4601
      %4715 = vmatprep.subr.bf16.mxu0 %v4598
      %4716 = vmatpush1.bf16.msra.mxu0 %v4597
      %4717 = vmatprep.subr.bf16.mxu0 %v4594
      %4718 = vmatpush1.bf16.msra.mxu0 %v4593
      %4719 = vmatprep.subr.bf16.mxu0 %v4590
      %4720 = vmatpush1.bf16.msra.mxu0 %v4589
      %4721 = vmatprep.subr.bf16.mxu0 %v4586
      %4722 = vmatpush1.bf16.msra.mxu0 %v4585
      %4723 = vmatprep.subr.bf16.mxu0 %v4582
      %4724 = vmatpush1.bf16.msra.mxu0 %v4581
      %4725 = vmatprep.subr.bf16.mxu0 %v4642
      %4726 = vmatpush2.bf16.msra.mxu0 %v4641
      %4727 = vmatprep.subr.bf16.mxu0 %v4638
      %4728 = vmatpush2.bf16.msra.mxu0 %v4637
      %4729 = vmatprep.subr.bf16.mxu0 %v4634
      %4730 = vmatpush2.bf16.msra.mxu0 %v4633
      %4731 = vmatprep.subr.bf16.mxu0 %v4630
      %4732 = vmatpush2.bf16.msra.mxu0 %v4629
      %4733 = vmatprep.subr.bf16.mxu0 %v4626
      %4734 = vmatpush2.bf16.msra.mxu0 %v4625
      %4735 = vmatprep.subr.bf16.mxu0 %v4622
      %4736 = vmatpush2.bf16.msra.mxu0 %v4621
      %4737 = vmatprep.subr.bf16.mxu0 %v4618
      %4738 = vmatpush2.bf16.msra.mxu0 %v4617
      %4739 = vmatprep.subr.bf16.mxu0 %v4614
      %4740 = vmatpush2.bf16.msra.mxu0 %v4613
      %4741 = vmatprep.mubr.bf16.mxu0 %v4324
      %4742 = vmatmul.mubr.bf16.gmra.mxu0 %v4323
      %v4743 = vpop.f32.mrf.mxu0
      %v4744 = vadd.f32 0.0, %v4743
      %v4745 = vpop.f32.mrf.mxu0
      %v4746 = vadd.f32 0.0, %v4745
      %v4747 = vpop.f32.mrf.mxu0
      %v4748 = vadd.f32 0.0, %v4747
      %v4749 = vpop.f32.mrf.mxu0
      %v4750 = vadd.f32 0.0, %v4749
      %4751 = vdwg.mxu0
      %4752 = vmatprep.subr.bf16.mxu0 %v4612
      %4753 = vmatpush1.bf16.msra.mxu0 %v4611
      %4754 = vmatprep.subr.bf16.mxu0 %v4608
      %4755 = vmatpush1.bf16.msra.mxu0 %v4607
      %4756 = vmatprep.subr.bf16.mxu0 %v4604
      %4757 = vmatpush1.bf16.msra.mxu0 %v4603
      %4758 = vmatprep.subr.bf16.mxu0 %v4600
      %4759 = vmatpush1.bf16.msra.mxu0 %v4599
      %4760 = vmatprep.subr.bf16.mxu0 %v4596
      %4761 = vmatpush1.bf16.msra.mxu0 %v4595
      %4762 = vmatprep.subr.bf16.mxu0 %v4592
      %4763 = vmatpush1.bf16.msra.mxu0 %v4591
      %4764 = vmatprep.subr.bf16.mxu0 %v4588
      %4765 = vmatpush1.bf16.msra.mxu0 %v4587
      %4766 = vmatprep.subr.bf16.mxu0 %v4584
      %4767 = vmatpush1.bf16.msra.mxu0 %v4583
      %4768 = vmatprep.subr.bf16.mxu0 %v4644
      %4769 = vmatpush2.bf16.msra.mxu0 %v4643
      %4770 = vmatprep.subr.bf16.mxu0 %v4640
      %4771 = vmatpush2.bf16.msra.mxu0 %v4639
      %4772 = vmatprep.subr.bf16.mxu0 %v4636
      %4773 = vmatpush2.bf16.msra.mxu0 %v4635
      %4774 = vmatprep.subr.bf16.mxu0 %v4632
      %4775 = vmatpush2.bf16.msra.mxu0 %v4631
      %4776 = vmatprep.subr.bf16.mxu0 %v4628
      %4777 = vmatpush2.bf16.msra.mxu0 %v4627
      %4778 = vmatprep.subr.bf16.mxu0 %v4624
      %4779 = vmatpush2.bf16.msra.mxu0 %v4623
      %4780 = vmatprep.subr.bf16.mxu0 %v4620
      %4781 = vmatpush2.bf16.msra.mxu0 %v4619
      %4782 = vmatprep.subr.bf16.mxu0 %v4616
      %4783 = vmatpush2.bf16.msra.mxu0 %v4615
      %4784 = vmatprep.mubr.bf16.mxu0 %v4324
      %4785 = vmatmul.mubr.bf16.gmra.mxu0 %v4323
      %v4786 = vpop.f32.mrf.mxu0
      %v4787 = vadd.f32 0.0, %v4786
      %v4788 = vpop.f32.mrf.mxu0
      %v4789 = vadd.f32 0.0, %v4788
      %v4790 = vpop.f32.mrf.mxu0
      %v4791 = vadd.f32 0.0, %v4790
      %v4792 = vpop.f32.mrf.mxu0
      %v4793 = vadd.f32 0.0, %v4792
      %4794 = vdwg.mxu0
      %v4797 = vrot.slane %v4746, 5
      %v4798 = vrot.slane %v4750, 5
      %v4799 = vsel %vm1742, %v4797, %v4798
      %vm4804 = vcmask 1045504
      %v4805 = vrot.slane %v4787, 2
      %v4806 = vrot.slane %v4791, 2
      %v4807 = vsel %vm4804, %v4805, %v4806
      %v4813 = vrot.slane %v4789, 7
      %v4814 = vrot.slane %v4793, 7
      %v4815 = vsel %vm1732, %v4813, %v4814
      %v4818 = vsel %vm1742, %v4748, %v4797
      %v4819 = vsel %vm4804, %v4799, %v4805
      %v4820 = vsel %vm1732, %v4806, %v4813
      %v4821 = vld [vmem:[%s9] sm:$0xf]
      %v4822 = vld [vmem:[%s9 + $0x4] sm:$0xf]
      %v4823 = vld [vmem:[%s9 + $0x8] sm:$0xf]
      %v4824 = vpack.c.bf16 %v4818, %v4744
      %v4825 = vpack.c.bf16 %v4807, %v4819
      %v4826 = vpack.c.bf16 %v4815, %v4820
      %v4827 = vld [vmem:[%s8] sm:$0x1]
      %v4829 = vlaneseq
      %v4830 = vshrl.u32 %v4829, 7
      %v4831 = vsub.s32 0, %v4830
      %v4832 = vrot.slane %v4827, %v4831
      %v4837 = vunpack.c.l.b16 %v4821
      %v4838 = vunpack.c.l.b16 %v4822
      %v4839 = vunpack.c.l.b16 %v4823
      %v4840 = vpack.c.b16 %v4838, %v4837
      %v4841 = vpack.c.b16 %v4839, %v4839
      %vm4842 = vcmask 359424
      %v4844 = vsel %vm4842, %v4840, 0
      %v4847 = vsel %vm4842, %v4841, 0
      %v4850 = vsel %vm4804, %v4826, 0
      %4852 = vmatprep.subr.bf16.mxu0 0
      %4853 = vmatpush1.bf16.msra.mxu0 0
      %4854 = vmatprep.subr.bf16.mxu0 0
      %4855 = vmatpush1.bf16.msra.mxu0 0
      %4856 = vmatprep.subr.bf16.mxu0 0
      %4857 = vmatpush1.bf16.msra.mxu0 0
      %4858 = vmatprep.subr.bf16.mxu0 0
      %4859 = vmatpush1.bf16.msra.mxu0 0
      %4860 = vmatprep.subr.bf16.mxu0 0
      %4861 = vmatpush1.bf16.msra.mxu0 0
      %4862 = vmatprep.subr.bf16.mxu0 0
      %4863 = vmatpush1.bf16.msra.mxu0 %v4850
      %4864 = vmatprep.subr.bf16.mxu0 0
      %4865 = vmatpush1.bf16.msra.mxu0 %v4825
      %4866 = vmatprep.subr.bf16.mxu0 0
      %4867 = vmatpush1.bf16.msra.mxu0 %v4824
      %4868 = vmatprep.subr.bf16.mxu0 0
      %4869 = vmatpush2.bf16.msra.mxu0 0
      %4870 = vmatprep.subr.bf16.mxu0 0
      %4871 = vmatpush2.bf16.msra.mxu0 0
      %4872 = vmatprep.subr.bf16.mxu0 0
      %4873 = vmatpush2.bf16.msra.mxu0 0
      %4874 = vmatprep.subr.bf16.mxu0 0
      %4875 = vmatpush2.bf16.msra.mxu0 0
      %4876 = vmatprep.subr.bf16.mxu0 0
      %4877 = vmatpush2.bf16.msra.mxu0 0
      %4878 = vmatprep.subr.bf16.mxu0 0
      %4879 = vmatpush2.bf16.msra.mxu0 0
      %4880 = vmatprep.subr.bf16.mxu0 0
      %4881 = vmatpush2.bf16.msra.mxu0 0
      %4882 = vmatprep.subr.bf16.mxu0 0
      %4883 = vmatpush2.bf16.msra.mxu0 0
      %4884 = vmatprep.mubr.bf16.mxu0 0
      %4885 = vmatmul.mubr.bf16.gmra.mxu0 %v4844
      %v4886 = vpop.f32.mrf.mxu0
      %v4887 = vadd.f32 %v4832, %v4886
      %v4888 = vpop.f32.mrf.mxu0
      %v4889 = vpop.f32.mrf.mxu0
      %v4890 = vadd.f32 %v4832, %v4889
      %v4891 = vpop.f32.mrf.mxu0
      %4892 = vmatprep.mubr.bf16.mxu0 0
      %4893 = vmatmul.mubr.bf16.gmra.mxu0 %v4847
      %v4894 = vpop.f32.mrf.mxu0
      %v4895 = vadd.f32 %v4832, %v4894
      %v4896 = vpop.f32.mrf.mxu0
      %v4897 = vpop.f32.mrf.mxu0
      %v4898 = vpop.f32.mrf.mxu0
      %4899 = vdwg.mxu0
      %vm4900 = vcmp.ge.f32.partialorder %v4887, 0.0
      %vm4901 = vcmp.ge.f32.partialorder %v4890, 0.0
      %vm4902 = vcmp.ge.f32.partialorder %v4895, 0.0
      %v4903 = vmul.f32 %v4887, 0.2
      %v4904 = vmul.f32 %v4890, 0.2
      %v4905 = vmul.f32 %v4895, 0.2
      %v4906 = vsel %vm4900, %v4887, %v4903
      %v4907 = vsel %vm4901, %v4890, %v4904
      %v4908 = vsel %vm4902, %v4895, %v4905
      %v4909 = vpack.c.bf16 %v4907, %v4906
      %v4910 = vpack.c.bf16 %v4908, %v4908
      %v4911 = vld [vmem:[%s10] sm:$0xff]
      %v4912 = vld [vmem:[%s10 + $0x8] sm:$0xf]
      %v4913 = vld [vmem:[%s10 + $0xc] sm:$0xff]
      %v4914 = vld [vmem:[%s10 + $0x14] sm:$0xf]
      %v4915 = vld [vmem:[%s10 + $0x18] sm:$0xff]
      %v4916 = vld [vmem:[%s10 + $0x20] sm:$0xf]
      %v4917 = vld [vmem:[%s10 + $0x24] sm:$0xff]
      %v4918 = vld [vmem:[%s10 + $0x2c] sm:$0xf]
      %v4919 = vld [vmem:[%s10 + $0x30] sm:$0xff]
      %v4920 = vld [vmem:[%s10 + $0x38] sm:$0xf]
      %v4921 = vld [vmem:[%s10 + $0x3c] sm:$0xff]
      %v4922 = vld [vmem:[%s10 + $0x44] sm:$0xf]
      %v4923 = vld [vmem:[%s10 + $0x48] sm:$0xff]
      %v4924 = vld [vmem:[%s10 + $0x50] sm:$0xf]
      %v4925 = vld [vmem:[%s10 + $0x54] sm:$0xff]
      %v4926 = vld [vmem:[%s10 + $0x5c] sm:$0xf]
      %v4927 = vld [vmem:[%s10 + $0x60] sm:$0xff]
      %v4928 = vld [vmem:[%s10 + $0x68] sm:$0xf]
      %v4929 = vld [vmem:[%s10 + $0x6c] sm:$0xff]
      %v4930 = vld [vmem:[%s10 + $0x74] sm:$0xf]
      %v4931 = vld [vmem:[%s10 + $0x78] sm:$0xff]
      %v4932 = vld [vmem:[%s10 + $0x80] sm:$0xf]
      %v4933 = vld [vmem:[%s10 + $0x84] sm:$0xff]
      %v4934 = vld [vmem:[%s10 + $0x8c] sm:$0xf]
      %v4935 = vld [vmem:[%s10 + $0x90] sm:$0xff]
      %v4936 = vld [vmem:[%s10 + $0x98] sm:$0xf]
      %v4937 = vld [vmem:[%s10 + $0x9c] sm:$0xff]
      %v4938 = vld [vmem:[%s10 + $0xa4] sm:$0xf]
      %v4939 = vld [vmem:[%s10 + $0xa8] sm:$0xff]
      %v4940 = vld [vmem:[%s10 + $0xb0] sm:$0xf]
      %v4941 = vld [vmem:[%s10 + $0xb4] sm:$0xff]
      %v4942 = vld [vmem:[%s10 + $0xbc] sm:$0xf]
      %v4975 = vunpack.c.l.b16 %v4911
      %v4976 = vunpack.c.h.b16 %v4911
      %v4977 = vunpack.c.l.b16 %v4912
      %v4978 = vunpack.c.l.b16 %v4913
      %v4979 = vunpack.c.h.b16 %v4913
      %v4980 = vunpack.c.l.b16 %v4914
      %v4981 = vunpack.c.l.b16 %v4915
      %v4982 = vunpack.c.h.b16 %v4915
      %v4983 = vunpack.c.l.b16 %v4916
      %v4984 = vunpack.c.l.b16 %v4917
      %v4985 = vunpack.c.h.b16 %v4917
      %v4986 = vunpack.c.l.b16 %v4918
      %v4987 = vunpack.c.l.b16 %v4919
      %v4988 = vunpack.c.h.b16 %v4919
      %v4989 = vunpack.c.l.b16 %v4920
      %v4990 = vunpack.c.l.b16 %v4921
      %v4991 = vunpack.c.h.b16 %v4921
      %v4992 = vunpack.c.l.b16 %v4922
      %v4993 = vunpack.c.l.b16 %v4923
      %v4994 = vunpack.c.h.b16 %v4923
      %v4995 = vunpack.c.l.b16 %v4924
      %v4996 = vunpack.c.l.b16 %v4925
      %v4997 = vunpack.c.h.b16 %v4925
      %v4998 = vunpack.c.l.b16 %v4926
      %v4999 = vunpack.c.l.b16 %v4927
      %v5000 = vunpack.c.h.b16 %v4927
      %v5001 = vunpack.c.l.b16 %v4928
      %v5002 = vunpack.c.l.b16 %v4929
      %v5003 = vunpack.c.h.b16 %v4929
      %v5004 = vunpack.c.l.b16 %v4930
      %v5005 = vunpack.c.l.b16 %v4931
      %v5006 = vunpack.c.h.b16 %v4931
      %v5007 = vunpack.c.l.b16 %v4932
      %v5008 = vunpack.c.l.b16 %v4933
      %v5009 = vunpack.c.h.b16 %v4933
      %v5010 = vunpack.c.l.b16 %v4934
      %v5011 = vunpack.c.l.b16 %v4935
      %v5012 = vunpack.c.h.b16 %v4935
      %v5013 = vunpack.c.l.b16 %v4936
      %v5014 = vunpack.c.l.b16 %v4937
      %v5015 = vunpack.c.h.b16 %v4937
      %v5016 = vunpack.c.l.b16 %v4938
      %v5017 = vunpack.c.l.b16 %v4939
      %v5018 = vunpack.c.h.b16 %v4939
      %v5019 = vunpack.c.l.b16 %v4940
      %v5020 = vunpack.c.l.b16 %v4941
      %v5021 = vunpack.c.h.b16 %v4941
      %v5022 = vunpack.c.l.b16 %v4942
      %v5023 = vpack.c.b16 %v4978, %v4975
      %v5024 = vpack.c.b16 %v4979, %v4976
      %v5025 = vpack.c.b16 %v4980, %v4977
      %v5026 = vpack.c.b16 %v4984, %v4981
      %v5027 = vpack.c.b16 %v4985, %v4982
      %v5028 = vpack.c.b16 %v4986, %v4983
      %v5029 = vpack.c.b16 %v4990, %v4987
      %v5030 = vpack.c.b16 %v4991, %v4988
      %v5031 = vpack.c.b16 %v4992, %v4989
      %v5032 = vpack.c.b16 %v4996, %v4993
      %v5033 = vpack.c.b16 %v4997, %v4994
      %v5034 = vpack.c.b16 %v4998, %v4995
      %v5035 = vpack.c.b16 %v5002, %v4999
      %v5036 = vpack.c.b16 %v5003, %v5000
      %v5037 = vpack.c.b16 %v5004, %v5001
      %v5038 = vpack.c.b16 %v5008, %v5005
      %v5039 = vpack.c.b16 %v5009, %v5006
      %v5040 = vpack.c.b16 %v5010, %v5007
      %v5041 = vpack.c.b16 %v5014, %v5011
      %v5042 = vpack.c.b16 %v5015, %v5012
      %v5043 = vpack.c.b16 %v5016, %v5013
      %v5044 = vpack.c.b16 %v5020, %v5017
      %v5045 = vpack.c.b16 %v5021, %v5018
      %v5046 = vpack.c.b16 %v5022, %v5019
      %5071 = vmatprep.subr.bf16.mxu0 %v5045
      %5072 = vmatpush1.bf16.msra.mxu0 %v5044
      %5073 = vmatprep.subr.bf16.mxu0 %v5042
      %5074 = vmatpush1.bf16.msra.mxu0 %v5041
      %5075 = vmatprep.subr.bf16.mxu0 %v5039
      %5076 = vmatpush1.bf16.msra.mxu0 %v5038
      %5077 = vmatprep.subr.bf16.mxu0 %v5036
      %5078 = vmatpush1.bf16.msra.mxu0 %v5035
      %5079 = vmatprep.subr.bf16.mxu0 %v5033
      %5080 = vmatpush1.bf16.msra.mxu0 %v5032
      %5081 = vmatprep.subr.bf16.mxu0 %v5030
      %5082 = vmatpush1.bf16.msra.mxu0 %v5029
      %5083 = vmatprep.subr.bf16.mxu0 %v5027
      %5084 = vmatpush1.bf16.msra.mxu0 %v5026
      %5085 = vmatprep.subr.bf16.mxu0 %v5024
      %5086 = vmatpush1.bf16.msra.mxu0 %v5023
      %5087 = vmatprep.subr.bf16.mxu0 0
      %5088 = vmatpush2.bf16.msra.mxu0 0
      %5089 = vmatprep.subr.bf16.mxu0 0
      %5090 = vmatpush2.bf16.msra.mxu0 0
      %5091 = vmatprep.subr.bf16.mxu0 0
      %5092 = vmatpush2.bf16.msra.mxu0 0
      %5093 = vmatprep.subr.bf16.mxu0 0
      %5094 = vmatpush2.bf16.msra.mxu0 0
      %5095 = vmatprep.subr.bf16.mxu0 0
      %5096 = vmatpush2.bf16.msra.mxu0 0
      %5097 = vmatprep.subr.bf16.mxu0 0
      %5098 = vmatpush2.bf16.msra.mxu0 0
      %5099 = vmatprep.subr.bf16.mxu0 0
      %5100 = vmatpush2.bf16.msra.mxu0 0
      %5101 = vmatprep.subr.bf16.mxu0 0
      %5102 = vmatpush2.bf16.msra.mxu0 0
      %5103 = vmatprep.mubr.bf16.mxu0 0
      %5104 = vmatmul.mubr.bf16.gmra.mxu0 %v4909
      %v5105 = vpop.f32.mrf.mxu0
      %v5106 = vadd.f32 0.0, %v5105
      %v5107 = vpop.f32.mrf.mxu0
      %v5108 = vadd.f32 0.0, %v5107
      %v5109 = vpop.f32.mrf.mxu0
      %v5110 = vadd.f32 0.0, %v5109
      %v5111 = vpop.f32.mrf.mxu0
      %v5112 = vadd.f32 0.0, %v5111
      %5113 = vmatprep.mubr.bf16.mxu0 0
      %5114 = vmatmul.mubr.bf16.gmra.mxu0 %v4910
      %v5115 = vpop.f32.mrf.mxu0
      %v5116 = vadd.f32 0.0, %v5115
      %v5117 = vpop.f32.mrf.mxu0
      %v5118 = vadd.f32 0.0, %v5117
      %v5119 = vpop.f32.mrf.mxu0
      %v5120 = vpop.f32.mrf.mxu0
      %5121 = vdwg.mxu0
      %5122 = vmatprep.subr.bf16.mxu0 0
      %5123 = vmatpush1.bf16.msra.mxu0 %v5046
      %5124 = vmatprep.subr.bf16.mxu0 0
      %5125 = vmatpush1.bf16.msra.mxu0 %v5043
      %5126 = vmatprep.subr.bf16.mxu0 0
      %5127 = vmatpush1.bf16.msra.mxu0 %v5040
      %5128 = vmatprep.subr.bf16.mxu0 0
      %5129 = vmatpush1.bf16.msra.mxu0 %v5037
      %5130 = vmatprep.subr.bf16.mxu0 0
      %5131 = vmatpush1.bf16.msra.mxu0 %v5034
      %5132 = vmatprep.subr.bf16.mxu0 0
      %5133 = vmatpush1.bf16.msra.mxu0 %v5031
      %5134 = vmatprep.subr.bf16.mxu0 0
      %5135 = vmatpush1.bf16.msra.mxu0 %v5028
      %5136 = vmatprep.subr.bf16.mxu0 0
      %5137 = vmatpush1.bf16.msra.mxu0 %v5025
      %5138 = vmatprep.subr.bf16.mxu0 0
      %5139 = vmatpush2.bf16.msra.mxu0 0
      %5140 = vmatprep.subr.bf16.mxu0 0
      %5141 = vmatpush2.bf16.msra.mxu0 0
      %5142 = vmatprep.subr.bf16.mxu0 0
      %5143 = vmatpush2.bf16.msra.mxu0 0
      %5144 = vmatprep.subr.bf16.mxu0 0
      %5145 = vmatpush2.bf16.msra.mxu0 0
      %5146 = vmatprep.subr.bf16.mxu0 0
      %5147 = vmatpush2.bf16.msra.mxu0 0
      %5148 = vmatprep.subr.bf16.mxu0 0
      %5149 = vmatpush2.bf16.msra.mxu0 0
      %5150 = vmatprep.subr.bf16.mxu0 0
      %5151 = vmatpush2.bf16.msra.mxu0 0
      %5152 = vmatprep.subr.bf16.mxu0 0
      %5153 = vmatpush2.bf16.msra.mxu0 0
      %5154 = vmatprep.mubr.bf16.mxu0 0
      %5155 = vmatmul.mubr.bf16.gmra.mxu0 %v4909
      %v5156 = vpop.f32.mrf.mxu0
      %v5157 = vadd.f32 0.0, %v5156
      %v5158 = vpop.f32.mrf.mxu0
      %v5159 = vpop.f32.mrf.mxu0
      %v5160 = vadd.f32 0.0, %v5159
      %v5161 = vpop.f32.mrf.mxu0
      %5162 = vmatprep.mubr.bf16.mxu0 0
      %5163 = vmatmul.mubr.bf16.gmra.mxu0 %v4910
      %v5164 = vpop.f32.mrf.mxu0
      %v5165 = vadd.f32 0.0, %v5164
      %v5166 = vpop.f32.mrf.mxu0
      %v5167 = vpop.f32.mrf.mxu0
      %v5168 = vpop.f32.mrf.mxu0
      %5169 = vdwg.mxu0
      %v5170 = vld [vmem:[%s12] sm:$0xf]
      %v5171 = vld [vmem:[%s12 + $0x4] sm:$0xf]
      %v5172 = vld [vmem:[%s12 + $0x8] sm:$0xf]
      %v5173 = vld [vmem:[%s12 + $0xc] sm:$0xf]
      %v5174 = vld [vmem:[%s12 + $0x10] sm:$0xf]
      %v5175 = vld [vmem:[%s12 + $0x14] sm:$0xf]
      %v5176 = vld [vmem:[%s12 + $0x18] sm:$0x1]
      %v5177 = vpack.c.bf16 %v5110, %v5106
      %v5178 = vpack.c.bf16 %v5108, %v5116
      %v5179 = vpack.c.bf16 %v5118, %v5112
      %v5180 = vpack.c.bf16 %v5160, %v5157
      %v5181 = vpack.c.bf16 %v5165, %v5165
      %v5182 = vld [vmem:[%s11] sm:$0x1]
      %v5184 = vlaneseq
      %v5185 = vshrl.u32 %v5184, 7
      %v5186 = vsub.s32 0, %v5185
      %v5187 = vrot.slane %v5182, %v5186
      %v5196 = vunpack.c.l.b16 %v5170
      %v5197 = vunpack.c.l.b16 %v5171
      %v5198 = vunpack.c.l.b16 %v5172
      %v5199 = vunpack.c.l.b16 %v5173
      %v5200 = vunpack.c.l.b16 %v5174
      %v5201 = vunpack.c.l.b16 %v5175
      %v5202 = vunpack.c.l.b16 %v5176
      %v5203 = vpack.c.b16 %v5197, %v5196
      %v5204 = vpack.c.b16 %v5199, %v5198
      %v5205 = vpack.c.b16 %v5201, %v5200
      %v5206 = vpack.c.b16 %v5202, %v5202
      %vm5207 = vcmask 588800
      %v5209 = vsel %vm5207, %v5203, 0
      %v5212 = vsel %vm5207, %v5204, 0
      %v5215 = vsel %vm5207, %v5205, 0
      %v5218 = vsel %vm5207, %v5206, 0
      %v5221 = vsel %vm4230, %v5181, 0
      %5223 = vmatprep.subr.bf16.mxu0 0
      %5224 = vmatpush1.bf16.msra.mxu0 0
      %5225 = vmatprep.subr.bf16.mxu0 0
      %5226 = vmatpush1.bf16.msra.mxu0 0
      %5227 = vmatprep.subr.bf16.mxu0 0
      %5228 = vmatpush1.bf16.msra.mxu0 0
      %5229 = vmatprep.subr.bf16.mxu0 0
      %5230 = vmatpush1.bf16.msra.mxu0 %v5221
      %5231 = vmatprep.subr.bf16.mxu0 0
      %5232 = vmatpush1.bf16.msra.mxu0 %v5180
      %5233 = vmatprep.subr.bf16.mxu0 0
      %5234 = vmatpush1.bf16.msra.mxu0 %v5179
      %5235 = vmatprep.subr.bf16.mxu0 0
      %5236 = vmatpush1.bf16.msra.mxu0 %v5178
      %5237 = vmatprep.subr.bf16.mxu0 0
      %5238 = vmatpush1.bf16.msra.mxu0 %v5177
      %5239 = vmatprep.subr.bf16.mxu0 0
      %5240 = vmatpush2.bf16.msra.mxu0 0
      %5241 = vmatprep.subr.bf16.mxu0 0
      %5242 = vmatpush2.bf16.msra.mxu0 0
      %5243 = vmatprep.subr.bf16.mxu0 0
      %5244 = vmatpush2.bf16.msra.mxu0 0
      %5245 = vmatprep.subr.bf16.mxu0 0
      %5246 = vmatpush2.bf16.msra.mxu0 0
      %5247 = vmatprep.subr.bf16.mxu0 0
      %5248 = vmatpush2.bf16.msra.mxu0 0
      %5249 = vmatprep.subr.bf16.mxu0 0
      %5250 = vmatpush2.bf16.msra.mxu0 0
      %5251 = vmatprep.subr.bf16.mxu0 0
      %5252 = vmatpush2.bf16.msra.mxu0 0
      %5253 = vmatprep.subr.bf16.mxu0 0
      %5254 = vmatpush2.bf16.msra.mxu0 0
      %5255 = vmatprep.mubr.bf16.mxu0 0
      %5256 = vmatmul.mubr.bf16.gmra.mxu0 %v5209
      %v5257 = vpop.f32.mrf.mxu0
      %v5258 = vadd.f32 %v5187, %v5257
      %v5259 = vpop.f32.mrf.mxu0
      %v5260 = vpop.f32.mrf.mxu0
      %v5261 = vadd.f32 %v5187, %v5260
      %v5262 = vpop.f32.mrf.mxu0
      %5263 = vmatprep.mubr.bf16.mxu0 0
      %5264 = vmatmul.mubr.bf16.gmra.mxu0 %v5212
      %v5265 = vpop.f32.mrf.mxu0
      %v5266 = vadd.f32 %v5187, %v5265
      %v5267 = vpop.f32.mrf.mxu0
      %v5268 = vpop.f32.mrf.mxu0
      %v5269 = vadd.f32 %v5187, %v5268
      %v5270 = vpop.f32.mrf.mxu0
      %5271 = vmatprep.mubr.bf16.mxu0 0
      %5272 = vmatmul.mubr.bf16.gmra.mxu0 %v5215
      %v5273 = vpop.f32.mrf.mxu0
      %v5274 = vadd.f32 %v5187, %v5273
      %v5275 = vpop.f32.mrf.mxu0
      %v5276 = vpop.f32.mrf.mxu0
      %v5277 = vadd.f32 %v5187, %v5276
      %v5278 = vpop.f32.mrf.mxu0
      %5279 = vmatprep.mubr.bf16.mxu0 0
      %5280 = vmatmul.mubr.bf16.gmra.mxu0 %v5218
      %v5281 = vpop.f32.mrf.mxu0
      %v5282 = vadd.f32 %v5187, %v5281
      %v5283 = vpop.f32.mrf.mxu0
      %v5284 = vpop.f32.mrf.mxu0
      %v5285 = vpop.f32.mrf.mxu0
      %5286 = vdwg.mxu0
      %vm5287 = vcmp.ge.f32.partialorder %v5258, 0.0
      %vm5288 = vcmp.ge.f32.partialorder %v5261, 0.0
      %vm5289 = vcmp.ge.f32.partialorder %v5266, 0.0
      %vm5290 = vcmp.ge.f32.partialorder %v5269, 0.0
      %vm5291 = vcmp.ge.f32.partialorder %v5274, 0.0
      %vm5292 = vcmp.ge.f32.partialorder %v5277, 0.0
      %vm5293 = vcmp.ge.f32.partialorder %v5282, 0.0
      %v5294 = vmul.f32 %v5258, 0.2
      %v5295 = vmul.f32 %v5261, 0.2
      %v5296 = vmul.f32 %v5266, 0.2
      %v5297 = vmul.f32 %v5269, 0.2
      %v5298 = vmul.f32 %v5274, 0.2
      %v5299 = vmul.f32 %v5277, 0.2
      %v5300 = vmul.f32 %v5282, 0.2
      %v5301 = vsel %vm5287, %v5258, %v5294
      %v5302 = vsel %vm5288, %v5261, %v5295
      %v5303 = vsel %vm5289, %v5266, %v5296
      %v5304 = vsel %vm5290, %v5269, %v5297
      %v5305 = vsel %vm5291, %v5274, %v5298
      %v5306 = vsel %vm5292, %v5277, %v5299
      %v5307 = vsel %vm5293, %v5282, %v5300
      %v5308 = vpack.c.bf16 %v5302, %v5301
      %v5309 = vpack.c.bf16 %v5304, %v5303
      %v5310 = vpack.c.bf16 %v5306, %v5305
      %v5311 = vpack.c.bf16 %v5307, %v5307
      %v5312 = vld [vmem:[%s13] sm:$0xff]
      %v5313 = vld [vmem:[%s13 + $0x8] sm:$0xf]
      %v5314 = vld [vmem:[%s13 + $0xc] sm:$0xff]
      %v5315 = vld [vmem:[%s13 + $0x14] sm:$0xf]
      %v5316 = vld [vmem:[%s13 + $0x18] sm:$0xff]
      %v5317 = vld [vmem:[%s13 + $0x20] sm:$0xf]
      %v5318 = vld [vmem:[%s13 + $0x24] sm:$0xff]
      %v5319 = vld [vmem:[%s13 + $0x2c] sm:$0xf]
      %v5320 = vld [vmem:[%s13 + $0x30] sm:$0xff]
      %v5321 = vld [vmem:[%s13 + $0x38] sm:$0xf]
      %v5322 = vld [vmem:[%s13 + $0x3c] sm:$0xff]
      %v5323 = vld [vmem:[%s13 + $0x44] sm:$0xf]
      %v5324 = vld [vmem:[%s13 + $0x48] sm:$0xff]
      %v5325 = vld [vmem:[%s13 + $0x50] sm:$0xf]
      %v5326 = vld [vmem:[%s13 + $0x54] sm:$0xff]
      %v5327 = vld [vmem:[%s13 + $0x5c] sm:$0xf]
      %v5328 = vld [vmem:[%s13 + $0x60] sm:$0xff]
      %v5329 = vld [vmem:[%s13 + $0x68] sm:$0xf]
      %v5330 = vld [vmem:[%s13 + $0x6c] sm:$0xff]
      %v5331 = vld [vmem:[%s13 + $0x74] sm:$0xf]
      %v5332 = vld [vmem:[%s13 + $0x78] sm:$0xff]
      %v5333 = vld [vmem:[%s13 + $0x80] sm:$0xf]
      %v5334 = vld [vmem:[%s13 + $0x84] sm:$0xff]
      %v5335 = vld [vmem:[%s13 + $0x8c] sm:$0xf]
      %v5336 = vld [vmem:[%s13 + $0x90] sm:$0xff]
      %v5337 = vld [vmem:[%s13 + $0x98] sm:$0xf]
      %v5338 = vld [vmem:[%s13 + $0x9c] sm:$0xff]
      %v5339 = vld [vmem:[%s13 + $0xa4] sm:$0xf]
      %v5340 = vld [vmem:[%s13 + $0xa8] sm:$0xff]
      %v5341 = vld [vmem:[%s13 + $0xb0] sm:$0xf]
      %v5342 = vld [vmem:[%s13 + $0xb4] sm:$0xff]
      %v5343 = vld [vmem:[%s13 + $0xbc] sm:$0xf]
      %v5376 = vunpack.c.l.b16 %v5312
      %v5377 = vunpack.c.h.b16 %v5312
      %v5378 = vunpack.c.l.b16 %v5313
      %v5379 = vunpack.c.l.b16 %v5314
      %v5380 = vunpack.c.h.b16 %v5314
      %v5381 = vunpack.c.l.b16 %v5315
      %v5382 = vunpack.c.l.b16 %v5316
      %v5383 = vunpack.c.h.b16 %v5316
      %v5384 = vunpack.c.l.b16 %v5317
      %v5385 = vunpack.c.l.b16 %v5318
      %v5386 = vunpack.c.h.b16 %v5318
      %v5387 = vunpack.c.l.b16 %v5319
      %v5388 = vunpack.c.l.b16 %v5320
      %v5389 = vunpack.c.h.b16 %v5320
      %v5390 = vunpack.c.l.b16 %v5321
      %v5391 = vunpack.c.l.b16 %v5322
      %v5392 = vunpack.c.h.b16 %v5322
      %v5393 = vunpack.c.l.b16 %v5323
      %v5394 = vunpack.c.l.b16 %v5324
      %v5395 = vunpack.c.h.b16 %v5324
      %v5396 = vunpack.c.l.b16 %v5325
      %v5397 = vunpack.c.l.b16 %v5326
      %v5398 = vunpack.c.h.b16 %v5326
      %v5399 = vunpack.c.l.b16 %v5327
      %v5400 = vunpack.c.l.b16 %v5328
      %v5401 = vunpack.c.h.b16 %v5328
      %v5402 = vunpack.c.l.b16 %v5329
      %v5403 = vunpack.c.l.b16 %v5330
      %v5404 = vunpack.c.h.b16 %v5330
      %v5405 = vunpack.c.l.b16 %v5331
      %v5406 = vunpack.c.l.b16 %v5332
      %v5407 = vunpack.c.h.b16 %v5332
      %v5408 = vunpack.c.l.b16 %v5333
      %v5409 = vunpack.c.l.b16 %v5334
      %v5410 = vunpack.c.h.b16 %v5334
      %v5411 = vunpack.c.l.b16 %v5335
      %v5412 = vunpack.c.l.b16 %v5336
      %v5413 = vunpack.c.h.b16 %v5336
      %v5414 = vunpack.c.l.b16 %v5337
      %v5415 = vunpack.c.l.b16 %v5338
      %v5416 = vunpack.c.h.b16 %v5338
      %v5417 = vunpack.c.l.b16 %v5339
      %v5418 = vunpack.c.l.b16 %v5340
      %v5419 = vunpack.c.h.b16 %v5340
      %v5420 = vunpack.c.l.b16 %v5341
      %v5421 = vunpack.c.l.b16 %v5342
      %v5422 = vunpack.c.h.b16 %v5342
      %v5423 = vunpack.c.l.b16 %v5343
      %v5424 = vpack.c.b16 %v5379, %v5376
      %v5425 = vpack.c.b16 %v5380, %v5377
      %v5426 = vpack.c.b16 %v5381, %v5378
      %v5427 = vpack.c.b16 %v5385, %v5382
      %v5428 = vpack.c.b16 %v5386, %v5383
      %v5429 = vpack.c.b16 %v5387, %v5384
      %v5430 = vpack.c.b16 %v5391, %v5388
      %v5431 = vpack.c.b16 %v5392, %v5389
      %v5432 = vpack.c.b16 %v5393, %v5390
      %v5433 = vpack.c.b16 %v5397, %v5394
      %v5434 = vpack.c.b16 %v5398, %v5395
      %v5435 = vpack.c.b16 %v5399, %v5396
      %v5436 = vpack.c.b16 %v5403, %v5400
      %v5437 = vpack.c.b16 %v5404, %v5401
      %v5438 = vpack.c.b16 %v5405, %v5402
      %v5439 = vpack.c.b16 %v5409, %v5406
      %v5440 = vpack.c.b16 %v5410, %v5407
      %v5441 = vpack.c.b16 %v5411, %v5408
      %v5442 = vpack.c.b16 %v5415, %v5412
      %v5443 = vpack.c.b16 %v5416, %v5413
      %v5444 = vpack.c.b16 %v5417, %v5414
      %v5445 = vpack.c.b16 %v5421, %v5418
      %v5446 = vpack.c.b16 %v5422, %v5419
      %v5447 = vpack.c.b16 %v5423, %v5420
      %5472 = vmatprep.subr.bf16.mxu0 %v5446
      %5473 = vmatpush1.bf16.msra.mxu0 %v5445
      %5474 = vmatprep.subr.bf16.mxu0 %v5443
      %5475 = vmatpush1.bf16.msra.mxu0 %v5442
      %5476 = vmatprep.subr.bf16.mxu0 %v5440
      %5477 = vmatpush1.bf16.msra.mxu0 %v5439
      %5478 = vmatprep.subr.bf16.mxu0 %v5437
      %5479 = vmatpush1.bf16.msra.mxu0 %v5436
      %5480 = vmatprep.subr.bf16.mxu0 %v5434
      %5481 = vmatpush1.bf16.msra.mxu0 %v5433
      %5482 = vmatprep.subr.bf16.mxu0 %v5431
      %5483 = vmatpush1.bf16.msra.mxu0 %v5430
      %5484 = vmatprep.subr.bf16.mxu0 %v5428
      %5485 = vmatpush1.bf16.msra.mxu0 %v5427
      %5486 = vmatprep.subr.bf16.mxu0 %v5425
      %5487 = vmatpush1.bf16.msra.mxu0 %v5424
      %5488 = vmatprep.subr.bf16.mxu0 0
      %5489 = vmatpush2.bf16.msra.mxu0 0
      %5490 = vmatprep.subr.bf16.mxu0 0
      %5491 = vmatpush2.bf16.msra.mxu0 0
      %5492 = vmatprep.subr.bf16.mxu0 0
      %5493 = vmatpush2.bf16.msra.mxu0 0
      %5494 = vmatprep.subr.bf16.mxu0 0
      %5495 = vmatpush2.bf16.msra.mxu0 0
      %5496 = vmatprep.subr.bf16.mxu0 0
      %5497 = vmatpush2.bf16.msra.mxu0 0
      %5498 = vmatprep.subr.bf16.mxu0 0
      %5499 = vmatpush2.bf16.msra.mxu0 0
      %5500 = vmatprep.subr.bf16.mxu0 0
      %5501 = vmatpush2.bf16.msra.mxu0 0
      %5502 = vmatprep.subr.bf16.mxu0 0
      %5503 = vmatpush2.bf16.msra.mxu0 0
      %5504 = vmatprep.mubr.bf16.mxu0 0
      %5505 = vmatmul.mubr.bf16.gmra.mxu0 %v5308
      %v5506 = vpop.f32.mrf.mxu0
      %v5507 = vadd.f32 0.0, %v5506
      %v5508 = vpop.f32.mrf.mxu0
      %v5509 = vadd.f32 0.0, %v5508
      %v5510 = vpop.f32.mrf.mxu0
      %v5511 = vadd.f32 0.0, %v5510
      %v5512 = vpop.f32.mrf.mxu0
      %v5513 = vadd.f32 0.0, %v5512
      %5514 = vmatprep.mubr.bf16.mxu0 0
      %5515 = vmatmul.mubr.bf16.gmra.mxu0 %v5309
      %v5516 = vpop.f32.mrf.mxu0
      %v5517 = vadd.f32 0.0, %v5516
      %v5518 = vpop.f32.mrf.mxu0
      %v5519 = vadd.f32 0.0, %v5518
      %v5520 = vpop.f32.mrf.mxu0
      %v5521 = vadd.f32 0.0, %v5520
      %v5522 = vpop.f32.mrf.mxu0
      %v5523 = vadd.f32 0.0, %v5522
      %5524 = vmatprep.mubr.bf16.mxu0 0
      %5525 = vmatmul.mubr.bf16.gmra.mxu0 %v5310
      %v5526 = vpop.f32.mrf.mxu0
      %v5527 = vadd.f32 0.0, %v5526
      %v5528 = vpop.f32.mrf.mxu0
      %v5529 = vadd.f32 0.0, %v5528
      %v5530 = vpop.f32.mrf.mxu0
      %v5531 = vadd.f32 0.0, %v5530
      %v5532 = vpop.f32.mrf.mxu0
      %v5533 = vadd.f32 0.0, %v5532
      %5534 = vmatprep.mubr.bf16.mxu0 0
      %5535 = vmatmul.mubr.bf16.gmra.mxu0 %v5311
      %v5536 = vpop.f32.mrf.mxu0
      %v5537 = vadd.f32 0.0, %v5536
      %v5538 = vpop.f32.mrf.mxu0
      %v5539 = vadd.f32 0.0, %v5538
      %v5540 = vpop.f32.mrf.mxu0
      %v5541 = vpop.f32.mrf.mxu0
      %5542 = vdwg.mxu0
      %5543 = vmatprep.subr.bf16.mxu0 0
      %5544 = vmatpush1.bf16.msra.mxu0 %v5447
      %5545 = vmatprep.subr.bf16.mxu0 0
      %5546 = vmatpush1.bf16.msra.mxu0 %v5444
      %5547 = vmatprep.subr.bf16.mxu0 0
      %5548 = vmatpush1.bf16.msra.mxu0 %v5441
      %5549 = vmatprep.subr.bf16.mxu0 0
      %5550 = vmatpush1.bf16.msra.mxu0 %v5438
      %5551 = vmatprep.subr.bf16.mxu0 0
      %5552 = vmatpush1.bf16.msra.mxu0 %v5435
      %5553 = vmatprep.subr.bf16.mxu0 0
      %5554 = vmatpush1.bf16.msra.mxu0 %v5432
      %5555 = vmatprep.subr.bf16.mxu0 0
      %5556 = vmatpush1.bf16.msra.mxu0 %v5429
      %5557 = vmatprep.subr.bf16.mxu0 0
      %5558 = vmatpush1.bf16.msra.mxu0 %v5426
      %5559 = vmatprep.subr.bf16.mxu0 0
      %5560 = vmatpush2.bf16.msra.mxu0 0
      %5561 = vmatprep.subr.bf16.mxu0 0
      %5562 = vmatpush2.bf16.msra.mxu0 0
      %5563 = vmatprep.subr.bf16.mxu0 0
      %5564 = vmatpush2.bf16.msra.mxu0 0
      %5565 = vmatprep.subr.bf16.mxu0 0
      %5566 = vmatpush2.bf16.msra.mxu0 0
      %5567 = vmatprep.subr.bf16.mxu0 0
      %5568 = vmatpush2.bf16.msra.mxu0 0
      %5569 = vmatprep.subr.bf16.mxu0 0
      %5570 = vmatpush2.bf16.msra.mxu0 0
      %5571 = vmatprep.subr.bf16.mxu0 0
      %5572 = vmatpush2.bf16.msra.mxu0 0
      %5573 = vmatprep.subr.bf16.mxu0 0
      %5574 = vmatpush2.bf16.msra.mxu0 0
      %5575 = vmatprep.mubr.bf16.mxu0 0
      %5576 = vmatmul.mubr.bf16.gmra.mxu0 %v5308
      %v5577 = vpop.f32.mrf.mxu0
      %v5578 = vadd.f32 0.0, %v5577
      %v5579 = vpop.f32.mrf.mxu0
      %v5580 = vpop.f32.mrf.mxu0
      %v5581 = vadd.f32 0.0, %v5580
      %v5582 = vpop.f32.mrf.mxu0
      %5583 = vmatprep.mubr.bf16.mxu0 0
      %5584 = vmatmul.mubr.bf16.gmra.mxu0 %v5309
      %v5585 = vpop.f32.mrf.mxu0
      %v5586 = vadd.f32 0.0, %v5585
      %v5587 = vpop.f32.mrf.mxu0
      %v5588 = vpop.f32.mrf.mxu0
      %v5589 = vadd.f32 0.0, %v5588
      %v5590 = vpop.f32.mrf.mxu0
      %5591 = vmatprep.mubr.bf16.mxu0 0
      %5592 = vmatmul.mubr.bf16.gmra.mxu0 %v5310
      %v5593 = vpop.f32.mrf.mxu0
      %v5594 = vadd.f32 0.0, %v5593
      %v5595 = vpop.f32.mrf.mxu0
      %v5596 = vpop.f32.mrf.mxu0
      %v5597 = vadd.f32 0.0, %v5596
      %v5598 = vpop.f32.mrf.mxu0
      %5599 = vmatprep.mubr.bf16.mxu0 0
      %5600 = vmatmul.mubr.bf16.gmra.mxu0 %v5311
      %v5601 = vpop.f32.mrf.mxu0
      %v5602 = vadd.f32 0.0, %v5601
      %v5603 = vpop.f32.mrf.mxu0
      %v5604 = vpop.f32.mrf.mxu0
      %v5605 = vpop.f32.mrf.mxu0
      %5606 = vdwg.mxu0
      %v5614 = vrot.slane %v5509, 7
      %v5615 = vrot.slane %v5513, 7
      %v5616 = vsel %vm1732, %v5614, %v5615
      %v5617 = vrot.slane %v5519, 7
      %v5618 = vsel %vm1732, %v5615, %v5617
      %v5619 = vrot.slane %v5523, 7
      %v5620 = vsel %vm1732, %v5617, %v5619
      %v5621 = vrot.slane %v5529, 7
      %v5622 = vsel %vm1732, %v5619, %v5621
      %v5623 = vrot.slane %v5533, 7
      %v5624 = vsel %vm1732, %v5621, %v5623
      %v5625 = vrot.slane %v5539, 7
      %v5626 = vsel %vm1732, %v5623, %v5625
      %v5641 = vrot.slane %v5578, 6
      %v5642 = vrot.slane %v5581, 6
      %v5643 = vsel %vm1737, %v5641, %v5642
      %v5644 = vrot.slane %v5586, 6
      %v5645 = vsel %vm1737, %v5642, %v5644
      %v5646 = vrot.slane %v5589, 6
      %v5647 = vsel %vm1737, %v5644, %v5646
      %v5648 = vrot.slane %v5594, 6
      %v5649 = vsel %vm1737, %v5646, %v5648
      %v5650 = vrot.slane %v5597, 6
      %v5651 = vsel %vm1737, %v5648, %v5650
      %v5652 = vrot.slane %v5602, 6
      %v5653 = vsel %vm1737, %v5650, %v5652
      %v5661 = vsel %vm1732, %v5537, %v5614
      %v5662 = vsel %vm1737, %v5626, %v5641
      %v5663 = vld [vmem:[%s15] sm:$0xff]
      %v5664 = vld [vmem:[%s15 + $0x8] sm:$0xff]
      %v5665 = vld [vmem:[%s15 + $0x10] sm:$0xff]
      %v5666 = vld [vmem:[%s15 + $0x18] sm:$0xff]
      %v5667 = vld [vmem:[%s15 + $0x20] sm:$0xff]
      %v5668 = vld [vmem:[%s15 + $0x28] sm:$0xff]
      %v5669 = vld [vmem:[%s15 + $0x30] sm:$0xff]
      %v5670 = vld [vmem:[%s15 + $0x38] sm:$0xff]
      %v5671 = vld [vmem:[%s15 + $0x40] sm:$0xff]
      %v5672 = vld [vmem:[%s15 + $0x48] sm:$0xff]
      %v5673 = vld [vmem:[%s15 + $0x50] sm:$0xff]
      %v5674 = vld [vmem:[%s15 + $0x58] sm:$0xff]
      %v5675 = vld [vmem:[%s15 + $0x60] sm:$0x33]
      %v5676 = vpack.c.bf16 %v5511, %v5507
      %v5677 = vpack.c.bf16 %v5521, %v5517
      %v5678 = vpack.c.bf16 %v5531, %v5527
      %v5679 = vpack.c.bf16 %v5616, %v5661
      %v5680 = vpack.c.bf16 %v5620, %v5618
      %v5681 = vpack.c.bf16 %v5624, %v5622
      %v5682 = vpack.c.bf16 %v5643, %v5662
      %v5683 = vpack.c.bf16 %v5647, %v5645
      %v5684 = vpack.c.bf16 %v5651, %v5649
      %v5685 = vpack.c.bf16 %v5653, %v5653
      %v5686 = vld [vmem:[%s14] sm:$0x1]
      %v5688 = vlaneseq
      %v5689 = vshrl.u32 %v5688, 7
      %v5690 = vsub.s32 0, %v5689
      %v5691 = vrot.slane %v5686, %v5690
      %v5706 = vunpack.c.l.b16 %v5663
      %v5707 = vunpack.c.h.b16 %v5663
      %v5708 = vunpack.c.l.b16 %v5664
      %v5709 = vunpack.c.h.b16 %v5664
      %v5710 = vunpack.c.l.b16 %v5665
      %v5711 = vunpack.c.h.b16 %v5665
      %v5712 = vunpack.c.l.b16 %v5666
      %v5713 = vunpack.c.h.b16 %v5666
      %v5714 = vunpack.c.l.b16 %v5667
      %v5715 = vunpack.c.h.b16 %v5667
      %v5716 = vunpack.c.l.b16 %v5668
      %v5717 = vunpack.c.h.b16 %v5668
      %v5718 = vunpack.c.l.b16 %v5669
      %v5719 = vunpack.c.h.b16 %v5669
      %v5720 = vunpack.c.l.b16 %v5670
      %v5721 = vunpack.c.h.b16 %v5670
      %v5722 = vunpack.c.l.b16 %v5671
      %v5723 = vunpack.c.h.b16 %v5671
      %v5724 = vunpack.c.l.b16 %v5672
      %v5725 = vunpack.c.h.b16 %v5672
      %v5726 = vunpack.c.l.b16 %v5673
      %v5727 = vunpack.c.h.b16 %v5673
      %v5728 = vunpack.c.l.b16 %v5674
      %v5729 = vunpack.c.h.b16 %v5674
      %v5730 = vunpack.c.l.b16 %v5675
      %v5731 = vunpack.c.h.b16 %v5675
      %v5732 = vpack.c.b16 %v5708, %v5706
      %v5733 = vpack.c.b16 %v5709, %v5707
      %v5734 = vpack.c.b16 %v5712, %v5710
      %v5735 = vpack.c.b16 %v5713, %v5711
      %v5736 = vpack.c.b16 %v5716, %v5714
      %v5737 = vpack.c.b16 %v5717, %v5715
      %v5738 = vpack.c.b16 %v5720, %v5718
      %v5739 = vpack.c.b16 %v5721, %v5719
      %v5740 = vpack.c.b16 %v5724, %v5722
      %v5741 = vpack.c.b16 %v5725, %v5723
      %v5742 = vpack.c.b16 %v5728, %v5726
      %v5743 = vpack.c.b16 %v5729, %v5727
      %v5744 = vpack.c.b16 %v5730, %v5730
      %v5745 = vpack.c.b16 %v5731, %v5731
      %vm5753 = vcmask 154624
      %v5755 = vsel %vm5753, %v5733, 0
      %v5758 = vsel %vm5753, %v5735, 0
      %v5761 = vsel %vm5753, %v5737, 0
      %v5764 = vsel %vm5753, %v5739, 0
      %v5767 = vsel %vm5753, %v5741, 0
      %v5770 = vsel %vm5753, %v5743, 0
      %v5773 = vsel %vm5753, %v5745, 0
      %v5775 = vsel %vm1732, 4294967295, 65535
      %v5776 = vsel %vm1737, %v5775, 0
      %v5778 = vand.u32 %v5685, %v5776
      %5780 = vmatprep.subr.bf16.mxu0 0
      %5781 = vmatpush1.bf16.msra.mxu0 %v5683
      %5782 = vmatprep.subr.bf16.mxu0 0
      %5783 = vmatpush1.bf16.msra.mxu0 %v5682
      %5784 = vmatprep.subr.bf16.mxu0 0
      %5785 = vmatpush1.bf16.msra.mxu0 %v5681
      %5786 = vmatprep.subr.bf16.mxu0 0
      %5787 = vmatpush1.bf16.msra.mxu0 %v5680
      %5788 = vmatprep.subr.bf16.mxu0 0
      %5789 = vmatpush1.bf16.msra.mxu0 %v5679
      %5790 = vmatprep.subr.bf16.mxu0 0
      %5791 = vmatpush1.bf16.msra.mxu0 %v5678
      %5792 = vmatprep.subr.bf16.mxu0 0
      %5793 = vmatpush1.bf16.msra.mxu0 %v5677
      %5794 = vmatprep.subr.bf16.mxu0 0
      %5795 = vmatpush1.bf16.msra.mxu0 %v5676
      %5796 = vmatprep.subr.bf16.mxu0 0
      %5797 = vmatpush2.bf16.msra.mxu0 0
      %5798 = vmatprep.subr.bf16.mxu0 0
      %5799 = vmatpush2.bf16.msra.mxu0 0
      %5800 = vmatprep.subr.bf16.mxu0 0
      %5801 = vmatpush2.bf16.msra.mxu0 0
      %5802 = vmatprep.subr.bf16.mxu0 0
      %5803 = vmatpush2.bf16.msra.mxu0 0
      %5804 = vmatprep.subr.bf16.mxu0 0
      %5805 = vmatpush2.bf16.msra.mxu0 0
      %5806 = vmatprep.subr.bf16.mxu0 0
      %5807 = vmatpush2.bf16.msra.mxu0 0
      %5808 = vmatprep.subr.bf16.mxu0 0
      %5809 = vmatpush2.bf16.msra.mxu0 %v5778
      %5810 = vmatprep.subr.bf16.mxu0 0
      %5811 = vmatpush2.bf16.msra.mxu0 %v5684
      %5812 = vmatprep.mubr.bf16.mxu0 %v5755
      %5813 = vmatmul.mubr.bf16.gmra.mxu0 %v5732
      %v5814 = vpop.f32.mrf.mxu0
      %v5815 = vadd.f32 %v5691, %v5814
      %v5816 = vpop.f32.mrf.mxu0
      %v5817 = vpop.f32.mrf.mxu0
      %v5818 = vadd.f32 %v5691, %v5817
      %v5819 = vpop.f32.mrf.mxu0
      %5820 = vmatprep.mubr.bf16.mxu0 %v5758
      %5821 = vmatmul.mubr.bf16.gmra.mxu0 %v5734
      %v5822 = vpop.f32.mrf.mxu0
      %v5823 = vadd.f32 %v5691, %v5822
      %v5824 = vpop.f32.mrf.mxu0
      %v5825 = vpop.f32.mrf.mxu0
      %v5826 = vadd.f32 %v5691, %v5825
      %v5827 = vpop.f32.mrf.mxu0
      %5828 = vmatprep.mubr.bf16.mxu0 %v5761
      %5829 = vmatmul.mubr.bf16.gmra.mxu0 %v5736
      %v5830 = vpop.f32.mrf.mxu0
      %v5831 = vadd.f32 %v5691, %v5830
      %v5832 = vpop.f32.mrf.mxu0
      %v5833 = vpop.f32.mrf.mxu0
      %v5834 = vadd.f32 %v5691, %v5833
      %v5835 = vpop.f32.mrf.mxu0
      %5836 = vmatprep.mubr.bf16.mxu0 %v5764
      %5837 = vmatmul.mubr.bf16.gmra.mxu0 %v5738
      %v5838 = vpop.f32.mrf.mxu0
      %v5839 = vadd.f32 %v5691, %v5838
      %v5840 = vpop.f32.mrf.mxu0
      %v5841 = vpop.f32.mrf.mxu0
      %v5842 = vadd.f32 %v5691, %v5841
      %v5843 = vpop.f32.mrf.mxu0
      %5844 = vmatprep.mubr.bf16.mxu0 %v5767
      %5845 = vmatmul.mubr.bf16.gmra.mxu0 %v5740
      %v5846 = vpop.f32.mrf.mxu0
      %v5847 = vadd.f32 %v5691, %v5846
      %v5848 = vpop.f32.mrf.mxu0
      %v5849 = vpop.f32.mrf.mxu0
      %v5850 = vadd.f32 %v5691, %v5849
      %v5851 = vpop.f32.mrf.mxu0
      %5852 = vmatprep.mubr.bf16.mxu0 %v5770
      %5853 = vmatmul.mubr.bf16.gmra.mxu0 %v5742
      %v5854 = vpop.f32.mrf.mxu0
      %v5855 = vadd.f32 %v5691, %v5854
      %v5856 = vpop.f32.mrf.mxu0
      %v5857 = vpop.f32.mrf.mxu0
      %v5858 = vadd.f32 %v5691, %v5857
      %v5859 = vpop.f32.mrf.mxu0
      %5860 = vmatprep.mubr.bf16.mxu0 %v5773
      %5861 = vmatmul.mubr.bf16.gmra.mxu0 %v5744
      %v5862 = vpop.f32.mrf.mxu0
      %v5863 = vadd.f32 %v5691, %v5862
      %v5864 = vpop.f32.mrf.mxu0
      %v5865 = vpop.f32.mrf.mxu0
      %v5866 = vpop.f32.mrf.mxu0
      %5867 = vdwg.mxu0
      %vm5868 = vcmp.ge.f32.partialorder %v5815, 0.0
      %vm5869 = vcmp.ge.f32.partialorder %v5818, 0.0
      %vm5870 = vcmp.ge.f32.partialorder %v5823, 0.0
      %vm5871 = vcmp.ge.f32.partialorder %v5826, 0.0
      %vm5872 = vcmp.ge.f32.partialorder %v5831, 0.0
      %vm5873 = vcmp.ge.f32.partialorder %v5834, 0.0
      %vm5874 = vcmp.ge.f32.partialorder %v5839, 0.0
      %vm5875 = vcmp.ge.f32.partialorder %v5842, 0.0
      %vm5876 = vcmp.ge.f32.partialorder %v5847, 0.0
      %vm5877 = vcmp.ge.f32.partialorder %v5850, 0.0
      %vm5878 = vcmp.ge.f32.partialorder %v5855, 0.0
      %vm5879 = vcmp.ge.f32.partialorder %v5858, 0.0
      %vm5880 = vcmp.ge.f32.partialorder %v5863, 0.0
      %v5881 = vmul.f32 %v5815, 0.2
      %v5882 = vmul.f32 %v5818, 0.2
      %v5883 = vmul.f32 %v5823, 0.2
      %v5884 = vmul.f32 %v5826, 0.2
      %v5885 = vmul.f32 %v5831, 0.2
      %v5886 = vmul.f32 %v5834, 0.2
      %v5887 = vmul.f32 %v5839, 0.2
      %v5888 = vmul.f32 %v5842, 0.2
      %v5889 = vmul.f32 %v5847, 0.2
      %v5890 = vmul.f32 %v5850, 0.2
      %v5891 = vmul.f32 %v5855, 0.2
      %v5892 = vmul.f32 %v5858, 0.2
      %v5893 = vmul.f32 %v5863, 0.2
      %v5894 = vsel %vm5868, %v5815, %v5881
      %v5895 = vsel %vm5869, %v5818, %v5882
      %v5896 = vsel %vm5870, %v5823, %v5883
      %v5897 = vsel %vm5871, %v5826, %v5884
      %v5898 = vsel %vm5872, %v5831, %v5885
      %v5899 = vsel %vm5873, %v5834, %v5886
      %v5900 = vsel %vm5874, %v5839, %v5887
      %v5901 = vsel %vm5875, %v5842, %v5888
      %v5902 = vsel %vm5876, %v5847, %v5889
      %v5903 = vsel %vm5877, %v5850, %v5890
      %v5904 = vsel %vm5878, %v5855, %v5891
      %v5905 = vsel %vm5879, %v5858, %v5892
      %v5906 = vsel %vm5880, %v5863, %v5893
      %v5907 = vpack.c.bf16 %v5895, %v5894
      %v5908 = vpack.c.bf16 %v5897, %v5896
      %v5909 = vpack.c.bf16 %v5899, %v5898
      %v5910 = vpack.c.bf16 %v5901, %v5900
      %v5911 = vpack.c.bf16 %v5903, %v5902
      %v5912 = vpack.c.bf16 %v5905, %v5904
      %v5913 = vpack.c.bf16 %v5906, %v5906
      %v5914 = vld [vmem:[%s16] sm:$0xff]
      %v5915 = vld [vmem:[%s16 + $0x8] sm:$0xff]
      %v5916 = vld [vmem:[%s16 + $0x10] sm:$0xff]
      %v5917 = vld [vmem:[%s16 + $0x18] sm:$0xff]
      %v5918 = vld [vmem:[%s16 + $0x20] sm:$0xff]
      %v5919 = vld [vmem:[%s16 + $0x28] sm:$0xff]
      %v5920 = vld [vmem:[%s16 + $0x30] sm:$0xff]
      %v5921 = vld [vmem:[%s16 + $0x38] sm:$0xff]
      %v5922 = vld [vmem:[%s16 + $0x40] sm:$0xff]
      %v5923 = vld [vmem:[%s16 + $0x48] sm:$0xff]
      %v5924 = vld [vmem:[%s16 + $0x50] sm:$0xff]
      %v5925 = vld [vmem:[%s16 + $0x58] sm:$0xff]
      %v5926 = vld [vmem:[%s16 + $0x60] sm:$0xff]
      %v5927 = vld [vmem:[%s16 + $0x68] sm:$0xff]
      %v5928 = vld [vmem:[%s16 + $0x70] sm:$0xff]
      %v5929 = vld [vmem:[%s16 + $0x78] sm:$0xff]
      %v5930 = vld [vmem:[%s16 + $0x80] sm:$0xff]
      %v5931 = vld [vmem:[%s16 + $0x88] sm:$0xff]
      %v5932 = vld [vmem:[%s16 + $0x90] sm:$0xff]
      %v5933 = vld [vmem:[%s16 + $0x98] sm:$0xff]
      %v5934 = vld [vmem:[%s16 + $0xa0] sm:$0xff]
      %v5935 = vld [vmem:[%s16 + $0xa8] sm:$0xff]
      %v5936 = vld [vmem:[%s16 + $0xb0] sm:$0xff]
      %v5937 = vld [vmem:[%s16 + $0xb8] sm:$0xff]
      %v5938 = vld [vmem:[%s16 + $0xc0] sm:$0xff]
      %v5939 = vld [vmem:[%s16 + $0xc8] sm:$0xff]
      %v5940 = vld [vmem:[%s16 + $0xd0] sm:$0xff]
      %v5941 = vld [vmem:[%s16 + $0xd8] sm:$0xff]
      %v5942 = vld [vmem:[%s16 + $0xe0] sm:$0xff]
      %v5943 = vld [vmem:[%s16 + $0xe8] sm:$0xff]
      %v5944 = vld [vmem:[%s16 + $0xf0] sm:$0xff]
      %v5945 = vld [vmem:[%s16 + $0xf8] sm:$0xff]
      %v5978 = vunpack.c.l.b16 %v5914
      %v5979 = vunpack.c.h.b16 %v5914
      %v5980 = vunpack.c.l.b16 %v5915
      %v5981 = vunpack.c.h.b16 %v5915
      %v5982 = vunpack.c.l.b16 %v5916
      %v5983 = vunpack.c.h.b16 %v5916
      %v5984 = vunpack.c.l.b16 %v5917
      %v5985 = vunpack.c.h.b16 %v5917
      %v5986 = vunpack.c.l.b16 %v5918
      %v5987 = vunpack.c.h.b16 %v5918
      %v5988 = vunpack.c.l.b16 %v5919
      %v5989 = vunpack.c.h.b16 %v5919
      %v5990 = vunpack.c.l.b16 %v5920
      %v5991 = vunpack.c.h.b16 %v5920
      %v5992 = vunpack.c.l.b16 %v5921
      %v5993 = vunpack.c.h.b16 %v5921
      %v5994 = vunpack.c.l.b16 %v5922
      %v5995 = vunpack.c.h.b16 %v5922
      %v5996 = vunpack.c.l.b16 %v5923
      %v5997 = vunpack.c.h.b16 %v5923
      %v5998 = vunpack.c.l.b16 %v5924
      %v5999 = vunpack.c.h.b16 %v5924
      %v6000 = vunpack.c.l.b16 %v5925
      %v6001 = vunpack.c.h.b16 %v5925
      %v6002 = vunpack.c.l.b16 %v5926
      %v6003 = vunpack.c.h.b16 %v5926
      %v6004 = vunpack.c.l.b16 %v5927
      %v6005 = vunpack.c.h.b16 %v5927
      %v6006 = vunpack.c.l.b16 %v5928
      %v6007 = vunpack.c.h.b16 %v5928
      %v6008 = vunpack.c.l.b16 %v5929
      %v6009 = vunpack.c.h.b16 %v5929
      %v6010 = vunpack.c.l.b16 %v5930
      %v6011 = vunpack.c.h.b16 %v5930
      %v6012 = vunpack.c.l.b16 %v5931
      %v6013 = vunpack.c.h.b16 %v5931
      %v6014 = vunpack.c.l.b16 %v5932
      %v6015 = vunpack.c.h.b16 %v5932
      %v6016 = vunpack.c.l.b16 %v5933
      %v6017 = vunpack.c.h.b16 %v5933
      %v6018 = vunpack.c.l.b16 %v5934
      %v6019 = vunpack.c.h.b16 %v5934
      %v6020 = vunpack.c.l.b16 %v5935
      %v6021 = vunpack.c.h.b16 %v5935
      %v6022 = vunpack.c.l.b16 %v5936
      %v6023 = vunpack.c.h.b16 %v5936
      %v6024 = vunpack.c.l.b16 %v5937
      %v6025 = vunpack.c.h.b16 %v5937
      %v6026 = vunpack.c.l.b16 %v5938
      %v6027 = vunpack.c.h.b16 %v5938
      %v6028 = vunpack.c.l.b16 %v5939
      %v6029 = vunpack.c.h.b16 %v5939
      %v6030 = vunpack.c.l.b16 %v5940
      %v6031 = vunpack.c.h.b16 %v5940
      %v6032 = vunpack.c.l.b16 %v5941
      %v6033 = vunpack.c.h.b16 %v5941
      %v6034 = vunpack.c.l.b16 %v5942
      %v6035 = vunpack.c.h.b16 %v5942
      %v6036 = vunpack.c.l.b16 %v5943
      %v6037 = vunpack.c.h.b16 %v5943
      %v6038 = vunpack.c.l.b16 %v5944
      %v6039 = vunpack.c.h.b16 %v5944
      %v6040 = vunpack.c.l.b16 %v5945
      %v6041 = vunpack.c.h.b16 %v5945
      %v6042 = vpack.c.b16 %v5982, %v5978
      %v6043 = vpack.c.b16 %v5983, %v5979
      %v6044 = vpack.c.b16 %v5984, %v5980
      %v6045 = vpack.c.b16 %v5985, %v5981
      %v6046 = vpack.c.b16 %v5990, %v5986
      %v6047 = vpack.c.b16 %v5991, %v5987
      %v6048 = vpack.c.b16 %v5992, %v5988
      %v6049 = vpack.c.b16 %v5993, %v5989
      %v6050 = vpack.c.b16 %v5998, %v5994
      %v6051 = vpack.c.b16 %v5999, %v5995
      %v6052 = vpack.c.b16 %v6000, %v5996
      %v6053 = vpack.c.b16 %v6001, %v5997
      %v6054 = vpack.c.b16 %v6006, %v6002
      %v6055 = vpack.c.b16 %v6007, %v6003
      %v6056 = vpack.c.b16 %v6008, %v6004
      %v6057 = vpack.c.b16 %v6009, %v6005
      %v6058 = vpack.c.b16 %v6014, %v6010
      %v6059 = vpack.c.b16 %v6015, %v6011
      %v6060 = vpack.c.b16 %v6016, %v6012
      %v6061 = vpack.c.b16 %v6017, %v6013
      %v6062 = vpack.c.b16 %v6022, %v6018
      %v6063 = vpack.c.b16 %v6023, %v6019
      %v6064 = vpack.c.b16 %v6024, %v6020
      %v6065 = vpack.c.b16 %v6025, %v6021
      %v6066 = vpack.c.b16 %v6030, %v6026
      %v6067 = vpack.c.b16 %v6031, %v6027
      %v6068 = vpack.c.b16 %v6032, %v6028
      %v6069 = vpack.c.b16 %v6033, %v6029
      %v6070 = vpack.c.b16 %v6038, %v6034
      %v6071 = vpack.c.b16 %v6039, %v6035
      %v6072 = vpack.c.b16 %v6040, %v6036
      %v6073 = vpack.c.b16 %v6041, %v6037
      %6106 = vmatprep.subr.bf16.mxu0 %v6071
      %6107 = vmatpush1.bf16.msra.mxu0 %v6070
      %6108 = vmatprep.subr.bf16.mxu0 %v6067
      %6109 = vmatpush1.bf16.msra.mxu0 %v6066
      %6110 = vmatprep.subr.bf16.mxu0 %v6063
      %6111 = vmatpush1.bf16.msra.mxu0 %v6062
      %6112 = vmatprep.subr.bf16.mxu0 %v6059
      %6113 = vmatpush1.bf16.msra.mxu0 %v6058
      %6114 = vmatprep.subr.bf16.mxu0 %v6055
      %6115 = vmatpush1.bf16.msra.mxu0 %v6054
      %6116 = vmatprep.subr.bf16.mxu0 %v6051
      %6117 = vmatpush1.bf16.msra.mxu0 %v6050
      %6118 = vmatprep.subr.bf16.mxu0 %v6047
      %6119 = vmatpush1.bf16.msra.mxu0 %v6046
      %6120 = vmatprep.subr.bf16.mxu0 %v6043
      %6121 = vmatpush1.bf16.msra.mxu0 %v6042
      %6122 = vmatprep.subr.bf16.mxu0 0
      %6123 = vmatpush2.bf16.msra.mxu0 0
      %6124 = vmatprep.subr.bf16.mxu0 0
      %6125 = vmatpush2.bf16.msra.mxu0 0
      %6126 = vmatprep.subr.bf16.mxu0 0
      %6127 = vmatpush2.bf16.msra.mxu0 0
      %6128 = vmatprep.subr.bf16.mxu0 0
      %6129 = vmatpush2.bf16.msra.mxu0 0
      %6130 = vmatprep.subr.bf16.mxu0 0
      %6131 = vmatpush2.bf16.msra.mxu0 0
      %6132 = vmatprep.subr.bf16.mxu0 0
      %6133 = vmatpush2.bf16.msra.mxu0 0
      %6134 = vmatprep.subr.bf16.mxu0 0
      %6135 = vmatpush2.bf16.msra.mxu0 0
      %6136 = vmatprep.subr.bf16.mxu0 0
      %6137 = vmatpush2.bf16.msra.mxu0 0
      %6138 = vmatprep.mubr.bf16.mxu0 0
      %6139 = vmatmul.mubr.bf16.gmra.mxu0 %v5907
      %v6140 = vpop.f32.mrf.mxu0
      %v6141 = vadd.f32 0.0, %v6140
      %v6142 = vpop.f32.mrf.mxu0
      %v6143 = vadd.f32 0.0, %v6142
      %v6144 = vpop.f32.mrf.mxu0
      %v6145 = vadd.f32 0.0, %v6144
      %v6146 = vpop.f32.mrf.mxu0
      %v6147 = vadd.f32 0.0, %v6146
      %6148 = vmatprep.mubr.bf16.mxu0 0
      %6149 = vmatmul.mubr.bf16.gmra.mxu0 %v5908
      %v6150 = vpop.f32.mrf.mxu0
      %v6151 = vadd.f32 0.0, %v6150
      %v6152 = vpop.f32.mrf.mxu0
      %v6153 = vadd.f32 0.0, %v6152
      %v6154 = vpop.f32.mrf.mxu0
      %v6155 = vadd.f32 0.0, %v6154
      %v6156 = vpop.f32.mrf.mxu0
      %v6157 = vadd.f32 0.0, %v6156
      %6158 = vmatprep.mubr.bf16.mxu0 0
      %6159 = vmatmul.mubr.bf16.gmra.mxu0 %v5909
      %v6160 = vpop.f32.mrf.mxu0
      %v6161 = vadd.f32 0.0, %v6160
      %v6162 = vpop.f32.mrf.mxu0
      %v6163 = vadd.f32 0.0, %v6162
      %v6164 = vpop.f32.mrf.mxu0
      %v6165 = vadd.f32 0.0, %v6164
      %v6166 = vpop.f32.mrf.mxu0
      %v6167 = vadd.f32 0.0, %v6166
      %6168 = vmatprep.mubr.bf16.mxu0 0
      %6169 = vmatmul.mubr.bf16.gmra.mxu0 %v5910
      %v6170 = vpop.f32.mrf.mxu0
      %v6171 = vadd.f32 0.0, %v6170
      %v6172 = vpop.f32.mrf.mxu0
      %v6173 = vadd.f32 0.0, %v6172
      %v6174 = vpop.f32.mrf.mxu0
      %v6175 = vadd.f32 0.0, %v6174
      %v6176 = vpop.f32.mrf.mxu0
      %v6177 = vadd.f32 0.0, %v6176
      %6178 = vmatprep.mubr.bf16.mxu0 0
      %6179 = vmatmul.mubr.bf16.gmra.mxu0 %v5911
      %v6180 = vpop.f32.mrf.mxu0
      %v6181 = vadd.f32 0.0, %v6180
      %v6182 = vpop.f32.mrf.mxu0
      %v6183 = vadd.f32 0.0, %v6182
      %v6184 = vpop.f32.mrf.mxu0
      %v6185 = vadd.f32 0.0, %v6184
      %v6186 = vpop.f32.mrf.mxu0
      %v6187 = vadd.f32 0.0, %v6186
      %6188 = vmatprep.mubr.bf16.mxu0 0
      %6189 = vmatmul.mubr.bf16.gmra.mxu0 %v5912
      %v6190 = vpop.f32.mrf.mxu0
      %v6191 = vadd.f32 0.0, %v6190
      %v6192 = vpop.f32.mrf.mxu0
      %v6193 = vadd.f32 0.0, %v6192
      %v6194 = vpop.f32.mrf.mxu0
      %v6195 = vadd.f32 0.0, %v6194
      %v6196 = vpop.f32.mrf.mxu0
      %v6197 = vadd.f32 0.0, %v6196
      %6198 = vmatprep.mubr.bf16.mxu0 0
      %6199 = vmatmul.mubr.bf16.gmra.mxu0 %v5913
      %v6200 = vpop.f32.mrf.mxu0
      %v6201 = vadd.f32 0.0, %v6200
      %v6202 = vpop.f32.mrf.mxu0
      %v6203 = vadd.f32 0.0, %v6202
      %v6204 = vpop.f32.mrf.mxu0
      %v6205 = vpop.f32.mrf.mxu0
      %6206 = vdwg.mxu0
      %6207 = vmatprep.subr.bf16.mxu0 %v6073
      %6208 = vmatpush1.bf16.msra.mxu0 %v6072
      %6209 = vmatprep.subr.bf16.mxu0 %v6069
      %6210 = vmatpush1.bf16.msra.mxu0 %v6068
      %6211 = vmatprep.subr.bf16.mxu0 %v6065
      %6212 = vmatpush1.bf16.msra.mxu0 %v6064
      %6213 = vmatprep.subr.bf16.mxu0 %v6061
      %6214 = vmatpush1.bf16.msra.mxu0 %v6060
      %6215 = vmatprep.subr.bf16.mxu0 %v6057
      %6216 = vmatpush1.bf16.msra.mxu0 %v6056
      %6217 = vmatprep.subr.bf16.mxu0 %v6053
      %6218 = vmatpush1.bf16.msra.mxu0 %v6052
      %6219 = vmatprep.subr.bf16.mxu0 %v6049
      %6220 = vmatpush1.bf16.msra.mxu0 %v6048
      %6221 = vmatprep.subr.bf16.mxu0 %v6045
      %6222 = vmatpush1.bf16.msra.mxu0 %v6044
      %6223 = vmatprep.subr.bf16.mxu0 0
      %6224 = vmatpush2.bf16.msra.mxu0 0
      %6225 = vmatprep.subr.bf16.mxu0 0
      %6226 = vmatpush2.bf16.msra.mxu0 0
      %6227 = vmatprep.subr.bf16.mxu0 0
      %6228 = vmatpush2.bf16.msra.mxu0 0
      %6229 = vmatprep.subr.bf16.mxu0 0
      %6230 = vmatpush2.bf16.msra.mxu0 0
      %6231 = vmatprep.subr.bf16.mxu0 0
      %6232 = vmatpush2.bf16.msra.mxu0 0
      %6233 = vmatprep.subr.bf16.mxu0 0
      %6234 = vmatpush2.bf16.msra.mxu0 0
      %6235 = vmatprep.subr.bf16.mxu0 0
      %6236 = vmatpush2.bf16.msra.mxu0 0
      %6237 = vmatprep.subr.bf16.mxu0 0
      %6238 = vmatpush2.bf16.msra.mxu0 0
      %6239 = vmatprep.mubr.bf16.mxu0 0
      %6240 = vmatmul.mubr.bf16.gmra.mxu0 %v5907
      %v6241 = vpop.f32.mrf.mxu0
      %v6242 = vadd.f32 0.0, %v6241
      %v6243 = vpop.f32.mrf.mxu0
      %v6244 = vadd.f32 0.0, %v6243
      %v6245 = vpop.f32.mrf.mxu0
      %v6246 = vadd.f32 0.0, %v6245
      %v6247 = vpop.f32.mrf.mxu0
      %v6248 = vadd.f32 0.0, %v6247
      %6249 = vmatprep.mubr.bf16.mxu0 0
      %6250 = vmatmul.mubr.bf16.gmra.mxu0 %v5908
      %v6251 = vpop.f32.mrf.mxu0
      %v6252 = vadd.f32 0.0, %v6251
      %v6253 = vpop.f32.mrf.mxu0
      %v6254 = vadd.f32 0.0, %v6253
      %v6255 = vpop.f32.mrf.mxu0
      %v6256 = vadd.f32 0.0, %v6255
      %v6257 = vpop.f32.mrf.mxu0
      %v6258 = vadd.f32 0.0, %v6257
      %6259 = vmatprep.mubr.bf16.mxu0 0
      %6260 = vmatmul.mubr.bf16.gmra.mxu0 %v5909
      %v6261 = vpop.f32.mrf.mxu0
      %v6262 = vadd.f32 0.0, %v6261
      %v6263 = vpop.f32.mrf.mxu0
      %v6264 = vadd.f32 0.0, %v6263
      %v6265 = vpop.f32.mrf.mxu0
      %v6266 = vadd.f32 0.0, %v6265
      %v6267 = vpop.f32.mrf.mxu0
      %v6268 = vadd.f32 0.0, %v6267
      %6269 = vmatprep.mubr.bf16.mxu0 0
      %6270 = vmatmul.mubr.bf16.gmra.mxu0 %v5910
      %v6271 = vpop.f32.mrf.mxu0
      %v6272 = vadd.f32 0.0, %v6271
      %v6273 = vpop.f32.mrf.mxu0
      %v6274 = vadd.f32 0.0, %v6273
      %v6275 = vpop.f32.mrf.mxu0
      %v6276 = vadd.f32 0.0, %v6275
      %v6277 = vpop.f32.mrf.mxu0
      %v6278 = vadd.f32 0.0, %v6277
      %6279 = vmatprep.mubr.bf16.mxu0 0
      %6280 = vmatmul.mubr.bf16.gmra.mxu0 %v5911
      %v6281 = vpop.f32.mrf.mxu0
      %v6282 = vadd.f32 0.0, %v6281
      %v6283 = vpop.f32.mrf.mxu0
      %v6284 = vadd.f32 0.0, %v6283
      %v6285 = vpop.f32.mrf.mxu0
      %v6286 = vadd.f32 0.0, %v6285
      %v6287 = vpop.f32.mrf.mxu0
      %v6288 = vadd.f32 0.0, %v6287
      %6289 = vmatprep.mubr.bf16.mxu0 0
      %6290 = vmatmul.mubr.bf16.gmra.mxu0 %v5912
      %v6291 = vpop.f32.mrf.mxu0
      %v6292 = vadd.f32 0.0, %v6291
      %v6293 = vpop.f32.mrf.mxu0
      %v6294 = vadd.f32 0.0, %v6293
      %v6295 = vpop.f32.mrf.mxu0
      %v6296 = vadd.f32 0.0, %v6295
      %v6297 = vpop.f32.mrf.mxu0
      %v6298 = vadd.f32 0.0, %v6297
      %6299 = vmatprep.mubr.bf16.mxu0 0
      %6300 = vmatmul.mubr.bf16.gmra.mxu0 %v5913
      %v6301 = vpop.f32.mrf.mxu0
      %v6302 = vadd.f32 0.0, %v6301
      %v6303 = vpop.f32.mrf.mxu0
      %v6304 = vadd.f32 0.0, %v6303
      %v6305 = vpop.f32.mrf.mxu0
      %v6306 = vpop.f32.mrf.mxu0
      %6307 = vdwg.mxu0
      %v6321 = vrot.slane %v6143, 5
      %v6322 = vrot.slane %v6147, 5
      %v6323 = vsel %vm1742, %v6321, %v6322
      %v6324 = vrot.slane %v6153, 5
      %v6325 = vsel %vm1742, %v6322, %v6324
      %v6326 = vrot.slane %v6157, 5
      %v6327 = vsel %vm1742, %v6324, %v6326
      %v6328 = vrot.slane %v6163, 5
      %v6329 = vsel %vm1742, %v6326, %v6328
      %v6330 = vrot.slane %v6167, 5
      %v6331 = vsel %vm1742, %v6328, %v6330
      %v6332 = vrot.slane %v6173, 5
      %v6333 = vsel %vm1742, %v6330, %v6332
      %v6334 = vrot.slane %v6177, 5
      %v6335 = vsel %vm1742, %v6332, %v6334
      %v6336 = vrot.slane %v6183, 5
      %v6337 = vsel %vm1742, %v6334, %v6336
      %v6338 = vrot.slane %v6187, 5
      %v6339 = vsel %vm1742, %v6336, %v6338
      %v6340 = vrot.slane %v6193, 5
      %v6341 = vsel %vm1742, %v6338, %v6340
      %v6342 = vrot.slane %v6197, 5
      %v6343 = vsel %vm1742, %v6340, %v6342
      %v6344 = vrot.slane %v6203, 5
      %v6345 = vsel %vm1742, %v6342, %v6344
      %v6372 = vrot.slane %v6242, 2
      %v6373 = vrot.slane %v6246, 2
      %v6374 = vsel %vm4804, %v6372, %v6373
      %v6375 = vrot.slane %v6252, 2
      %v6376 = vsel %vm4804, %v6373, %v6375
      %v6377 = vrot.slane %v6256, 2
      %v6378 = vsel %vm4804, %v6375, %v6377
      %v6379 = vrot.slane %v6262, 2
      %v6380 = vsel %vm4804, %v6377, %v6379
      %v6381 = vrot.slane %v6266, 2
      %v6382 = vsel %vm4804, %v6379, %v6381
      %v6383 = vrot.slane %v6272, 2
      %v6384 = vsel %vm4804, %v6381, %v6383
      %v6385 = vrot.slane %v6276, 2
      %v6386 = vsel %vm4804, %v6383, %v6385
      %v6387 = vrot.slane %v6282, 2
      %v6388 = vsel %vm4804, %v6385, %v6387
      %v6389 = vrot.slane %v6286, 2
      %v6390 = vsel %vm4804, %v6387, %v6389
      %v6391 = vrot.slane %v6292, 2
      %v6392 = vsel %vm4804, %v6389, %v6391
      %v6393 = vrot.slane %v6296, 2
      %v6394 = vsel %vm4804, %v6391, %v6393
      %v6395 = vrot.slane %v6302, 2
      %v6396 = vsel %vm4804, %v6393, %v6395
      %v6424 = vrot.slane %v6244, 7
      %v6425 = vrot.slane %v6248, 7
      %v6426 = vsel %vm1732, %v6424, %v6425
      %v6427 = vrot.slane %v6254, 7
      %v6428 = vsel %vm1732, %v6425, %v6427
      %v6429 = vrot.slane %v6258, 7
      %v6430 = vsel %vm1732, %v6427, %v6429
      %v6431 = vrot.slane %v6264, 7
      %v6432 = vsel %vm1732, %v6429, %v6431
      %v6433 = vrot.slane %v6268, 7
      %v6434 = vsel %vm1732, %v6431, %v6433
      %v6435 = vrot.slane %v6274, 7
      %v6436 = vsel %vm1732, %v6433, %v6435
      %v6437 = vrot.slane %v6278, 7
      %v6438 = vsel %vm1732, %v6435, %v6437
      %v6439 = vrot.slane %v6284, 7
      %v6440 = vsel %vm1732, %v6437, %v6439
      %v6441 = vrot.slane %v6288, 7
      %v6442 = vsel %vm1732, %v6439, %v6441
      %v6443 = vrot.slane %v6294, 7
      %v6444 = vsel %vm1732, %v6441, %v6443
      %v6445 = vrot.slane %v6298, 7
      %v6446 = vsel %vm1732, %v6443, %v6445
      %v6447 = vrot.slane %v6304, 7
      %v6448 = vsel %vm1732, %v6445, %v6447
      %v6462 = vsel %vm1742, %v6201, %v6321
      %v6463 = vsel %vm4804, %v6345, %v6372
      %v6464 = vsel %vm1732, %v6395, %v6424
      %v6465 = vld [vmem:[%s18] sm:$0xff]
      %v6466 = vld [vmem:[%s18 + $0x8] sm:$0xff]
      %v6467 = vld [vmem:[%s18 + $0x10] sm:$0xff]
      %v6468 = vld [vmem:[%s18 + $0x18] sm:$0xff]
      %v6469 = vld [vmem:[%s18 + $0x20] sm:$0xff]
      %v6470 = vld [vmem:[%s18 + $0x28] sm:$0xff]
      %v6471 = vld [vmem:[%s18 + $0x30] sm:$0xff]
      %v6472 = vld [vmem:[%s18 + $0x38] sm:$0xff]
      %v6473 = vld [vmem:[%s18 + $0x40] sm:$0xff]
      %v6474 = vld [vmem:[%s18 + $0x48] sm:$0xff]
      %v6475 = vld [vmem:[%s18 + $0x50] sm:$0xff]
      %v6476 = vld [vmem:[%s18 + $0x58] sm:$0xff]
      %v6477 = vld [vmem:[%s18 + $0x60] sm:$0xff]
      %v6478 = vld [vmem:[%s18 + $0x68] sm:$0xff]
      %v6479 = vld [vmem:[%s18 + $0x70] sm:$0xff]
      %v6480 = vld [vmem:[%s18 + $0x78] sm:$0xff]
      %v6481 = vld [vmem:[%s18 + $0x80] sm:$0xff]
      %v6482 = vld [vmem:[%s18 + $0x88] sm:$0xff]
      %v6483 = vld [vmem:[%s18 + $0x90] sm:$0xff]
      %v6484 = vld [vmem:[%s18 + $0x98] sm:$0xff]
      %v6485 = vld [vmem:[%s18 + $0xa0] sm:$0xff]
      %v6486 = vld [vmem:[%s18 + $0xa8] sm:$0xff]
      %v6487 = vld [vmem:[%s18 + $0xb0] sm:$0xff]
      %v6488 = vld [vmem:[%s18 + $0xb8] sm:$0xff]
      %v6489 = vld [vmem:[%s18 + $0xc0] sm:$0xff]
      %v6490 = vld [vmem:[%s18 + $0xc8] sm:$0xff]
      %v6491 = vld [vmem:[%s18 + $0xd0] sm:$0xff]
      %v6492 = vld [vmem:[%s18 + $0xd8] sm:$0xff]
      %v6493 = vld [vmem:[%s18 + $0xe0] sm:$0xff]
      %v6494 = vld [vmem:[%s18 + $0xe8] sm:$0xff]
      %v6495 = vld [vmem:[%s18 + $0xf0] sm:$0xff]
      %v6496 = vld [vmem:[%s18 + $0xf8] sm:$0xff]
      %v6497 = vld [vmem:[%s18 + $0x100] sm:$0xff]
      %v6498 = vld [vmem:[%s18 + $0x108] sm:$0xff]
      %v6499 = vld [vmem:[%s18 + $0x110] sm:$0xff]
      %v6500 = vld [vmem:[%s18 + $0x118] sm:$0xff]
      %v6501 = vld [vmem:[%s18 + $0x120] sm:$0xff]
      %v6502 = vld [vmem:[%s18 + $0x128] sm:$0xff]
      %v6503 = vld [vmem:[%s18 + $0x130] sm:$0xff]
      %v6504 = vld [vmem:[%s18 + $0x138] sm:$0xff]
      %v6505 = vld [vmem:[%s18 + $0x140] sm:$0xff]
      %v6506 = vld [vmem:[%s18 + $0x148] sm:$0xff]
      %v6507 = vld [vmem:[%s18 + $0x150] sm:$0xff]
      %v6508 = vld [vmem:[%s18 + $0x158] sm:$0xff]
      %v6509 = vld [vmem:[%s18 + $0x160] sm:$0xff]
      %v6510 = vld [vmem:[%s18 + $0x168] sm:$0xff]
      %v6511 = vld [vmem:[%s18 + $0x170] sm:$0xff]
      %v6512 = vld [vmem:[%s18 + $0x178] sm:$0xff]
      %v6513 = vld [vmem:[%s18 + $0x180] sm:$0xff]
      %v6514 = vld [vmem:[%s18 + $0x188] sm:$0xff]
      %v6515 = vpack.c.bf16 %v6145, %v6141
      %v6516 = vpack.c.bf16 %v6155, %v6151
      %v6517 = vpack.c.bf16 %v6165, %v6161
      %v6518 = vpack.c.bf16 %v6175, %v6171
      %v6519 = vpack.c.bf16 %v6185, %v6181
      %v6520 = vpack.c.bf16 %v6195, %v6191
      %v6521 = vpack.c.bf16 %v6323, %v6462
      %v6522 = vpack.c.bf16 %v6327, %v6325
      %v6523 = vpack.c.bf16 %v6331, %v6329
      %v6524 = vpack.c.bf16 %v6335, %v6333
      %v6525 = vpack.c.bf16 %v6339, %v6337
      %v6526 = vpack.c.bf16 %v6343, %v6341
      %v6527 = vpack.c.bf16 %v6374, %v6463
      %v6528 = vpack.c.bf16 %v6378, %v6376
      %v6529 = vpack.c.bf16 %v6382, %v6380
      %v6530 = vpack.c.bf16 %v6386, %v6384
      %v6531 = vpack.c.bf16 %v6390, %v6388
      %v6532 = vpack.c.bf16 %v6394, %v6392
      %v6533 = vpack.c.bf16 %v6464, %v6396
      %v6534 = vpack.c.bf16 %v6428, %v6426
      %v6535 = vpack.c.bf16 %v6432, %v6430
      %v6536 = vpack.c.bf16 %v6436, %v6434
      %v6537 = vpack.c.bf16 %v6440, %v6438
      %v6538 = vpack.c.bf16 %v6444, %v6442
      %v6539 = vpack.c.bf16 %v6448, %v6446
      %v6540 = vld [vmem:[%s17] sm:$0x1]
      %v6542 = vlaneseq
      %v6543 = vshrl.u32 %v6542, 7
      %v6544 = vsub.s32 0, %v6543
      %v6545 = vrot.slane %v6540, %v6544
      %v6597 = vunpack.c.l.b16 %v6465
      %v6598 = vunpack.c.h.b16 %v6465
      %v6599 = vunpack.c.l.b16 %v6466
      %v6600 = vunpack.c.h.b16 %v6466
      %v6601 = vunpack.c.l.b16 %v6467
      %v6602 = vunpack.c.h.b16 %v6467
      %v6603 = vunpack.c.l.b16 %v6468
      %v6604 = vunpack.c.h.b16 %v6468
      %v6605 = vunpack.c.l.b16 %v6469
      %v6606 = vunpack.c.h.b16 %v6469
      %v6607 = vunpack.c.l.b16 %v6470
      %v6608 = vunpack.c.h.b16 %v6470
      %v6609 = vunpack.c.l.b16 %v6471
      %v6610 = vunpack.c.h.b16 %v6471
      %v6611 = vunpack.c.l.b16 %v6472
      %v6612 = vunpack.c.h.b16 %v6472
      %v6613 = vunpack.c.l.b16 %v6473
      %v6614 = vunpack.c.h.b16 %v6473
      %v6615 = vunpack.c.l.b16 %v6474
      %v6616 = vunpack.c.h.b16 %v6474
      %v6617 = vunpack.c.l.b16 %v6475
      %v6618 = vunpack.c.h.b16 %v6475
      %v6619 = vunpack.c.l.b16 %v6476
      %v6620 = vunpack.c.h.b16 %v6476
      %v6621 = vunpack.c.l.b16 %v6477
      %v6622 = vunpack.c.h.b16 %v6477
      %v6623 = vunpack.c.l.b16 %v6478
      %v6624 = vunpack.c.h.b16 %v6478
      %v6625 = vunpack.c.l.b16 %v6479
      %v6626 = vunpack.c.h.b16 %v6479
      %v6627 = vunpack.c.l.b16 %v6480
      %v6628 = vunpack.c.h.b16 %v6480
      %v6629 = vunpack.c.l.b16 %v6481
      %v6630 = vunpack.c.h.b16 %v6481
      %v6631 = vunpack.c.l.b16 %v6482
      %v6632 = vunpack.c.h.b16 %v6482
      %v6633 = vunpack.c.l.b16 %v6483
      %v6634 = vunpack.c.h.b16 %v6483
      %v6635 = vunpack.c.l.b16 %v6484
      %v6636 = vunpack.c.h.b16 %v6484
      %v6637 = vunpack.c.l.b16 %v6485
      %v6638 = vunpack.c.h.b16 %v6485
      %v6639 = vunpack.c.l.b16 %v6486
      %v6640 = vunpack.c.h.b16 %v6486
      %v6641 = vunpack.c.l.b16 %v6487
      %v6642 = vunpack.c.h.b16 %v6487
      %v6643 = vunpack.c.l.b16 %v6488
      %v6644 = vunpack.c.h.b16 %v6488
      %v6645 = vunpack.c.l.b16 %v6489
      %v6646 = vunpack.c.h.b16 %v6489
      %v6647 = vunpack.c.l.b16 %v6490
      %v6648 = vunpack.c.h.b16 %v6490
      %v6649 = vunpack.c.l.b16 %v6491
      %v6650 = vunpack.c.h.b16 %v6491
      %v6651 = vunpack.c.l.b16 %v6492
      %v6652 = vunpack.c.h.b16 %v6492
      %v6653 = vunpack.c.l.b16 %v6493
      %v6654 = vunpack.c.h.b16 %v6493
      %v6655 = vunpack.c.l.b16 %v6494
      %v6656 = vunpack.c.h.b16 %v6494
      %v6657 = vunpack.c.l.b16 %v6495
      %v6658 = vunpack.c.h.b16 %v6495
      %v6659 = vunpack.c.l.b16 %v6496
      %v6660 = vunpack.c.h.b16 %v6496
      %v6661 = vunpack.c.l.b16 %v6497
      %v6662 = vunpack.c.h.b16 %v6497
      %v6663 = vunpack.c.l.b16 %v6498
      %v6664 = vunpack.c.h.b16 %v6498
      %v6665 = vunpack.c.l.b16 %v6499
      %v6666 = vunpack.c.h.b16 %v6499
      %v6667 = vunpack.c.l.b16 %v6500
      %v6668 = vunpack.c.h.b16 %v6500
      %v6669 = vunpack.c.l.b16 %v6501
      %v6670 = vunpack.c.h.b16 %v6501
      %v6671 = vunpack.c.l.b16 %v6502
      %v6672 = vunpack.c.h.b16 %v6502
      %v6673 = vunpack.c.l.b16 %v6503
      %v6674 = vunpack.c.h.b16 %v6503
      %v6675 = vunpack.c.l.b16 %v6504
      %v6676 = vunpack.c.h.b16 %v6504
      %v6677 = vunpack.c.l.b16 %v6505
      %v6678 = vunpack.c.h.b16 %v6505
      %v6679 = vunpack.c.l.b16 %v6506
      %v6680 = vunpack.c.h.b16 %v6506
      %v6681 = vunpack.c.l.b16 %v6507
      %v6682 = vunpack.c.h.b16 %v6507
      %v6683 = vunpack.c.l.b16 %v6508
      %v6684 = vunpack.c.h.b16 %v6508
      %v6685 = vunpack.c.l.b16 %v6509
      %v6686 = vunpack.c.h.b16 %v6509
      %v6687 = vunpack.c.l.b16 %v6510
      %v6688 = vunpack.c.h.b16 %v6510
      %v6689 = vunpack.c.l.b16 %v6511
      %v6690 = vunpack.c.h.b16 %v6511
      %v6691 = vunpack.c.l.b16 %v6512
      %v6692 = vunpack.c.h.b16 %v6512
      %v6693 = vunpack.c.l.b16 %v6513
      %v6694 = vunpack.c.h.b16 %v6513
      %v6695 = vunpack.c.l.b16 %v6514
      %v6696 = vunpack.c.h.b16 %v6514
      %v6697 = vpack.c.b16 %v6601, %v6597
      %v6698 = vpack.c.b16 %v6602, %v6598
      %v6699 = vpack.c.b16 %v6603, %v6599
      %v6700 = vpack.c.b16 %v6604, %v6600
      %v6701 = vpack.c.b16 %v6609, %v6605
      %v6702 = vpack.c.b16 %v6610, %v6606
      %v6703 = vpack.c.b16 %v6611, %v6607
      %v6704 = vpack.c.b16 %v6612, %v6608
      %v6705 = vpack.c.b16 %v6617, %v6613
      %v6706 = vpack.c.b16 %v6618, %v6614
      %v6707 = vpack.c.b16 %v6619, %v6615
      %v6708 = vpack.c.b16 %v6620, %v6616
      %v6709 = vpack.c.b16 %v6625, %v6621
      %v6710 = vpack.c.b16 %v6626, %v6622
      %v6711 = vpack.c.b16 %v6627, %v6623
      %v6712 = vpack.c.b16 %v6628, %v6624
      %v6713 = vpack.c.b16 %v6633, %v6629
      %v6714 = vpack.c.b16 %v6634, %v6630
      %v6715 = vpack.c.b16 %v6635, %v6631
      %v6716 = vpack.c.b16 %v6636, %v6632
      %v6717 = vpack.c.b16 %v6641, %v6637
      %v6718 = vpack.c.b16 %v6642, %v6638
      %v6719 = vpack.c.b16 %v6643, %v6639
      %v6720 = vpack.c.b16 %v6644, %v6640
      %v6721 = vpack.c.b16 %v6649, %v6645
      %v6722 = vpack.c.b16 %v6650, %v6646
      %v6723 = vpack.c.b16 %v6651, %v6647
      %v6724 = vpack.c.b16 %v6652, %v6648
      %v6725 = vpack.c.b16 %v6657, %v6653
      %v6726 = vpack.c.b16 %v6658, %v6654
      %v6727 = vpack.c.b16 %v6659, %v6655
      %v6728 = vpack.c.b16 %v6660, %v6656
      %v6729 = vpack.c.b16 %v6665, %v6661
      %v6730 = vpack.c.b16 %v6666, %v6662
      %v6731 = vpack.c.b16 %v6667, %v6663
      %v6732 = vpack.c.b16 %v6668, %v6664
      %v6733 = vpack.c.b16 %v6673, %v6669
      %v6734 = vpack.c.b16 %v6674, %v6670
      %v6735 = vpack.c.b16 %v6675, %v6671
      %v6736 = vpack.c.b16 %v6676, %v6672
      %v6737 = vpack.c.b16 %v6681, %v6677
      %v6738 = vpack.c.b16 %v6682, %v6678
      %v6739 = vpack.c.b16 %v6683, %v6679
      %v6740 = vpack.c.b16 %v6684, %v6680
      %v6741 = vpack.c.b16 %v6689, %v6685
      %v6742 = vpack.c.b16 %v6690, %v6686
      %v6743 = vpack.c.b16 %v6691, %v6687
      %v6744 = vpack.c.b16 %v6692, %v6688
      %v6745 = vpack.c.b16 %v6693, %v6693
      %v6746 = vpack.c.b16 %v6694, %v6694
      %v6747 = vpack.c.b16 %v6695, %v6695
      %v6748 = vpack.c.b16 %v6696, %v6696
      %vm6788 = vcmask 97280
      %v6790 = vsel %vm6788, %v6700, 0
      %v6793 = vsel %vm6788, %v6704, 0
      %v6796 = vsel %vm6788, %v6708, 0
      %v6799 = vsel %vm6788, %v6712, 0
      %v6802 = vsel %vm6788, %v6716, 0
      %v6805 = vsel %vm6788, %v6720, 0
      %v6808 = vsel %vm6788, %v6724, 0
      %v6811 = vsel %vm6788, %v6728, 0
      %v6814 = vsel %vm6788, %v6732, 0
      %v6817 = vsel %vm6788, %v6736, 0
      %v6820 = vsel %vm6788, %v6740, 0
      %v6823 = vsel %vm6788, %v6744, 0
      %v6826 = vsel %vm6788, %v6748, 0
      %v6829 = vsel %vm4804, %v6539, 0
      %6831 = vmatprep.subr.bf16.mxu0 0
      %6832 = vmatpush1.bf16.msra.mxu0 %v6522
      %6833 = vmatprep.subr.bf16.mxu0 0
      %6834 = vmatpush1.bf16.msra.mxu0 %v6521
      %6835 = vmatprep.subr.bf16.mxu0 0
      %6836 = vmatpush1.bf16.msra.mxu0 %v6520
      %6837 = vmatprep.subr.bf16.mxu0 0
      %6838 = vmatpush1.bf16.msra.mxu0 %v6519
      %6839 = vmatprep.subr.bf16.mxu0 0
      %6840 = vmatpush1.bf16.msra.mxu0 %v6518
      %6841 = vmatprep.subr.bf16.mxu0 0
      %6842 = vmatpush1.bf16.msra.mxu0 %v6517
      %6843 = vmatprep.subr.bf16.mxu0 0
      %6844 = vmatpush1.bf16.msra.mxu0 %v6516
      %6845 = vmatprep.subr.bf16.mxu0 0
      %6846 = vmatpush1.bf16.msra.mxu0 %v6515
      %6847 = vmatprep.subr.bf16.mxu0 0
      %6848 = vmatpush2.bf16.msra.mxu0 %v6530
      %6849 = vmatprep.subr.bf16.mxu0 0
      %6850 = vmatpush2.bf16.msra.mxu0 %v6529
      %6851 = vmatprep.subr.bf16.mxu0 0
      %6852 = vmatpush2.bf16.msra.mxu0 %v6528
      %6853 = vmatprep.subr.bf16.mxu0 0
      %6854 = vmatpush2.bf16.msra.mxu0 %v6527
      %6855 = vmatprep.subr.bf16.mxu0 0
      %6856 = vmatpush2.bf16.msra.mxu0 %v6526
      %6857 = vmatprep.subr.bf16.mxu0 0
      %6858 = vmatpush2.bf16.msra.mxu0 %v6525
      %6859 = vmatprep.subr.bf16.mxu0 0
      %6860 = vmatpush2.bf16.msra.mxu0 %v6524
      %6861 = vmatprep.subr.bf16.mxu0 0
      %6862 = vmatpush2.bf16.msra.mxu0 %v6523
      %6863 = vmatprep.mubr.bf16.mxu0 %v6698
      %6864 = vmatmul.mubr.bf16.gmra.mxu0 %v6697
      %v6865 = vpop.f32.mrf.mxu0
      %v6866 = vadd.f32 %v6545, %v6865
      %v6867 = vpop.f32.mrf.mxu0
      %v6868 = vpop.f32.mrf.mxu0
      %v6869 = vadd.f32 %v6545, %v6868
      %v6870 = vpop.f32.mrf.mxu0
      %6871 = vmatprep.mubr.bf16.mxu0 %v6702
      %6872 = vmatmul.mubr.bf16.gmra.mxu0 %v6701
      %v6873 = vpop.f32.mrf.mxu0
      %v6874 = vadd.f32 %v6545, %v6873
      %v6875 = vpop.f32.mrf.mxu0
      %v6876 = vpop.f32.mrf.mxu0
      %v6877 = vadd.f32 %v6545, %v6876
      %v6878 = vpop.f32.mrf.mxu0
      %6879 = vmatprep.mubr.bf16.mxu0 %v6706
      %6880 = vmatmul.mubr.bf16.gmra.mxu0 %v6705
      %v6881 = vpop.f32.mrf.mxu0
      %v6882 = vadd.f32 %v6545, %v6881
      %v6883 = vpop.f32.mrf.mxu0
      %v6884 = vpop.f32.mrf.mxu0
      %v6885 = vadd.f32 %v6545, %v6884
      %v6886 = vpop.f32.mrf.mxu0
      %6887 = vmatprep.mubr.bf16.mxu0 %v6710
      %6888 = vmatmul.mubr.bf16.gmra.mxu0 %v6709
      %v6889 = vpop.f32.mrf.mxu0
      %v6890 = vadd.f32 %v6545, %v6889
      %v6891 = vpop.f32.mrf.mxu0
      %v6892 = vpop.f32.mrf.mxu0
      %v6893 = vadd.f32 %v6545, %v6892
      %v6894 = vpop.f32.mrf.mxu0
      %6895 = vmatprep.mubr.bf16.mxu0 %v6714
      %6896 = vmatmul.mubr.bf16.gmra.mxu0 %v6713
      %v6897 = vpop.f32.mrf.mxu0
      %v6898 = vadd.f32 %v6545, %v6897
      %v6899 = vpop.f32.mrf.mxu0
      %v6900 = vpop.f32.mrf.mxu0
      %v6901 = vadd.f32 %v6545, %v6900
      %v6902 = vpop.f32.mrf.mxu0
      %6903 = vmatprep.mubr.bf16.mxu0 %v6718
      %6904 = vmatmul.mubr.bf16.gmra.mxu0 %v6717
      %v6905 = vpop.f32.mrf.mxu0
      %v6906 = vadd.f32 %v6545, %v6905
      %v6907 = vpop.f32.mrf.mxu0
      %v6908 = vpop.f32.mrf.mxu0
      %v6909 = vadd.f32 %v6545, %v6908
      %v6910 = vpop.f32.mrf.mxu0
      %6911 = vmatprep.mubr.bf16.mxu0 %v6722
      %6912 = vmatmul.mubr.bf16.gmra.mxu0 %v6721
      %v6913 = vpop.f32.mrf.mxu0
      %v6914 = vadd.f32 %v6545, %v6913
      %v6915 = vpop.f32.mrf.mxu0
      %v6916 = vpop.f32.mrf.mxu0
      %v6917 = vadd.f32 %v6545, %v6916
      %v6918 = vpop.f32.mrf.mxu0
      %6919 = vmatprep.mubr.bf16.mxu0 %v6726
      %6920 = vmatmul.mubr.bf16.gmra.mxu0 %v6725
      %v6921 = vpop.f32.mrf.mxu0
      %v6922 = vadd.f32 %v6545, %v6921
      %v6923 = vpop.f32.mrf.mxu0
      %v6924 = vpop.f32.mrf.mxu0
      %v6925 = vadd.f32 %v6545, %v6924
      %v6926 = vpop.f32.mrf.mxu0
      %6927 = vmatprep.mubr.bf16.mxu0 %v6730
      %6928 = vmatmul.mubr.bf16.gmra.mxu0 %v6729
      %v6929 = vpop.f32.mrf.mxu0
      %v6930 = vadd.f32 %v6545, %v6929
      %v6931 = vpop.f32.mrf.mxu0
      %v6932 = vpop.f32.mrf.mxu0
      %v6933 = vadd.f32 %v6545, %v6932
      %v6934 = vpop.f32.mrf.mxu0
      %6935 = vmatprep.mubr.bf16.mxu0 %v6734
      %6936 = vmatmul.mubr.bf16.gmra.mxu0 %v6733
      %v6937 = vpop.f32.mrf.mxu0
      %v6938 = vadd.f32 %v6545, %v6937
      %v6939 = vpop.f32.mrf.mxu0
      %v6940 = vpop.f32.mrf.mxu0
      %v6941 = vadd.f32 %v6545, %v6940
      %v6942 = vpop.f32.mrf.mxu0
      %6943 = vmatprep.mubr.bf16.mxu0 %v6738
      %6944 = vmatmul.mubr.bf16.gmra.mxu0 %v6737
      %v6945 = vpop.f32.mrf.mxu0
      %v6946 = vadd.f32 %v6545, %v6945
      %v6947 = vpop.f32.mrf.mxu0
      %v6948 = vpop.f32.mrf.mxu0
      %v6949 = vadd.f32 %v6545, %v6948
      %v6950 = vpop.f32.mrf.mxu0
      %6951 = vmatprep.mubr.bf16.mxu0 %v6742
      %6952 = vmatmul.mubr.bf16.gmra.mxu0 %v6741
      %v6953 = vpop.f32.mrf.mxu0
      %v6954 = vadd.f32 %v6545, %v6953
      %v6955 = vpop.f32.mrf.mxu0
      %v6956 = vpop.f32.mrf.mxu0
      %v6957 = vadd.f32 %v6545, %v6956
      %v6958 = vpop.f32.mrf.mxu0
      %6959 = vmatprep.mubr.bf16.mxu0 %v6746
      %6960 = vmatmul.mubr.bf16.gmra.mxu0 %v6745
      %v6961 = vpop.f32.mrf.mxu0
      %v6962 = vadd.f32 %v6545, %v6961
      %v6963 = vpop.f32.mrf.mxu0
      %v6964 = vpop.f32.mrf.mxu0
      %v6965 = vpop.f32.mrf.mxu0
      %6966 = vdwg.mxu0
      %6967 = vmatprep.subr.bf16.mxu0 0
      %6968 = vmatpush1.bf16.msra.mxu0 %v6538
      %6969 = vmatprep.subr.bf16.mxu0 0
      %6970 = vmatpush1.bf16.msra.mxu0 %v6537
      %6971 = vmatprep.subr.bf16.mxu0 0
      %6972 = vmatpush1.bf16.msra.mxu0 %v6536
      %6973 = vmatprep.subr.bf16.mxu0 0
      %6974 = vmatpush1.bf16.msra.mxu0 %v6535
      %6975 = vmatprep.subr.bf16.mxu0 0
      %6976 = vmatpush1.bf16.msra.mxu0 %v6534
      %6977 = vmatprep.subr.bf16.mxu0 0
      %6978 = vmatpush1.bf16.msra.mxu0 %v6533
      %6979 = vmatprep.subr.bf16.mxu0 0
      %6980 = vmatpush1.bf16.msra.mxu0 %v6532
      %6981 = vmatprep.subr.bf16.mxu0 0
      %6982 = vmatpush1.bf16.msra.mxu0 %v6531
      %6983 = vmatprep.subr.bf16.mxu0 0
      %6984 = vmatpush2.bf16.msra.mxu0 0
      %6985 = vmatprep.subr.bf16.mxu0 0
      %6986 = vmatpush2.bf16.msra.mxu0 0
      %6987 = vmatprep.subr.bf16.mxu0 0
      %6988 = vmatpush2.bf16.msra.mxu0 0
      %6989 = vmatprep.subr.bf16.mxu0 0
      %6990 = vmatpush2.bf16.msra.mxu0 0
      %6991 = vmatprep.subr.bf16.mxu0 0
      %6992 = vmatpush2.bf16.msra.mxu0 0
      %6993 = vmatprep.subr.bf16.mxu0 0
      %6994 = vmatpush2.bf16.msra.mxu0 0
      %6995 = vmatprep.subr.bf16.mxu0 0
      %6996 = vmatpush2.bf16.msra.mxu0 0
      %6997 = vmatprep.subr.bf16.mxu0 0
      %6998 = vmatpush2.bf16.msra.mxu0 %v6829
      %6999 = vmatprep.mubr.bf16.mxu0 %v6790
      %7000 = vmatmul.mubr.bf16.gmra.mxu0 %v6699
      %v7001 = vpop.f32.mrf.mxu0
      %v7002 = vadd.f32 %v6866, %v7001
      %v7003 = vpop.f32.mrf.mxu0
      %v7004 = vpop.f32.mrf.mxu0
      %v7005 = vadd.f32 %v6869, %v7004
      %v7006 = vpop.f32.mrf.mxu0
      %7007 = vmatprep.mubr.bf16.mxu0 %v6793
      %7008 = vmatmul.mubr.bf16.gmra.mxu0 %v6703
      %v7009 = vpop.f32.mrf.mxu0
      %v7010 = vadd.f32 %v6874, %v7009
      %v7011 = vpop.f32.mrf.mxu0
      %v7012 = vpop.f32.mrf.mxu0
      %v7013 = vadd.f32 %v6877, %v7012
      %v7014 = vpop.f32.mrf.mxu0
      %7015 = vmatprep.mubr.bf16.mxu0 %v6796
      %7016 = vmatmul.mubr.bf16.gmra.mxu0 %v6707
      %v7017 = vpop.f32.mrf.mxu0
      %v7018 = vadd.f32 %v6882, %v7017
      %v7019 = vpop.f32.mrf.mxu0
      %v7020 = vpop.f32.mrf.mxu0
      %v7021 = vadd.f32 %v6885, %v7020
      %v7022 = vpop.f32.mrf.mxu0
      %7023 = vmatprep.mubr.bf16.mxu0 %v6799
      %7024 = vmatmul.mubr.bf16.gmra.mxu0 %v6711
      %v7025 = vpop.f32.mrf.mxu0
      %v7026 = vadd.f32 %v6890, %v7025
      %v7027 = vpop.f32.mrf.mxu0
      %v7028 = vpop.f32.mrf.mxu0
      %v7029 = vadd.f32 %v6893, %v7028
      %v7030 = vpop.f32.mrf.mxu0
      %7031 = vmatprep.mubr.bf16.mxu0 %v6802
      %7032 = vmatmul.mubr.bf16.gmra.mxu0 %v6715
      %v7033 = vpop.f32.mrf.mxu0
      %v7034 = vadd.f32 %v6898, %v7033
      %v7035 = vpop.f32.mrf.mxu0
      %v7036 = vpop.f32.mrf.mxu0
      %v7037 = vadd.f32 %v6901, %v7036
      %v7038 = vpop.f32.mrf.mxu0
      %7039 = vmatprep.mubr.bf16.mxu0 %v6805
      %7040 = vmatmul.mubr.bf16.gmra.mxu0 %v6719
      %v7041 = vpop.f32.mrf.mxu0
      %v7042 = vadd.f32 %v6906, %v7041
      %v7043 = vpop.f32.mrf.mxu0
      %v7044 = vpop.f32.mrf.mxu0
      %v7045 = vadd.f32 %v6909, %v7044
      %v7046 = vpop.f32.mrf.mxu0
      %7047 = vmatprep.mubr.bf16.mxu0 %v6808
      %7048 = vmatmul.mubr.bf16.gmra.mxu0 %v6723
      %v7049 = vpop.f32.mrf.mxu0
      %v7050 = vadd.f32 %v6914, %v7049
      %v7051 = vpop.f32.mrf.mxu0
      %v7052 = vpop.f32.mrf.mxu0
      %v7053 = vadd.f32 %v6917, %v7052
      %v7054 = vpop.f32.mrf.mxu0
      %7055 = vmatprep.mubr.bf16.mxu0 %v6811
      %7056 = vmatmul.mubr.bf16.gmra.mxu0 %v6727
      %v7057 = vpop.f32.mrf.mxu0
      %v7058 = vadd.f32 %v6922, %v7057
      %v7059 = vpop.f32.mrf.mxu0
      %v7060 = vpop.f32.mrf.mxu0
      %v7061 = vadd.f32 %v6925, %v7060
      %v7062 = vpop.f32.mrf.mxu0
      %7063 = vmatprep.mubr.bf16.mxu0 %v6814
      %7064 = vmatmul.mubr.bf16.gmra.mxu0 %v6731
      %v7065 = vpop.f32.mrf.mxu0
      %v7066 = vadd.f32 %v6930, %v7065
      %v7067 = vpop.f32.mrf.mxu0
      %v7068 = vpop.f32.mrf.mxu0
      %v7069 = vadd.f32 %v6933, %v7068
      %v7070 = vpop.f32.mrf.mxu0
      %7071 = vmatprep.mubr.bf16.mxu0 %v6817
      %7072 = vmatmul.mubr.bf16.gmra.mxu0 %v6735
      %v7073 = vpop.f32.mrf.mxu0
      %v7074 = vadd.f32 %v6938, %v7073
      %v7075 = vpop.f32.mrf.mxu0
      %v7076 = vpop.f32.mrf.mxu0
      %v7077 = vadd.f32 %v6941, %v7076
      %v7078 = vpop.f32.mrf.mxu0
      %7079 = vmatprep.mubr.bf16.mxu0 %v6820
      %7080 = vmatmul.mubr.bf16.gmra.mxu0 %v6739
      %v7081 = vpop.f32.mrf.mxu0
      %v7082 = vadd.f32 %v6946, %v7081
      %v7083 = vpop.f32.mrf.mxu0
      %v7084 = vpop.f32.mrf.mxu0
      %v7085 = vadd.f32 %v6949, %v7084
      %v7086 = vpop.f32.mrf.mxu0
      %7087 = vmatprep.mubr.bf16.mxu0 %v6823
      %7088 = vmatmul.mubr.bf16.gmra.mxu0 %v6743
      %v7089 = vpop.f32.mrf.mxu0
      %v7090 = vadd.f32 %v6954, %v7089
      %v7091 = vpop.f32.mrf.mxu0
      %v7092 = vpop.f32.mrf.mxu0
      %v7093 = vadd.f32 %v6957, %v7092
      %v7094 = vpop.f32.mrf.mxu0
      %7095 = vmatprep.mubr.bf16.mxu0 %v6826
      %7096 = vmatmul.mubr.bf16.gmra.mxu0 %v6747
      %v7097 = vpop.f32.mrf.mxu0
      %v7098 = vadd.f32 %v6962, %v7097
      %v7099 = vpop.f32.mrf.mxu0
      %v7100 = vpop.f32.mrf.mxu0
      %v7101 = vpop.f32.mrf.mxu0
      %7102 = vdwg.mxu0
      %7103 = vst [vmem:[%s596] sm:$0xff] %v7002
      %7104 = vst [vmem:[%s596 + $0x8] sm:$0xff] %v7005
      %7105 = vst [vmem:[%s596 + $0x10] sm:$0xff] %v7010
      %7106 = vst [vmem:[%s596 + $0x18] sm:$0xff] %v7013
      %7107 = vst [vmem:[%s596 + $0x20] sm:$0xff] %v7018
      %7108 = vst [vmem:[%s596 + $0x28] sm:$0xff] %v7021
      %7109 = vst [vmem:[%s596 + $0x30] sm:$0xff] %v7026
      %7110 = vst [vmem:[%s596 + $0x38] sm:$0xff] %v7029
      %7111 = vst [vmem:[%s596 + $0x40] sm:$0xff] %v7034
      %7112 = vst [vmem:[%s596 + $0x48] sm:$0xff] %v7037
      %7113 = vst [vmem:[%s596 + $0x50] sm:$0xff] %v7042
      %7114 = vst [vmem:[%s596 + $0x58] sm:$0xff] %v7045
      %7115 = vst [vmem:[%s596 + $0x60] sm:$0xff] %v7050
      %7116 = vst [vmem:[%s596 + $0x68] sm:$0xff] %v7053
      %7117 = vst [vmem:[%s596 + $0x70] sm:$0xff] %v7058
      %7118 = vst [vmem:[%s596 + $0x78] sm:$0xff] %v7061
      %7119 = vst [vmem:[%s596 + $0x80] sm:$0xff] %v7066
      %7120 = vst [vmem:[%s596 + $0x88] sm:$0xff] %v7069
      %7121 = vst [vmem:[%s596 + $0x90] sm:$0xff] %v7074
      %7122 = vst [vmem:[%s596 + $0x98] sm:$0xff] %v7077
      %7123 = vst [vmem:[%s596 + $0xa0] sm:$0xff] %v7082
      %7124 = vst [vmem:[%s596 + $0xa8] sm:$0xff] %v7085
      %7125 = vst [vmem:[%s596 + $0xb0] sm:$0xff] %v7090
      %7126 = vst [vmem:[%s596 + $0xb8] sm:$0xff] %v7093
      %7127 = vst [vmem:[%s596 + $0xc0] sm:$0xff] %v7098
      %p7128 = scmp.lt.s32.totalorder %s30, 1
      %s7129 = scalar_select %p7128, %s30, 1
      %s7130 = smul.addr %s7129, 25
      %s7131 = smul.addr %s7130, 8
      %s7132 = scalar_lea.vmem %s19, %s7131
      // Predicated region
      $region97: #{decoder_cnn_forward.1} parent=95 // pred_check
        %p7133 = pneg %p452
      $region98: #{decoder_cnn_forward.1} parent=95 // pred_check_branch
        %7135 = sbr.rel (%p7133) target = $region100
      $region99: #{decoder_cnn_forward.1} parent=95 // pred_region
        _
      $region100: #{decoder_cnn_forward.1} parent=95 // pred_fallthru
        _
    $region96: #{decoder_cnn_forward.1} parent=5 // pred_fallthru
      _
    %p7136 = scmp.le.s32.totalorder 2, %s25
    // Predicated region
    $region101: #{decoder_cnn_forward.1} parent=5 // pred_check
      %p7137 = pneg %p7136
    $region102: #{decoder_cnn_forward.1} parent=5 // pred_check_branch
      %7139 = sbr.rel (%p7137) target = $region104
    $region103: #{decoder_cnn_forward.1} parent=5 // pred_region
      %s7140 = ssub.s32 %s25, 2
      // Predicated region
      $region105: #{decoder_cnn_forward.1} parent=103 // pred_check
        %p7141 = pneg %p458
      $region106: #{decoder_cnn_forward.1} parent=103 // pred_check_branch
        %7143 = sbr.rel (%p7141) target = $region108
      $region107: #{decoder_cnn_forward.1} parent=103 // pred_region
        %p7144 = scmp.lt.s32.totalorder %s31, 1
        %s7145 = scalar_select %p7144, %s31, 1
        %s7146 = smul.addr %s7145, 25
        %s7147 = smul.addr %s7146, 8
        %s7148 = scalar_lea.vmem %s19, %s7147
      $region108: #{decoder_cnn_forward.1} parent=103 // pred_fallthru
        _
    $region104: #{decoder_cnn_forward.1} parent=5 // pred_fallthru
      _
  $region6: #{decoder_cnn_forward.1} parent=0 // loop_footer
    %s29 = sadd.s32 1, %s25
  $region7: #{decoder_cnn_forward.1} parent=0 // loop_footer_branch
    %24 = sbr.rel target = $region3
  $region8: #{decoder_cnn_forward.1} parent=0 // loop_exit
    _

</llo_original>
